<compile_context>
chip_gen: v7x
topology: tpu7x:2x2x1
jax: 0.10.0
libtpu: 0.0.40
codegen_flags: <defaults>
</compile_context>

<pallas_src>
import functools

import jax
import jax.numpy as jnp
from jax import lax
from jax.experimental import pallas as pl
from jax.experimental.pallas import tpu as pltpu

KSIZE = 3    # every conv in the module uses kernel_size=3, padding=1
LANE = 128   # TPU lane width; channel dims are padded up to multiples of this


def _round_up(n, m=LANE):
    return ((n + m - 1) // m) * m


# --------------------------------- kernel -------------------------------------
def _residual_block_kernel(L, x_ref, w1_ref, b1_ref, w2_ref, b2_ref, o_ref):
    """One batch-tile of one ResidualBlock, channels-last, batch-flat rows.

    x_ref : (TB*L,  Cin)             input rows (batch-major, L rows per element)
    w1_ref: (3*Cin, Cmid)            conv1.conv1 weight, rows = [tap -1 | tap 0 | tap +1]
    b1_ref: (1, Cmid)                conv1.conv1 bias (f32)
    w2_ref: (3*Cmid + 3*Cin, Cout)   fused conv1.conv2 + shortcut conv2 weight
    b2_ref: (1, Cout)                fused bias (f32)
    o_ref : (TB*Lo, Cout)            output rows, Lo = L // 2
    """
    R, Cin = x_ref.shape
    Ro, Cout = o_ref.shape
    Cmid = w1_ref.shape[1]
    Lo = L // 2
    f32 = jnp.float32
    cdt = x_ref.dtype

    # De-interleaved input rows. L is even, so flat-row parity == position parity and
    # a stride-2 slice of the flat block yields per-element even/odd rows, batch-major.
    x_ev = x_ref[pl.ds(0, Ro, 2), :]                              # x[2lo]
    x_od = x_ref[pl.ds(1, Ro, 2), :]                              # x[2lo + 1]

    # +-1 halo taps: XLU roll + boundary mask. The mask both implements the pad=1
    # zero halo and stops taps crossing batch-element boundaries inside the tile.
    lo_idx = lax.broadcasted_iota(jnp.int32, (Ro, 1), 0) % Lo
    x_m1 = jnp.where(lo_idx == 0, 0.0,
                     pltpu.roll(x_od, shift=1, axis=0))           # x[2lo - 1]
    x_p2 = jnp.where(lo_idx == Lo - 1, 0.0,
                     pltpu.roll(x_ev, shift=Ro - 1, axis=0))      # x[2lo + 2]

    def w1_tap(t):
        return w1_ref[pl.ds(t * Cin, Cin), :]

    def conv1(xm1, x0, xp1):
        """relu(conv1.conv1) rows; per-tap accumulating dots (K = Cin >= 128)."""
        acc = jnp.dot(xm1, w1_tap(0), preferred_element_type=f32)
        acc += jnp.dot(x0, w1_tap(1), preferred_element_type=f32)
        acc += jnp.dot(xp1, w1_tap(2), preferred_element_type=f32)
        return jnp.maximum(acc + b1_ref[...], 0.0)

    # conv1 evaluated directly at even / odd positions -> already de-interleaved.
    h_ev = conv1(x_m1, x_ev, x_od)                                # h[2lo]      (f32)
    h_od = conv1(x_ev, x_od, x_p2)                                # h[2lo + 1]  (f32)
    h_m1 = jnp.where(lo_idx == 0, 0.0,
                     pltpu.roll(h_od, shift=1, axis=0))           # h[2lo - 1]
    # TODO(synk): nn.Dropout after conv1 is stochastic in train mode; identity (eval) here.

    # conv1.conv2 (k=3, stride 2, pad 1) on h fused with the stride-2 shortcut on x.
    def w2_tap(off, width):
        return w2_ref[pl.ds(off, width), :]

    y = jnp.dot(h_m1.astype(cdt), w2_tap(0 * Cmid, Cmid), preferred_element_type=f32)
    y += jnp.dot(h_ev.astype(cdt), w2_tap(1 * Cmid, Cmid), preferred_element_type=f32)
    y += jnp.dot(h_od.astype(cdt), w2_tap(2 * Cmid, Cmid), preferred_element_type=f32)
    y += jnp.dot(x_m1, w2_tap(3 * Cmid + 0 * Cin, Cin), preferred_element_type=f32)
    y += jnp.dot(x_ev, w2_tap(3 * Cmid + 1 * Cin, Cin), preferred_element_type=f32)
    y += jnp.dot(x_od, w2_tap(3 * Cmid + 2 * Cin, Cin), preferred_element_type=f32)
    o_ref[...] = jnp.maximum(y + b2_ref[...], 0.0).astype(o_ref.dtype)


# ------------------------------- pallas_call -----------------------------------
def _pick_batch_tile(batch, L, target_rows=512):
    """Largest batch tile that divides `batch`, targets ~target_rows matmul rows,
    and keeps second-minor block dims 8-aligned (unless the tile spans the batch)."""
    Lo = max(L // 2, 1)
    tb = max(1, min(batch, max(1, target_rows // max(L, 1))))
    while batch % tb:                                   # shrink to a divisor of batch
        tb -= 1
    while tb < batch and ((tb * L) % 8 or (tb * Lo) % 8):
        tb += 1                                         # grow to next aligned divisor
        while batch % tb:
            tb += 1
    return tb


def _pallas_residual_block(x_flat, w1, b1, w2, b2, *, batch, batch_tile=None):
    """x_flat: (B*L, Cin) batch-major channels-last rows -> (B*(L//2), Cout)."""
    rows, cin = x_flat.shape
    L = rows // batch
    assert rows == batch * L and L % 2 == 0, "stride-2 block assumes even L"
    # TODO(synk): odd L (PyTorch yields (L+1)//2 outputs) is not handled.
    cmid = w1.shape[1]
    cout = w2.shape[1]
    Lo = L // 2
    target = batch_tile * L if batch_tile else 512
    tb = _pick_batch_tile(batch, L, target)
    grid = (batch // tb,)

    kernel = functools.partial(_residual_block_kernel, L)
    return pl.pallas_call(
        kernel,
        out_shape=jax.ShapeDtypeStruct((batch * Lo, cout), x_flat.dtype),
        grid_spec=pltpu.PrefetchScalarGridSpec(
            num_scalar_prefetch=0,
            grid=grid,  # batch tiles; pipelined + sharded across TensorCores
            in_specs=[
                pl.BlockSpec((tb * L, cin), lambda b: (b, 0)),
                # Weights / biases are grid-invariant (same block every step).
                # TODO(synk): on v7x consider pipeline_mode=pl.Buffered(1) for them to
                # halve weight VMEM residency against the 64 MiB budget.
                pl.BlockSpec((3 * cin, cmid), lambda b: (0, 0)),
                pl.BlockSpec((1, cmid), lambda b: (0, 0)),
                pl.BlockSpec((3 * cmid + 3 * cin, cout), lambda b: (0, 0)),
                pl.BlockSpec((1, cout), lambda b: (0, 0)),
            ],
            out_specs=pl.BlockSpec((tb * Lo, cout), lambda b: (b, 0)),
        ),
        compiler_params=pltpu.CompilerParams(
            dimension_semantics=("parallel",),
            vmem_limit_bytes=48 * 1024 * 1024,  # above scoped defaults, < v7x 64 MiB phys
        ),
    )(x_flat, w1, b1, w2, b2)


# ------------------------------ parameters (glue) -------------------------------
def _kaiming_normal(key, shape):
    # PyTorch kaiming_normal_ defaults: gain=sqrt(2), fan_in = in_channels * k
    fan_in = shape[1] * shape[2]
    std = (2.0 / fan_in) ** 0.5
    return std * jax.random.normal(key, shape, dtype=jnp.float32)


def init_residual_cnn_params(key, num_channels):
    """Per-block params in PyTorch Conv1d layout (out, in, k); biases = 0."""
    params = []
    cin = num_channels[0]
    for cout in num_channels[1:]:
        key, k1, k2, k3 = jax.random.split(key, 4)
        wa = _kaiming_normal(k1, (cout, cin, KSIZE))   # block.conv1.conv1 (stride 1)
        wb = _kaiming_normal(k2, (cout, cout, KSIZE))  # block.conv1.conv2 (stride 2)
        ws = _kaiming_normal(k3, (cout, cin, KSIZE))   # block.conv2 shortcut (stride 2)
        zeros = lambda: jnp.zeros((cout,), jnp.float32)
        params.append((wa, zeros(), wb, zeros(), ws, zeros()))
        cin = cout
    return params


def _conv_w_to_mm(w, cin_p, cout_p, dtype):
    """PyTorch (Cout, Cin, K) -> (K*cin_p, cout_p), tap-major rows, zero lane-padded."""
    cout, cin, k = w.shape
    w_t = jnp.transpose(w, (2, 1, 0))                                   # (K, Cin, Cout)
    w_t = jnp.pad(w_t, ((0, 0), (0, cin_p - cin), (0, cout_p - cout)))
    return w_t.reshape(k * cin_p, cout_p).astype(dtype)


def prepare_params(params, compute_dtype=jnp.float32):
    """One-time layout prep: fused matmul weights, channel dims padded to 128 lanes.

    Use compute_dtype=jnp.bfloat16 on v6e/v7x (kernel still accumulates in f32 and
    biases stay f32). Padded weight rows/cols are zero, so padded channels stay
    exactly zero through every layer.
    """
    prepared = []
    for (wa, ba, wb, bb, ws, bs) in params:
        cout, cin, _ = wa.shape
        cin_p, cout_p = _round_up(cin), _round_up(cout)
        w1 = _conv_w_to_mm(wa, cin_p, cout_p, compute_dtype)            # (3*cin_p, cout_p)
        w2 = jnp.concatenate(
            [_conv_w_to_mm(wb, cout_p, cout_p, compute_dtype),          # conv1.conv2
             _conv_w_to_mm(ws, cin_p, cout_p, compute_dtype)], axis=0)  # shortcut conv2
        b1 = jnp.pad(ba, (0, cout_p - cout)).astype(jnp.float32).reshape(1, -1)
        b2 = jnp.pad(bb + bs, (0, cout_p - cout)).astype(jnp.float32).reshape(1, -1)
        prepared.append((w1, b1, w2, b2))
    return prepared


def residual_cnn_pallas(x_ncl, prepared_params, *, out_channels, batch_tile=None):
    """Forward pass. x_ncl: (N, C, L) as PyTorch Conv1d expects; returns (N, C_out, L_out)."""
    B, c0, L = x_ncl.shape
    cdt = prepared_params[0][0].dtype
    cin_p = prepared_params[0][0].shape[0] // KSIZE
    # Entry layout plumbing (paid once, on the smallest activation): channels-last,
    # lane-pad channels, flatten to batch-major rows.
    # TODO(synk): fold this transpose/pad into the first/last pallas_call to save an HBM trip.
    x = jnp.transpose(x_ncl, (0, 2, 1)).astype(cdt)
    x = jnp.pad(x, ((0, 0), (0, 0), (0, cin_p - c0))).reshape(B * L, cin_p)
    # TODO(synk): consecutive blocks could be fused into one pallas_call (VMEM-resident
    # intermediates) when the per-tile activation + all fused weights fit the VMEM budget.
    for (w1, b1, w2, b2) in prepared_params:
        x = _pallas_residual_block(x, w1, b1, w2, b2, batch=B, batch_tile=batch_tile)
        L //= 2
    y = x.reshape(B, L, -1)[:, :, :out_channels]
    return jnp.transpose(y, (0, 2, 1))


# ----------------------------- pure-JAX reference -------------------------------
def _conv1d_ref(x, w, b, stride):
    y = lax.conv_general_dilated(
        x, w, window_strides=(stride,), padding=[(1, 1)],
        dimension_numbers=('NCH', 'OIH', 'NCH'))
    return y + b[None, :, None]


def residual_cnn_ref(x, params):
    for (wa, ba, wb, bb, ws, bs) in params:
        h = jax.nn.relu(_conv1d_ref(x, wa, ba, 1))
        x = jax.nn.relu(_conv1d_ref(h, wb, bb, 2) + _conv1d_ref(x, ws, bs, 2))
    return x


if __name__ == "__main__":
    key = jax.random.PRNGKey(0)
    key_p, key_x = jax.random.split(key)

    num_channels = [4, 8, 16]          # -> 2 ResidualBlocks, each halves L
    B, L = 4, 16
    params = init_residual_cnn_params(key_p, num_channels)
    prepared = prepare_params(params)  # layout + lane padding paid once, not per forward
    x = jax.random.normal(key_x, (B, num_channels[0], L), dtype=jnp.float32)

    fwd = jax.jit(functools.partial(
        residual_cnn_pallas, out_channels=num_channels[-1], batch_tile=2))
    y = jax.block_until_ready(fwd(x, prepared))

    y_ref = residual_cnn_ref(x, params)
    assert y.shape == (B, num_channels[-1], L // 4), y.shape
    err = float(jnp.max(jnp.abs(y - y_ref)))
    assert jnp.allclose(y, y_ref, atol=1e-4, rtol=1e-4), err
    print("KERNEL_OK")
</pallas_src>

<mosaic_0001>
module attributes {stable_mosaic.version = 11 : i64} {
  func.func @_residual_block_kernel(%arg0: i32, %arg1: memref<32x128xf32, #tpu.memory_space<vmem>>, %arg2: memref<384x128xf32, #tpu.memory_space<vmem>>, %arg3: memref<1x128xf32, #tpu.memory_space<vmem>>, %arg4: memref<768x128xf32, #tpu.memory_space<vmem>>, %arg5: memref<1x128xf32, #tpu.memory_space<vmem>>, %arg6: memref<16x128xf32, #tpu.memory_space<vmem>>) attributes {dimension_semantics = [#tpu.dimension_semantics<parallel>], iteration_bounds = array<i64: 2>, scalar_prefetch = 0 : i64, scratch_operands = 0 : i64, tpu.core_type = #tpu.core_type<tc>, window_params = [{transform_indices = @transform_0, window_bounds = array<i64: 32, 128>}, {pipeline_mode = #tpu.pipeline_mode<synchronous>, transform_indices = @transform_1, window_bounds = array<i64: 384, 128>}, {pipeline_mode = #tpu.pipeline_mode<synchronous>, transform_indices = @transform_2, window_bounds = array<i64: 1, 128>}, {pipeline_mode = #tpu.pipeline_mode<synchronous>, transform_indices = @transform_3, window_bounds = array<i64: 768, 128>}, {pipeline_mode = #tpu.pipeline_mode<synchronous>, transform_indices = @transform_4, window_bounds = array<i64: 1, 128>}, {transform_indices = @transform_5, window_bounds = array<i64: 16, 128>}]} {
    %c0 = arith.constant 0 : index
    %c0_0 = arith.constant 0 : index
    %0 = tpu.strided_load %arg1[%c0, %c0_0] {strides = array<i32: 2, 1>} : memref<32x128xf32, #tpu.memory_space<vmem>>, vector<16x128xf32>
    %c1 = arith.constant 1 : index
    %c0_1 = arith.constant 0 : index
    %1 = tpu.strided_load %arg1[%c1, %c0_1] {strides = array<i32: 2, 1>} : memref<32x128xf32, #tpu.memory_space<vmem>>, vector<16x128xf32>
    %2 = tpu.iota {dimensions = array<i32: 0>} : vector<16x1xi32>
    %c8_i32 = arith.constant 8 : i32
    %c0_i32 = arith.constant 0 : i32
    %3 = arith.cmpi eq, %c8_i32, %c0_i32 : i32
    %c1_i32 = arith.constant 1 : i32
    %4 = arith.select %3, %c1_i32, %c8_i32 : i32
    %5 = vector.broadcast %4 : i32 to vector<16x1xi32>
    %6 = arith.remsi %2, %5 : vector<16x1xi32>
    %c0_i32_2 = arith.constant 0 : i32
    %7 = vector.broadcast %c0_i32_2 : i32 to vector<16x1xi32>
    %8 = arith.cmpi ne, %6, %7 : vector<16x1xi32>
    %c0_i32_3 = arith.constant 0 : i32
    %9 = vector.broadcast %c0_i32_3 : i32 to vector<16x1xi32>
    %10 = arith.cmpi slt, %6, %9 : vector<16x1xi32>
    %c0_i32_4 = arith.constant 0 : i32
    %11 = arith.cmpi slt, %4, %c0_i32_4 : i32
    %12 = vector.broadcast %11 : i1 to vector<16x1xi1>
    %13 = vector.broadcast %12 : vector<16x1xi1> to vector<16x1xi1>
    %14 = arith.xori %10, %13 : vector<16x1xi1>
    %15 = arith.andi %14, %8 : vector<16x1xi1>
    %16 = vector.broadcast %4 : i32 to vector<16x1xi32>
    %17 = arith.addi %6, %16 : vector<16x1xi32>
    %18 = arith.select %15, %17, %6 : vector<16x1xi1>, vector<16x1xi32>
    %c0_i32_5 = arith.constant 0 : i32
    %19 = vector.broadcast %c0_i32_5 : i32 to vector<16x1xi32>
    %20 = arith.cmpi eq, %18, %19 : vector<16x1xi32>
    %c1_i32_6 = arith.constant 1 : i32
    %21 = tpu.dynamic_rotate %1 by %c1_i32_6 dim 0 : vector<16x128xf32>, i32 -> vector<16x128xf32>
    %cst = arith.constant 0.000000e+00 : f32
    %22 = vector.shape_cast %20 : vector<16x1xi1> to vector<16x1xi1>
    %23 = vector.broadcast %22 : vector<16x1xi1> to vector<16x128xi1>
    %24 = vector.broadcast %cst : f32 to vector<16x128xf32>
    %25 = arith.select %23, %24, %21 : vector<16x128xi1>, vector<16x128xf32>
    %c7_i32 = arith.constant 7 : i32
    %26 = vector.broadcast %c7_i32 : i32 to vector<16x1xi32>
    %27 = arith.cmpi eq, %18, %26 : vector<16x1xi32>
    %c15_i32 = arith.constant 15 : i32
    %28 = tpu.dynamic_rotate %0 by %c15_i32 dim 0 : vector<16x128xf32>, i32 -> vector<16x128xf32>
    %cst_7 = arith.constant 0.000000e+00 : f32
    %29 = vector.shape_cast %27 : vector<16x1xi1> to vector<16x1xi1>
    %30 = vector.broadcast %29 : vector<16x1xi1> to vector<16x128xi1>
    %31 = vector.broadcast %cst_7 : f32 to vector<16x128xf32>
    %32 = arith.select %30, %31, %28 : vector<16x128xi1>, vector<16x128xf32>
    %c0_8 = arith.constant 0 : index
    %c0_9 = arith.constant 0 : index
    %33 = vector.load %arg2[%c0_8, %c0_9] : memref<384x128xf32, #tpu.memory_space<vmem>>, vector<128x128xf32>
    %cst_10 = arith.constant dense<0.000000e+00> : vector<16x128xf32>
    %34 = tpu.matmul %25, %33, %cst_10 {dimension_numbers = #tpu.dot_dimension_numbers<[1], [0], [0], [1], [0, 0, 1, 1], [], []>} : vector<16x128xf32>, vector<128x128xf32>, vector<16x128xf32> -> vector<16x128xf32>
    %c128 = arith.constant 128 : index
    %c0_11 = arith.constant 0 : index
    %35 = vector.load %arg2[%c128, %c0_11] : memref<384x128xf32, #tpu.memory_space<vmem>>, vector<128x128xf32>
    %cst_12 = arith.constant dense<0.000000e+00> : vector<16x128xf32>
    %36 = tpu.matmul %0, %35, %cst_12 {dimension_numbers = #tpu.dot_dimension_numbers<[1], [0], [0], [1], [0, 0, 1, 1], [], []>} : vector<16x128xf32>, vector<128x128xf32>, vector<16x128xf32> -> vector<16x128xf32>
    %37 = arith.addf %34, %36 : vector<16x128xf32>
    %c256 = arith.constant 256 : index
    %c0_13 = arith.constant 0 : index
    %38 = vector.load %arg2[%c256, %c0_13] : memref<384x128xf32, #tpu.memory_space<vmem>>, vector<128x128xf32>
    %cst_14 = arith.constant dense<0.000000e+00> : vector<16x128xf32>
    %39 = tpu.matmul %1, %38, %cst_14 {dimension_numbers = #tpu.dot_dimension_numbers<[1], [0], [0], [1], [0, 0, 1, 1], [], []>} : vector<16x128xf32>, vector<128x128xf32>, vector<16x128xf32> -> vector<16x128xf32>
    %40 = arith.addf %37, %39 : vector<16x128xf32>
    %c0_15 = arith.constant 0 : index
    %c0_16 = arith.constant 0 : index
    %41 = vector.load %arg3[%c0_15, %c0_16] : memref<1x128xf32, #tpu.memory_space<vmem>>, vector<1x128xf32>
    %42 = vector.broadcast %41 : vector<1x128xf32> to vector<16x128xf32>
    %43 = arith.addf %40, %42 : vector<16x128xf32>
    %cst_17 = arith.constant 0.000000e+00 : f32
    %44 = vector.broadcast %cst_17 : f32 to vector<16x128xf32>
    %45 = arith.maximumf %43, %44 : vector<16x128xf32>
    %c0_18 = arith.constant 0 : index
    %c0_19 = arith.constant 0 : index
    %46 = vector.load %arg2[%c0_18, %c0_19] : memref<384x128xf32, #tpu.memory_space<vmem>>, vector<128x128xf32>
    %cst_20 = arith.constant dense<0.000000e+00> : vector<16x128xf32>
    %47 = tpu.matmul %0, %46, %cst_20 {dimension_numbers = #tpu.dot_dimension_numbers<[1], [0], [0], [1], [0, 0, 1, 1], [], []>} : vector<16x128xf32>, vector<128x128xf32>, vector<16x128xf32> -> vector<16x128xf32>
    %c128_21 = arith.constant 128 : index
    %c0_22 = arith.constant 0 : index
    %48 = vector.load %arg2[%c128_21, %c0_22] : memref<384x128xf32, #tpu.memory_space<vmem>>, vector<128x128xf32>
    %cst_23 = arith.constant dense<0.000000e+00> : vector<16x128xf32>
    %49 = tpu.matmul %1, %48, %cst_23 {dimension_numbers = #tpu.dot_dimension_numbers<[1], [0], [0], [1], [0, 0, 1, 1], [], []>} : vector<16x128xf32>, vector<128x128xf32>, vector<16x128xf32> -> vector<16x128xf32>
    %50 = arith.addf %47, %49 : vector<16x128xf32>
    %c256_24 = arith.constant 256 : index
    %c0_25 = arith.constant 0 : index
    %51 = vector.load %arg2[%c256_24, %c0_25] : memref<384x128xf32, #tpu.memory_space<vmem>>, vector<128x128xf32>
    %cst_26 = arith.constant dense<0.000000e+00> : vector<16x128xf32>
    %52 = tpu.matmul %32, %51, %cst_26 {dimension_numbers = #tpu.dot_dimension_numbers<[1], [0], [0], [1], [0, 0, 1, 1], [], []>} : vector<16x128xf32>, vector<128x128xf32>, vector<16x128xf32> -> vector<16x128xf32>
    %53 = arith.addf %50, %52 : vector<16x128xf32>
    %c0_27 = arith.constant 0 : index
    %c0_28 = arith.constant 0 : index
    %54 = vector.load %arg3[%c0_27, %c0_28] : memref<1x128xf32, #tpu.memory_space<vmem>>, vector<1x128xf32>
    %55 = vector.broadcast %54 : vector<1x128xf32> to vector<16x128xf32>
    %56 = arith.addf %53, %55 : vector<16x128xf32>
    %cst_29 = arith.constant 0.000000e+00 : f32
    %57 = vector.broadcast %cst_29 : f32 to vector<16x128xf32>
    %58 = arith.maximumf %56, %57 : vector<16x128xf32>
    %c0_i32_30 = arith.constant 0 : i32
    %59 = vector.broadcast %c0_i32_30 : i32 to vector<16x1xi32>
    %60 = arith.cmpi eq, %18, %59 : vector<16x1xi32>
    %c1_i32_31 = arith.constant 1 : i32
    %61 = tpu.dynamic_rotate %58 by %c1_i32_31 dim 0 : vector<16x128xf32>, i32 -> vector<16x128xf32>
    %cst_32 = arith.constant 0.000000e+00 : f32
    %62 = vector.shape_cast %60 : vector<16x1xi1> to vector<16x1xi1>
    %63 = vector.broadcast %62 : vector<16x1xi1> to vector<16x128xi1>
    %64 = vector.broadcast %cst_32 : f32 to vector<16x128xf32>
    %65 = arith.select %63, %64, %61 : vector<16x128xi1>, vector<16x128xf32>
    %c0_33 = arith.constant 0 : index
    %c0_34 = arith.constant 0 : index
    %66 = vector.load %arg4[%c0_33, %c0_34] : memref<768x128xf32, #tpu.memory_space<vmem>>, vector<128x128xf32>
    %cst_35 = arith.constant dense<0.000000e+00> : vector<16x128xf32>
    %67 = tpu.matmul %65, %66, %cst_35 {dimension_numbers = #tpu.dot_dimension_numbers<[1], [0], [0], [1], [0, 0, 1, 1], [], []>} : vector<16x128xf32>, vector<128x128xf32>, vector<16x128xf32> -> vector<16x128xf32>
    %c128_36 = arith.constant 128 : index
    %c0_37 = arith.constant 0 : index
    %68 = vector.load %arg4[%c128_36, %c0_37] : memref<768x128xf32, #tpu.memory_space<vmem>>, vector<128x128xf32>
    %cst_38 = arith.constant dense<0.000000e+00> : vector<16x128xf32>
    %69 = tpu.matmul %45, %68, %cst_38 {dimension_numbers = #tpu.dot_dimension_numbers<[1], [0], [0], [1], [0, 0, 1, 1], [], []>} : vector<16x128xf32>, vector<128x128xf32>, vector<16x128xf32> -> vector<16x128xf32>
    %70 = arith.addf %67, %69 : vector<16x128xf32>
    %c256_39 = arith.constant 256 : index
    %c0_40 = arith.constant 0 : index
    %71 = vector.load %arg4[%c256_39, %c0_40] : memref<768x128xf32, #tpu.memory_space<vmem>>, vector<128x128xf32>
    %cst_41 = arith.constant dense<0.000000e+00> : vector<16x128xf32>
    %72 = tpu.matmul %58, %71, %cst_41 {dimension_numbers = #tpu.dot_dimension_numbers<[1], [0], [0], [1], [0, 0, 1, 1], [], []>} : vector<16x128xf32>, vector<128x128xf32>, vector<16x128xf32> -> vector<16x128xf32>
    %73 = arith.addf %70, %72 : vector<16x128xf32>
    %c384 = arith.constant 384 : index
    %c0_42 = arith.constant 0 : index
    %74 = vector.load %arg4[%c384, %c0_42] : memref<768x128xf32, #tpu.memory_space<vmem>>, vector<128x128xf32>
    %cst_43 = arith.constant dense<0.000000e+00> : vector<16x128xf32>
    %75 = tpu.matmul %25, %74, %cst_43 {dimension_numbers = #tpu.dot_dimension_numbers<[1], [0], [0], [1], [0, 0, 1, 1], [], []>} : vector<16x128xf32>, vector<128x128xf32>, vector<16x128xf32> -> vector<16x128xf32>
    %76 = arith.addf %73, %75 : vector<16x128xf32>
    %c512 = arith.constant 512 : index
    %c0_44 = arith.constant 0 : index
    %77 = vector.load %arg4[%c512, %c0_44] : memref<768x128xf32, #tpu.memory_space<vmem>>, vector<128x128xf32>
    %cst_45 = arith.constant dense<0.000000e+00> : vector<16x128xf32>
    %78 = tpu.matmul %0, %77, %cst_45 {dimension_numbers = #tpu.dot_dimension_numbers<[1], [0], [0], [1], [0, 0, 1, 1], [], []>} : vector<16x128xf32>, vector<128x128xf32>, vector<16x128xf32> -> vector<16x128xf32>
    %79 = arith.addf %76, %78 : vector<16x128xf32>
    %c640 = arith.constant 640 : index
    %c0_46 = arith.constant 0 : index
    %80 = vector.load %arg4[%c640, %c0_46] : memref<768x128xf32, #tpu.memory_space<vmem>>, vector<128x128xf32>
    %cst_47 = arith.constant dense<0.000000e+00> : vector<16x128xf32>
    %81 = tpu.matmul %1, %80, %cst_47 {dimension_numbers = #tpu.dot_dimension_numbers<[1], [0], [0], [1], [0, 0, 1, 1], [], []>} : vector<16x128xf32>, vector<128x128xf32>, vector<16x128xf32> -> vector<16x128xf32>
    %82 = arith.addf %79, %81 : vector<16x128xf32>
    %c0_48 = arith.constant 0 : index
    %c0_49 = arith.constant 0 : index
    %83 = vector.load %arg5[%c0_48, %c0_49] : memref<1x128xf32, #tpu.memory_space<vmem>>, vector<1x128xf32>
    %84 = vector.broadcast %83 : vector<1x128xf32> to vector<16x128xf32>
    %85 = arith.addf %82, %84 : vector<16x128xf32>
    %cst_50 = arith.constant 0.000000e+00 : f32
    %86 = vector.broadcast %cst_50 : f32 to vector<16x128xf32>
    %87 = arith.maximumf %85, %86 : vector<16x128xf32>
    %c0_51 = arith.constant 0 : index
    %c0_52 = arith.constant 0 : index
    %88 = vector.load %arg6[%c0_51, %c0_52] : memref<16x128xf32, #tpu.memory_space<vmem>>, vector<16x128xf32>
    tpu.vector_store %arg6[%c0_51, %c0_52], %87 {strides = array<i32>} : memref<16x128xf32, #tpu.memory_space<vmem>>, vector<16x128xf32>,
    return
  }
  func.func @transform_0(%arg0: i32) -> (i32, i32) {
    %c0_i32 = arith.constant 0 : i32
    %c0_i32_0 = arith.constant 0 : i32
    return %arg0, %c0_i32 : i32, i32
  }
  func.func @transform_1(%arg0: i32) -> (i32, i32) {
    %c0_i32 = arith.constant 0 : i32
    %c0_i32_0 = arith.constant 0 : i32
    %c0_i32_1 = arith.constant 0 : i32
    return %c0_i32, %c0_i32_0 : i32, i32
  }
  func.func @transform_2(%arg0: i32) -> (i32, i32) {
    %c0_i32 = arith.constant 0 : i32
    %c0_i32_0 = arith.constant 0 : i32
    %c0_i32_1 = arith.constant 0 : i32
    return %c0_i32, %c0_i32_0 : i32, i32
  }
  func.func @transform_3(%arg0: i32) -> (i32, i32) {
    %c0_i32 = arith.constant 0 : i32
    %c0_i32_0 = arith.constant 0 : i32
    %c0_i32_1 = arith.constant 0 : i32
    return %c0_i32, %c0_i32_0 : i32, i32
  }
  func.func @transform_4(%arg0: i32) -> (i32, i32) {
    %c0_i32 = arith.constant 0 : i32
    %c0_i32_0 = arith.constant 0 : i32
    %c0_i32_1 = arith.constant 0 : i32
    return %c0_i32, %c0_i32_0 : i32, i32
  }
  func.func @transform_5(%arg0: i32) -> (i32, i32) {
    %c0_i32 = arith.constant 0 : i32
    %c0_i32_0 = arith.constant 0 : i32
    return %arg0, %c0_i32 : i32, i32
  }
}

module attributes {stable_mosaic.version = 11 : i64} {
  func.func @_residual_block_kernel(%arg0: i32, %arg1: memref<16x128xf32, #tpu.memory_space<vmem>>, %arg2: memref<384x128xf32, #tpu.memory_space<vmem>>, %arg3: memref<1x128xf32, #tpu.memory_space<vmem>>, %arg4: memref<768x128xf32, #tpu.memory_space<vmem>>, %arg5: memref<1x128xf32, #tpu.memory_space<vmem>>, %arg6: memref<8x128xf32, #tpu.memory_space<vmem>>) attributes {dimension_semantics = [#tpu.dimension_semantics<parallel>], iteration_bounds = array<i64: 2>, scalar_prefetch = 0 : i64, scratch_operands = 0 : i64, tpu.core_type = #tpu.core_type<tc>, window_params = [{transform_indices = @transform_0, window_bounds = array<i64: 16, 128>}, {pipeline_mode = #tpu.pipeline_mode<synchronous>, transform_indices = @transform_1, window_bounds = array<i64: 384, 128>}, {pipeline_mode = #tpu.pipeline_mode<synchronous>, transform_indices = @transform_2, window_bounds = array<i64: 1, 128>}, {pipeline_mode = #tpu.pipeline_mode<synchronous>, transform_indices = @transform_3, window_bounds = array<i64: 768, 128>}, {pipeline_mode = #tpu.pipeline_mode<synchronous>, transform_indices = @transform_4, window_bounds = array<i64: 1, 128>}, {transform_indices = @transform_5, window_bounds = array<i64: 8, 128>}]} {
    %c0 = arith.constant 0 : index
    %c0_0 = arith.constant 0 : index
    %0 = tpu.strided_load %arg1[%c0, %c0_0] {strides = array<i32: 2, 1>} : memref<16x128xf32, #tpu.memory_space<vmem>>, vector<8x128xf32>
    %c1 = arith.constant 1 : index
    %c0_1 = arith.constant 0 : index
    %1 = tpu.strided_load %arg1[%c1, %c0_1] {strides = array<i32: 2, 1>} : memref<16x128xf32, #tpu.memory_space<vmem>>, vector<8x128xf32>
    %2 = tpu.iota {dimensions = array<i32: 0>} : vector<8x1xi32>
    %c4_i32 = arith.constant 4 : i32
    %c0_i32 = arith.constant 0 : i32
    %3 = arith.cmpi eq, %c4_i32, %c0_i32 : i32
    %c1_i32 = arith.constant 1 : i32
    %4 = arith.select %3, %c1_i32, %c4_i32 : i32
    %5 = vector.broadcast %4 : i32 to vector<8x1xi32>
    %6 = arith.remsi %2, %5 : vector<8x1xi32>
    %c0_i32_2 = arith.constant 0 : i32
    %7 = vector.broadcast %c0_i32_2 : i32 to vector<8x1xi32>
    %8 = arith.cmpi ne, %6, %7 : vector<8x1xi32>
    %c0_i32_3 = arith.constant 0 : i32
    %9 = vector.broadcast %c0_i32_3 : i32 to vector<8x1xi32>
    %10 = arith.cmpi slt, %6, %9 : vector<8x1xi32>
    %c0_i32_4 = arith.constant 0 : i32
    %11 = arith.cmpi slt, %4, %c0_i32_4 : i32
    %12 = vector.broadcast %11 : i1 to vector<8x1xi1>
    %13 = vector.broadcast %12 : vector<8x1xi1> to vector<8x1xi1>
    %14 = arith.xori %10, %13 : vector<8x1xi1>
    %15 = arith.andi %14, %8 : vector<8x1xi1>
    %16 = vector.broadcast %4 : i32 to vector<8x1xi32>
    %17 = arith.addi %6, %16 : vector<8x1xi32>
    %18 = arith.select %15, %17, %6 : vector<8x1xi1>, vector<8x1xi32>
    %c0_i32_5 = arith.constant 0 : i32
    %19 = vector.broadcast %c0_i32_5 : i32 to vector<8x1xi32>
    %20 = arith.cmpi eq, %18, %19 : vector<8x1xi32>
    %c1_i32_6 = arith.constant 1 : i32
    %21 = tpu.dynamic_rotate %1 by %c1_i32_6 dim 0 : vector<8x128xf32>, i32 -> vector<8x128xf32>
    %cst = arith.constant 0.000000e+00 : f32
    %22 = vector.shape_cast %20 : vector<8x1xi1> to vector<8x1xi1>
    %23 = vector.broadcast %22 : vector<8x1xi1> to vector<8x128xi1>
    %24 = vector.broadcast %cst : f32 to vector<8x128xf32>
    %25 = arith.select %23, %24, %21 : vector<8x128xi1>, vector<8x128xf32>
    %c3_i32 = arith.constant 3 : i32
    %26 = vector.broadcast %c3_i32 : i32 to vector<8x1xi32>
    %27 = arith.cmpi eq, %18, %26 : vector<8x1xi32>
    %c7_i32 = arith.constant 7 : i32
    %28 = tpu.dynamic_rotate %0 by %c7_i32 dim 0 : vector<8x128xf32>, i32 -> vector<8x128xf32>
    %cst_7 = arith.constant 0.000000e+00 : f32
    %29 = vector.shape_cast %27 : vector<8x1xi1> to vector<8x1xi1>
    %30 = vector.broadcast %29 : vector<8x1xi1> to vector<8x128xi1>
    %31 = vector.broadcast %cst_7 : f32 to vector<8x128xf32>
    %32 = arith.select %30, %31, %28 : vector<8x128xi1>, vector<8x128xf32>
    %c0_8 = arith.constant 0 : index
    %c0_9 = arith.constant 0 : index
    %33 = vector.load %arg2[%c0_8, %c0_9] : memref<384x128xf32, #tpu.memory_space<vmem>>, vector<128x128xf32>
    %cst_10 = arith.constant dense<0.000000e+00> : vector<8x128xf32>
    %34 = tpu.matmul %25, %33, %cst_10 {dimension_numbers = #tpu.dot_dimension_numbers<[1], [0], [0], [1], [0, 0, 1, 1], [], []>} : vector<8x128xf32>, vector<128x128xf32>, vector<8x128xf32> -> vector<8x128xf32>
    %c128 = arith.constant 128 : index
    %c0_11 = arith.constant 0 : index
    %35 = vector.load %arg2[%c128, %c0_11] : memref<384x128xf32, #tpu.memory_space<vmem>>, vector<128x128xf32>
    %cst_12 = arith.constant dense<0.000000e+00> : vector<8x128xf32>
    %36 = tpu.matmul %0, %35, %cst_12 {dimension_numbers = #tpu.dot_dimension_numbers<[1], [0], [0], [1], [0, 0, 1, 1], [], []>} : vector<8x128xf32>, vector<128x128xf32>, vector<8x128xf32> -> vector<8x128xf32>
    %37 = arith.addf %34, %36 : vector<8x128xf32>
    %c256 = arith.constant 256 : index
    %c0_13 = arith.constant 0 : index
    %38 = vector.load %arg2[%c256, %c0_13] : memref<384x128xf32, #tpu.memory_space<vmem>>, vector<128x128xf32>
    %cst_14 = arith.constant dense<0.000000e+00> : vector<8x128xf32>
    %39 = tpu.matmul %1, %38, %cst_14 {dimension_numbers = #tpu.dot_dimension_numbers<[1], [0], [0], [1], [0, 0, 1, 1], [], []>} : vector<8x128xf32>, vector<128x128xf32>, vector<8x128xf32> -> vector<8x128xf32>
    %40 = arith.addf %37, %39 : vector<8x128xf32>
    %c0_15 = arith.constant 0 : index
    %c0_16 = arith.constant 0 : index
    %41 = vector.load %arg3[%c0_15, %c0_16] : memref<1x128xf32, #tpu.memory_space<vmem>>, vector<1x128xf32>
    %42 = vector.broadcast %41 : vector<1x128xf32> to vector<8x128xf32>
    %43 = arith.addf %40, %42 : vector<8x128xf32>
    %cst_17 = arith.constant 0.000000e+00 : f32
    %44 = vector.broadcast %cst_17 : f32 to vector<8x128xf32>
    %45 = arith.maximumf %43, %44 : vector<8x128xf32>
    %c0_18 = arith.constant 0 : index
    %c0_19 = arith.constant 0 : index
    %46 = vector.load %arg2[%c0_18, %c0_19] : memref<384x128xf32, #tpu.memory_space<vmem>>, vector<128x128xf32>
    %cst_20 = arith.constant dense<0.000000e+00> : vector<8x128xf32>
    %47 = tpu.matmul %0, %46, %cst_20 {dimension_numbers = #tpu.dot_dimension_numbers<[1], [0], [0], [1], [0, 0, 1, 1], [], []>} : vector<8x128xf32>, vector<128x128xf32>, vector<8x128xf32> -> vector<8x128xf32>
    %c128_21 = arith.constant 128 : index
    %c0_22 = arith.constant 0 : index
    %48 = vector.load %arg2[%c128_21, %c0_22] : memref<384x128xf32, #tpu.memory_space<vmem>>, vector<128x128xf32>
    %cst_23 = arith.constant dense<0.000000e+00> : vector<8x128xf32>
    %49 = tpu.matmul %1, %48, %cst_23 {dimension_numbers = #tpu.dot_dimension_numbers<[1], [0], [0], [1], [0, 0, 1, 1], [], []>} : vector<8x128xf32>, vector<128x128xf32>, vector<8x128xf32> -> vector<8x128xf32>
    %50 = arith.addf %47, %49 : vector<8x128xf32>
    %c256_24 = arith.constant 256 : index
    %c0_25 = arith.constant 0 : index
    %51 = vector.load %arg2[%c256_24, %c0_25] : memref<384x128xf32, #tpu.memory_space<vmem>>, vector<128x128xf32>
    %cst_26 = arith.constant dense<0.000000e+00> : vector<8x128xf32>
    %52 = tpu.matmul %32, %51, %cst_26 {dimension_numbers = #tpu.dot_dimension_numbers<[1], [0], [0], [1], [0, 0, 1, 1], [], []>} : vector<8x128xf32>, vector<128x128xf32>, vector<8x128xf32> -> vector<8x128xf32>
    %53 = arith.addf %50, %52 : vector<8x128xf32>
    %c0_27 = arith.constant 0 : index
    %c0_28 = arith.constant 0 : index
    %54 = vector.load %arg3[%c0_27, %c0_28] : memref<1x128xf32, #tpu.memory_space<vmem>>, vector<1x128xf32>
    %55 = vector.broadcast %54 : vector<1x128xf32> to vector<8x128xf32>
    %56 = arith.addf %53, %55 : vector<8x128xf32>
    %cst_29 = arith.constant 0.000000e+00 : f32
    %57 = vector.broadcast %cst_29 : f32 to vector<8x128xf32>
    %58 = arith.maximumf %56, %57 : vector<8x128xf32>
    %c0_i32_30 = arith.constant 0 : i32
    %59 = vector.broadcast %c0_i32_30 : i32 to vector<8x1xi32>
    %60 = arith.cmpi eq, %18, %59 : vector<8x1xi32>
    %c1_i32_31 = arith.constant 1 : i32
    %61 = tpu.dynamic_rotate %58 by %c1_i32_31 dim 0 : vector<8x128xf32>, i32 -> vector<8x128xf32>
    %cst_32 = arith.constant 0.000000e+00 : f32
    %62 = vector.shape_cast %60 : vector<8x1xi1> to vector<8x1xi1>
    %63 = vector.broadcast %62 : vector<8x1xi1> to vector<8x128xi1>
    %64 = vector.broadcast %cst_32 : f32 to vector<8x128xf32>
    %65 = arith.select %63, %64, %61 : vector<8x128xi1>, vector<8x128xf32>
    %c0_33 = arith.constant 0 : index
    %c0_34 = arith.constant 0 : index
    %66 = vector.load %arg4[%c0_33, %c0_34] : memref<768x128xf32, #tpu.memory_space<vmem>>, vector<128x128xf32>
    %cst_35 = arith.constant dense<0.000000e+00> : vector<8x128xf32>
    %67 = tpu.matmul %65, %66, %cst_35 {dimension_numbers = #tpu.dot_dimension_numbers<[1], [0], [0], [1], [0, 0, 1, 1], [], []>} : vector<8x128xf32>, vector<128x128xf32>, vector<8x128xf32> -> vector<8x128xf32>
    %c128_36 = arith.constant 128 : index
    %c0_37 = arith.constant 0 : index
    %68 = vector.load %arg4[%c128_36, %c0_37] : memref<768x128xf32, #tpu.memory_space<vmem>>, vector<128x128xf32>
    %cst_38 = arith.constant dense<0.000000e+00> : vector<8x128xf32>
    %69 = tpu.matmul %45, %68, %cst_38 {dimension_numbers = #tpu.dot_dimension_numbers<[1], [0], [0], [1], [0, 0, 1, 1], [], []>} : vector<8x128xf32>, vector<128x128xf32>, vector<8x128xf32> -> vector<8x128xf32>
    %70 = arith.addf %67, %69 : vector<8x128xf32>
    %c256_39 = arith.constant 256 : index
    %c0_40 = arith.constant 0 : index
    %71 = vector.load %arg4[%c256_39, %c0_40] : memref<768x128xf32, #tpu.memory_space<vmem>>, vector<128x128xf32>
    %cst_41 = arith.constant dense<0.000000e+00> : vector<8x128xf32>
    %72 = tpu.matmul %58, %71, %cst_41 {dimension_numbers = #tpu.dot_dimension_numbers<[1], [0], [0], [1], [0, 0, 1, 1], [], []>} : vector<8x128xf32>, vector<128x128xf32>, vector<8x128xf32> -> vector<8x128xf32>
    %73 = arith.addf %70, %72 : vector<8x128xf32>
    %c384 = arith.constant 384 : index
    %c0_42 = arith.constant 0 : index
    %74 = vector.load %arg4[%c384, %c0_42] : memref<768x128xf32, #tpu.memory_space<vmem>>, vector<128x128xf32>
    %cst_43 = arith.constant dense<0.000000e+00> : vector<8x128xf32>
    %75 = tpu.matmul %25, %74, %cst_43 {dimension_numbers = #tpu.dot_dimension_numbers<[1], [0], [0], [1], [0, 0, 1, 1], [], []>} : vector<8x128xf32>, vector<128x128xf32>, vector<8x128xf32> -> vector<8x128xf32>
    %76 = arith.addf %73, %75 : vector<8x128xf32>
    %c512 = arith.constant 512 : index
    %c0_44 = arith.constant 0 : index
    %77 = vector.load %arg4[%c512, %c0_44] : memref<768x128xf32, #tpu.memory_space<vmem>>, vector<128x128xf32>
    %cst_45 = arith.constant dense<0.000000e+00> : vector<8x128xf32>
    %78 = tpu.matmul %0, %77, %cst_45 {dimension_numbers = #tpu.dot_dimension_numbers<[1], [0], [0], [1], [0, 0, 1, 1], [], []>} : vector<8x128xf32>, vector<128x128xf32>, vector<8x128xf32> -> vector<8x128xf32>
    %79 = arith.addf %76, %78 : vector<8x128xf32>
    %c640 = arith.constant 640 : index
    %c0_46 = arith.constant 0 : index
    %80 = vector.load %arg4[%c640, %c0_46] : memref<768x128xf32, #tpu.memory_space<vmem>>, vector<128x128xf32>
    %cst_47 = arith.constant dense<0.000000e+00> : vector<8x128xf32>
    %81 = tpu.matmul %1, %80, %cst_47 {dimension_numbers = #tpu.dot_dimension_numbers<[1], [0], [0], [1], [0, 0, 1, 1], [], []>} : vector<8x128xf32>, vector<128x128xf32>, vector<8x128xf32> -> vector<8x128xf32>
    %82 = arith.addf %79, %81 : vector<8x128xf32>
    %c0_48 = arith.constant 0 : index
    %c0_49 = arith.constant 0 : index
    %83 = vector.load %arg5[%c0_48, %c0_49] : memref<1x128xf32, #tpu.memory_space<vmem>>, vector<1x128xf32>
    %84 = vector.broadcast %83 : vector<1x128xf32> to vector<8x128xf32>
    %85 = arith.addf %82, %84 : vector<8x128xf32>
    %cst_50 = arith.constant 0.000000e+00 : f32
    %86 = vector.broadcast %cst_50 : f32 to vector<8x128xf32>
    %87 = arith.maximumf %85, %86 : vector<8x128xf32>
    %c0_51 = arith.constant 0 : index
    %c0_52 = arith.constant 0 : index
    %88 = vector.load %arg6[%c0_51, %c0_52] : memref<8x128xf32, #tpu.memory_space<vmem>>, vector<8x128xf32>
    tpu.vector_store %arg6[%c0_51, %c0_52], %87 {strides = array<i32>} : memref<8x128xf32, #tpu.memory_space<vmem>>, vector<8x128xf32>,
    return
  }
  func.func @transform_0(%arg0: i32) -> (i32, i32) {
    %c0_i32 = arith.constant 0 : i32
    %c0_i32_0 = arith.constant 0 : i32
    return %arg0, %c0_i32 : i32, i32
  }
  func.func @transform_1(%arg0: i32) -> (i32, i32) {
    %c0_i32 = arith.constant 0 : i32
    %c0_i32_0 = arith.constant 0 : i32
    %c0_i32_1 = arith.constant 0 : i32
    return %c0_i32, %c0_i32_0 : i32, i32
  }
  func.func @transform_2(%arg0: i32) -> (i32, i32) {
    %c0_i32 = arith.constant 0 : i32
    %c0_i32_0 = arith.constant 0 : i32
    %c0_i32_1 = arith.constant 0 : i32
    return %c0_i32, %c0_i32_0 : i32, i32
  }
  func.func @transform_3(%arg0: i32) -> (i32, i32) {
    %c0_i32 = arith.constant 0 : i32
    %c0_i32_0 = arith.constant 0 : i32
    %c0_i32_1 = arith.constant 0 : i32
    return %c0_i32, %c0_i32_0 : i32, i32
  }
  func.func @transform_4(%arg0: i32) -> (i32, i32) {
    %c0_i32 = arith.constant 0 : i32
    %c0_i32_0 = arith.constant 0 : i32
    %c0_i32_1 = arith.constant 0 : i32
    return %c0_i32, %c0_i32_0 : i32, i32
  }
  func.func @transform_5(%arg0: i32) -> (i32, i32) {
    %c0_i32 = arith.constant 0 : i32
    %c0_i32_0 = arith.constant 0 : i32
    return %arg0, %c0_i32 : i32, i32
  }
}

</mosaic_0001>

<llo_original>
// kernel: residual_cnn_pallas.2
$region0: #{residual_cnn_pallas.2}
  #allocation0 [shape = 'u32[]', space=smem, size = 0x4, offset = 0x4, fixed_abs, tag = 'smem constant byte address 0x4 - core index']
  #allocation1 [shape = 'u32[144,128]{1,0:T(1,128)}', space=vmem, size = 0x12000, scoped, tag = 'internal scratch']
  %s0 = inlined_call_operand.vmem [shape: f32[64,128], index: 0, kind: input, shape index: {}]
  %s1 = inlined_call_operand.hbm [shape: f32[384,128], index: 1, kind: input, shape index: {}]
  %s2 = inlined_call_operand.hbm [shape: f32[1,128], index: 2, kind: input, shape index: {}]
  %s3 = inlined_call_operand.hbm [shape: f32[768,128], index: 3, kind: input, shape index: {}]
  %s4 = inlined_call_operand.hbm [shape: f32[1,128], index: 4, kind: input, shape index: {}]
  %s5 = inlined_call_operand.vmem [shape: f32[32,128], index: 5, kind: output, shape index: {}]
  %s6 = sld [smem:[#allocation0]]
  $region69: #{residual_cnn_pallas.2} parent=0
    _
  %s8 = ssub.s32 1, %s6
  %s9 = scalar_select 0, %s8, %s6
  $region1: #{residual_cnn_pallas.2} parent=0
    #allocation2 [shape = 'u8[196608]{0}', space=vmem, size = 0x30000, scoped, tag = 'input window, operand 1, single buffered']
    #allocation3 [shape = 's32[2]{0}', space=sflag, size = 0x8, scoped, tag = 'scoped memory for residual_cnn_pallas.2']
    #allocation4 [shape = 'u8[512]{0}', space=vmem, size = 0x400, scoped, tag = 'input window, operand 2, single buffered']
    #allocation5 [shape = 's32[1]{0}', space=sflag, size = 0x4, scoped, tag = 'scoped memory for residual_cnn_pallas.2']
    #allocation6 [shape = 'u8[393216]{0}', space=vmem, size = 0x60000, scoped, tag = 'input window, operand 3, single buffered']
    #allocation7 [shape = 'u8[512]{0}', space=vmem, size = 0x400, scoped, tag = 'input window, operand 4, single buffered']
    #allocation8 [shape = 's32[1]{0}', space=sflag, size = 0x4, scoped, tag = 'scoped memory for residual_cnn_pallas.2']
    %10 = vsyncpa [#allocation3], 0
    %11 = vsyncpa [#allocation5], 0
    %12 = vsyncpa [#allocation8], 0
    loop: start=0, step=1, limit=4
    $region2: #{residual_cnn_pallas.2} parent=1 // loop_pre_header
      _
    $region3: #{residual_cnn_pallas.2} parent=1 // loop_header
      %s14 = sphi 0, %s18
      %p15 = scmp.ge.s32.totalorder %s14, 4
      %s24 = sphi 0, %s26
      %s27 = sphi 0, %s24
      %s28 = sphi 0, %s27
      %s44 = sphi 0, %s28
      %s48 = sphi 0, %s48
      %s50 = sphi 0, %s48
      %s51 = sphi 0, %s50
      %s65 = sphi 0, %s51
      %s69 = sphi 0, %s69
      %s71 = sphi 0, %s69
      %s72 = sphi 0, %s71
      %s86 = sphi 0, %s72
      %s90 = sphi 0, %s90
      %s92 = sphi 0, %s90
      %s93 = sphi 0, %s92
      %s107 = sphi 0, %s93
      %s111 = sphi 0, %s111
      %s113 = sphi 0, %s111
      %s114 = sphi 0, %s113
      %s128 = sphi 0, %s114
      %s134 = sphi 0, %s136
      %s137 = sphi 0, %s134
      %s138 = sphi 0, %s137
      %s154 = sphi 0, %s138
    $region4: #{residual_cnn_pallas.2} parent=1 // loop_header_branch
      %17 = sbr.rel (%p15) target = $region8
    $region5: #{residual_cnn_pallas.2} parent=1 // loop_body
      %s19 = ssub.s32 %s14, 1
      %s20 = ssub.s32 %s14, 2
      %s21 = sadd.s32 %s14, 1
      %s22 = ssub.s32 %s14, %s21
      %p23 = scmp.eq.s32.totalorder %s22, 0
      %s25 = sadd.s32 %s24, 1
      %s26 = scalar_select %p23, %s24, %s25
      %p29 = pneg %p23
      %p30 = scmp.eq.s32.totalorder %s14, 1
      %p31 = por %p29, %p30
      %p32 = scmp.ne.s32.totalorder %s24, %s27
      %p33 = scmp.eq.s32.totalorder %s14, 0
      %p34 = por %p32, %p33
      %p35 = scmp.ne.s32.totalorder %s24, %s27
      %p36 = scmp.eq.s32.totalorder %s19, 1
      %p37 = por %p35, %p36
      %p38 = scmp.ne.s32.totalorder %s27, %s28
      %p39 = scmp.eq.s32.totalorder %s19, 0
      %p40 = por %p38, %p39
      %p41 = scmp.ne.s32.totalorder %s27, %s28
      %p42 = scmp.eq.s32.totalorder %s20, 1
      %p43 = por %p41, %p42
      %p45 = scmp.ne.s32.totalorder %s28, %s44
      %p46 = scmp.eq.s32.totalorder %s20, 0
      %p47 = por %p45, %p46
      %s49 = sadd.s32 %s48, 1
      %p52 = scmp.eq.s32.totalorder %s14, 1
      %p53 = scmp.ne.s32.totalorder %s48, %s50
      %p54 = scmp.eq.s32.totalorder %s14, 0
      %p55 = por %p53, %p54
      %p56 = scmp.ne.s32.totalorder %s48, %s50
      %p57 = scmp.eq.s32.totalorder %s19, 1
      %p58 = por %p56, %p57
      %p59 = scmp.ne.s32.totalorder %s50, %s51
      %p60 = scmp.eq.s32.totalorder %s19, 0
      %p61 = por %p59, %p60
      %p62 = scmp.ne.s32.totalorder %s50, %s51
      %p63 = scmp.eq.s32.totalorder %s20, 1
      %p64 = por %p62, %p63
      %p66 = scmp.ne.s32.totalorder %s51, %s65
      %p67 = scmp.eq.s32.totalorder %s20, 0
      %p68 = por %p66, %p67
      %s70 = sadd.s32 %s69, 1
      %p73 = scmp.eq.s32.totalorder %s14, 1
      %p74 = scmp.ne.s32.totalorder %s69, %s71
      %p75 = scmp.eq.s32.totalorder %s14, 0
      %p76 = por %p74, %p75
      %p77 = scmp.ne.s32.totalorder %s69, %s71
      %p78 = scmp.eq.s32.totalorder %s19, 1
      %p79 = por %p77, %p78
      %p80 = scmp.ne.s32.totalorder %s71, %s72
      %p81 = scmp.eq.s32.totalorder %s19, 0
      %p82 = por %p80, %p81
      %p83 = scmp.ne.s32.totalorder %s71, %s72
      %p84 = scmp.eq.s32.totalorder %s20, 1
      %p85 = por %p83, %p84
      %p87 = scmp.ne.s32.totalorder %s72, %s86
      %p88 = scmp.eq.s32.totalorder %s20, 0
      %p89 = por %p87, %p88
      %s91 = sadd.s32 %s90, 1
      %p94 = scmp.eq.s32.totalorder %s14, 1
      %p95 = scmp.ne.s32.totalorder %s90, %s92
      %p96 = scmp.eq.s32.totalorder %s14, 0
      %p97 = por %p95, %p96
      %p98 = scmp.ne.s32.totalorder %s90, %s92
      %p99 = scmp.eq.s32.totalorder %s19, 1
      %p100 = por %p98, %p99
      %p101 = scmp.ne.s32.totalorder %s92, %s93
      %p102 = scmp.eq.s32.totalorder %s19, 0
      %p103 = por %p101, %p102
      %p104 = scmp.ne.s32.totalorder %s92, %s93
      %p105 = scmp.eq.s32.totalorder %s20, 1
      %p106 = por %p104, %p105
      %p108 = scmp.ne.s32.totalorder %s93, %s107
      %p109 = scmp.eq.s32.totalorder %s20, 0
      %p110 = por %p108, %p109
      %s112 = sadd.s32 %s111, 1
      %p115 = scmp.eq.s32.totalorder %s14, 1
      %p116 = scmp.ne.s32.totalorder %s111, %s113
      %p117 = scmp.eq.s32.totalorder %s14, 0
      %p118 = por %p116, %p117
      %p119 = scmp.ne.s32.totalorder %s111, %s113
      %p120 = scmp.eq.s32.totalorder %s19, 1
      %p121 = por %p119, %p120
      %p122 = scmp.ne.s32.totalorder %s113, %s114
      %p123 = scmp.eq.s32.totalorder %s19, 0
      %p124 = por %p122, %p123
      %p125 = scmp.ne.s32.totalorder %s113, %s114
      %p126 = scmp.eq.s32.totalorder %s20, 1
      %p127 = por %p125, %p126
      %p129 = scmp.ne.s32.totalorder %s114, %s128
      %p130 = scmp.eq.s32.totalorder %s20, 0
      %p131 = por %p129, %p130
      %s132 = ssub.s32 %s14, %s21
      %p133 = scmp.eq.s32.totalorder %s132, 0
      %s135 = sadd.s32 %s134, 1
      %s136 = scalar_select %p133, %s134, %s135
      %p139 = pneg %p133
      %p140 = scmp.eq.s32.totalorder %s14, 1
      %p141 = por %p139, %p140
      %p142 = scmp.ne.s32.totalorder %s134, %s137
      %p143 = scmp.eq.s32.totalorder %s14, 0
      %p144 = por %p142, %p143
      %p145 = scmp.ne.s32.totalorder %s134, %s137
      %p146 = scmp.eq.s32.totalorder %s19, 1
      %p147 = por %p145, %p146
      %p148 = scmp.ne.s32.totalorder %s137, %s138
      %p149 = scmp.eq.s32.totalorder %s19, 0
      %p150 = por %p148, %p149
      %p151 = scmp.ne.s32.totalorder %s137, %s138
      %p152 = scmp.eq.s32.totalorder %s20, 1
      %p153 = por %p151, %p152
      %p155 = scmp.ne.s32.totalorder %s138, %s154
      %p156 = scmp.eq.s32.totalorder %s20, 0
      %p157 = por %p155, %p156
      %p158 = scmp.le.s32.totalorder 1, %s14
      %p159 = scmp.lt.s32.totalorder %s14, 3
      %p160 = pnand %p158, %p159
      %p161 = pneg %p160
      // Predicated region
      $region9: #{residual_cnn_pallas.2} parent=5 // pred_check
        _
      $region10: #{residual_cnn_pallas.2} parent=5 // pred_check_branch
        %163 = sbr.rel (%p160) target = $region12
      $region11: #{residual_cnn_pallas.2} parent=5 // pred_region
        %s164 = ssub.s32 %s14, 1
        // Predicated region
        $region13: #{residual_cnn_pallas.2} parent=11 // pred_check
          %p165 = pneg %p61
        $region14: #{residual_cnn_pallas.2} parent=11 // pred_check_branch
          %167 = sbr.rel (%p165) target = $region16
        $region15: #{residual_cnn_pallas.2} parent=11 // pred_region
          %s169 = ssub.s32 6144, 6144
          %170 = vsyncadd [#allocation3], %s169
          %s171 = sshll.u32 [#allocation2], 4
          %s172 = int_to_ptr.vmem [resolvable:$true] %s171
          %177 = dma.hbm_to_vmem [thread:$0]  %s1, 6144, %s172, [#allocation3], 128, 128, 8
        $region16: #{residual_cnn_pallas.2} parent=11 // pred_fallthru
          _
        // Predicated region
        $region17: #{residual_cnn_pallas.2} parent=11 // pred_check
          %p178 = pneg %p82
        $region18: #{residual_cnn_pallas.2} parent=11 // pred_check_branch
          %180 = sbr.rel (%p178) target = $region20
        $region19: #{residual_cnn_pallas.2} parent=11 // pred_region
          %s182 = ssub.s32 16, 16
          %183 = vsyncadd [#allocation5], %s182
          %s185 = sshll.u32 [#allocation4], 4
          %s186 = int_to_ptr.vmem [resolvable:$true] %s185
          %188 = dma.hbm_to_vmem [thread:$0]  %s2, 16, %s186, [#allocation5]
        $region20: #{residual_cnn_pallas.2} parent=11 // pred_fallthru
          _
        // Predicated region
        $region21: #{residual_cnn_pallas.2} parent=11 // pred_check
          %p189 = pneg %p103
        $region22: #{residual_cnn_pallas.2} parent=11 // pred_check_branch
          %191 = sbr.rel (%p189) target = $region24
        $region23: #{residual_cnn_pallas.2} parent=11 // pred_region
          %s193 = ssub.s32 12288, 12288
          %194 = vsyncadd [#allocation5], %s193
          %s195 = sshll.u32 [#allocation6], 4
          %s196 = int_to_ptr.vmem [resolvable:$true] %s195
          %201 = dma.hbm_to_vmem [thread:$0]  %s3, 12288, %s196, [#allocation5], 128, 128, 8
        $region24: #{residual_cnn_pallas.2} parent=11 // pred_fallthru
          _
        // Predicated region
        $region25: #{residual_cnn_pallas.2} parent=11 // pred_check
          %p202 = pneg %p124
        $region26: #{residual_cnn_pallas.2} parent=11 // pred_check_branch
          %204 = sbr.rel (%p202) target = $region28
        $region27: #{residual_cnn_pallas.2} parent=11 // pred_region
          %s206 = ssub.s32 16, 16
          %207 = vsyncadd [#allocation8], %s206
          %s209 = sshll.u32 [#allocation7], 4
          %s210 = int_to_ptr.vmem [resolvable:$true] %s209
          %212 = dma.hbm_to_vmem [thread:$0]  %s4, 16, %s210, [#allocation8]
        $region28: #{residual_cnn_pallas.2} parent=11 // pred_fallthru
          _
      $region12: #{residual_cnn_pallas.2} parent=5 // pred_fallthru
        _
      %p213 = scmp.lt.s32.totalorder %s14, 2
      // Predicated region
      $region29: #{residual_cnn_pallas.2} parent=5 // pred_check
        %p214 = pneg %p213
      $region30: #{residual_cnn_pallas.2} parent=5 // pred_check_branch
        %216 = sbr.rel (%p214) target = $region32
      $region31: #{residual_cnn_pallas.2} parent=5 // pred_region
        // Predicated region
        $region33: #{residual_cnn_pallas.2} parent=31 // pred_check
          %p217 = pneg %p34
        $region34: #{residual_cnn_pallas.2} parent=31 // pred_check_branch
          %219 = sbr.rel (%p217) target = $region36
        $region35: #{residual_cnn_pallas.2} parent=31 // pred_region
          %s220 = smul.u32 4, %s14
          %p221 = scmp.lt.s32.totalorder %s220, 7
          %s222 = scalar_select %p221, %s220, 7
          %s223 = smul.addr %s222, 8
          %s224 = scalar_lea.vmem %s0, %s223
          %s225 = smul.u32 4, %s14
        $region36: #{residual_cnn_pallas.2} parent=31 // pred_fallthru
          _
      $region32: #{residual_cnn_pallas.2} parent=5 // pred_fallthru
        _
      %p226 = scmp.le.s32.totalorder 1, %s14
      %p227 = scmp.lt.s32.totalorder %s14, 3
      %p228 = pnand %p226, %p227
      %p229 = pneg %p228
      // Predicated region
      $region37: #{residual_cnn_pallas.2} parent=5 // pred_check
        _
      $region38: #{residual_cnn_pallas.2} parent=5 // pred_check_branch
        %231 = sbr.rel (%p228) target = $region40
      $region39: #{residual_cnn_pallas.2} parent=5 // pred_region
        %s232 = ssub.s32 %s14, 1
        // Predicated region
        $region41: #{residual_cnn_pallas.2} parent=39 // pred_check
          %p233 = pneg %p61
        $region42: #{residual_cnn_pallas.2} parent=39 // pred_check_branch
          %235 = sbr.rel (%p233) target = $region44
        $region43: #{residual_cnn_pallas.2} parent=39 // pred_region
          %236 = dma.done [#allocation3], 6144
        $region44: #{residual_cnn_pallas.2} parent=39 // pred_fallthru
          _
        // Predicated region
        $region45: #{residual_cnn_pallas.2} parent=39 // pred_check
          %p237 = pneg %p82
        $region46: #{residual_cnn_pallas.2} parent=39 // pred_check_branch
          %239 = sbr.rel (%p237) target = $region48
        $region47: #{residual_cnn_pallas.2} parent=39 // pred_region
          %240 = dma.done [#allocation5], 16
        $region48: #{residual_cnn_pallas.2} parent=39 // pred_fallthru
          _
        // Predicated region
        $region49: #{residual_cnn_pallas.2} parent=39 // pred_check
          %p241 = pneg %p103
        $region50: #{residual_cnn_pallas.2} parent=39 // pred_check_branch
          %243 = sbr.rel (%p241) target = $region52
        $region51: #{residual_cnn_pallas.2} parent=39 // pred_region
          %244 = dma.done [#allocation5], 12288
        $region52: #{residual_cnn_pallas.2} parent=39 // pred_fallthru
          _
        // Predicated region
        $region53: #{residual_cnn_pallas.2} parent=39 // pred_check
          %p245 = pneg %p124
        $region54: #{residual_cnn_pallas.2} parent=39 // pred_check_branch
          %247 = sbr.rel (%p245) target = $region56
        $region55: #{residual_cnn_pallas.2} parent=39 // pred_region
          %248 = dma.done [#allocation8], 16
        $region56: #{residual_cnn_pallas.2} parent=39 // pred_fallthru
          _
        %s249 = smul.u32 4, %s19
        %p250 = scmp.lt.s32.totalorder %s249, 7
        %s251 = scalar_select %p250, %s249, 7
        %s252 = smul.addr %s251, 8
        %s253 = scalar_lea.vmem %s0, %s252
        %p254 = pneg %p40
        %p255 = pneg %p37
        %p256 = pneg %p61
        %p257 = pneg %p58
        %p258 = pneg %p82
        %p259 = pneg %p79
        %p260 = pneg %p103
        %p261 = pneg %p100
        %p262 = pneg %p124
        %p263 = pneg %p121
        %p264 = pneg %p150
        %p265 = pneg %p147
        %s266 = smul.u32 2, %s19
        %p267 = scmp.lt.s32.totalorder %s266, 3
        %s268 = scalar_select %p267, %s266, 3
        %s269 = smul.addr %s268, 8
        %s270 = scalar_lea.vmem %s5, %s269
        %s271 = smul.u32 4, %s19
        %p272 = scmp.lt.s32.totalorder %s271, 7
        %s273 = scalar_select %p272, %s271, 7
        %s274 = smul.addr %s273, 8
        %s275 = scalar_lea.vmem %s0, %s274
        %s276 = smul.u32 4, %s19
        %s277 = smul.u32 2, %s19
        %p278 = scmp.lt.s32.totalorder %s277, 3
        %s279 = scalar_select %p278, %s277, 3
        %s280 = smul.addr %s279, 8
        %s281 = scalar_lea.vmem %s5, %s280
        %s282 = smul.u32 2, %s19
        %v283 = vld [vmem:[%s275] ss:$2 sm:$0xff]
        %s284 = scalar_lea.vmem %s275, 16
        %v285 = vld [vmem:[%s284] ss:$2 sm:$0xff]
        %s286 = scalar_lea.vmem %s275, 1
        %v287 = vld [vmem:[%s286] ss:$2 sm:$0xff]
        %s288 = scalar_lea.vmem %s275, 17
        %v289 = vld [vmem:[%s288] ss:$2 sm:$0xff]
        %v290 = vlaneseq
        %v291 = vshrl.u32 %v290, 7
        %v292 = vadd.s32 %v291, 8
        %vm293 = vcmp.lt.s32.totalorder %v291, 0
        %v294 = vsub.s32 0, %v291
        %v295 = vsel %vm293, %v294, %v291
        %v296 = vshrl.u32 %v295, 3
        %v297 = vand.u32 %v295, 7
        %v298 = vsub.s32 0, %v297
        %v299 = vsel %vm293, %v298, %v297
        %vm300 = vcmp.lt.s32.totalorder %v292, 0
        %v301 = vsub.s32 0, %v292
        %v302 = vsel %vm300, %v301, %v292
        %v303 = vshrl.u32 %v302, 3
        %v304 = vand.u32 %v302, 7
        %v305 = vsub.s32 0, %v304
        %v306 = vsel %vm300, %v305, %v304
        %vm307 = vcmp.ne.s32.totalorder %v299, 0
        %vm308 = vcmp.ne.s32.totalorder %v306, 0
        %vm309 = vcmp.lt.s32.totalorder %v299, 0
        %vm310 = vcmp.lt.s32.totalorder %v306, 0
        %vm311 = vmand %vm309, %vm307
        %vm312 = vmand %vm310, %vm308
        %v313 = vadd.s32 %v299, 8
        %v314 = vadd.s32 %v306, 8
        %v315 = vsel %vm311, %v313, %v299
        %v316 = vsel %vm312, %v314, %v306
        %vm317 = vcmp.eq.s32.totalorder %v315, 0
        %vm318 = vcmp.eq.s32.totalorder %v316, 0
        %v319 = vrot.slane %v287, 7
        %v320 = vrot.slane %v289, 7
        %vm321 = vcmp.lt.s32.totalorder %v291, 1
        %v322 = vsel %vm321, %v319, %v320
        %v323 = vsel %vm321, %v320, %v319
        %v324 = vsel %vm317, 1, 0
        %v325 = vsel %vm318, 1, 0
        %vm326 = vcmp.eq.s32.totalorder %v324, 1
        %vm327 = vcmp.eq.s32.totalorder %v325, 1
        %v328 = vsel %vm326, 0.0, %v323
        %v329 = vsel %vm327, 0.0, %v322
        %vm330 = vcmp.eq.s32.totalorder %v315, 7
        %vm331 = vcmp.eq.s32.totalorder %v316, 7
        %v332 = vrot.slane %v283, 1
        %v333 = vrot.slane %v285, 1
        %vm334 = vcmp.lt.s32.totalorder %v291, 7
        %v335 = vsel %vm334, %v332, %v333
        %v336 = vsel %vm334, %v333, %v332
        %v337 = vsel %vm330, 1, 0
        %v338 = vsel %vm331, 1, 0
        %vm339 = vcmp.eq.s32.totalorder %v337, 1
        %vm340 = vcmp.eq.s32.totalorder %v338, 1
        %v341 = vsel %vm339, 0.0, %v335
        %v342 = vsel %vm340, 0.0, %v336
        %v343 = vld [vmem:[#allocation2] sm:$0xff]
        %v344 = vld [vmem:[#allocation2 + $0x8] sm:$0xff]
        %v345 = vld [vmem:[#allocation2 + $0x10] sm:$0xff]
        %v346 = vld [vmem:[#allocation2 + $0x18] sm:$0xff]
        %v347 = vld [vmem:[#allocation2 + $0x20] sm:$0xff]
        %v348 = vld [vmem:[#allocation2 + $0x28] sm:$0xff]
        %v349 = vld [vmem:[#allocation2 + $0x30] sm:$0xff]
        %v350 = vld [vmem:[#allocation2 + $0x38] sm:$0xff]
        %v351 = vld [vmem:[#allocation2 + $0x40] sm:$0xff]
        %v352 = vld [vmem:[#allocation2 + $0x48] sm:$0xff]
        %v353 = vld [vmem:[#allocation2 + $0x50] sm:$0xff]
        %v354 = vld [vmem:[#allocation2 + $0x58] sm:$0xff]
        %v355 = vld [vmem:[#allocation2 + $0x60] sm:$0xff]
        %v356 = vld [vmem:[#allocation2 + $0x68] sm:$0xff]
        %v357 = vld [vmem:[#allocation2 + $0x70] sm:$0xff]
        %v358 = vld [vmem:[#allocation2 + $0x78] sm:$0xff]
        %v359 = vld [vmem:[#allocation2 + $0x80] sm:$0xff]
        %v360 = vld [vmem:[#allocation2 + $0x88] sm:$0xff]
        %v361 = vld [vmem:[#allocation2 + $0x90] sm:$0xff]
        %v362 = vld [vmem:[#allocation2 + $0x98] sm:$0xff]
        %v363 = vld [vmem:[#allocation2 + $0xa0] sm:$0xff]
        %v364 = vld [vmem:[#allocation2 + $0xa8] sm:$0xff]
        %v365 = vld [vmem:[#allocation2 + $0xb0] sm:$0xff]
        %v366 = vld [vmem:[#allocation2 + $0xb8] sm:$0xff]
        %v367 = vld [vmem:[#allocation2 + $0xc0] sm:$0xff]
        %v368 = vld [vmem:[#allocation2 + $0xc8] sm:$0xff]
        %v369 = vld [vmem:[#allocation2 + $0xd0] sm:$0xff]
        %v370 = vld [vmem:[#allocation2 + $0xd8] sm:$0xff]
        %v371 = vld [vmem:[#allocation2 + $0xe0] sm:$0xff]
        %v372 = vld [vmem:[#allocation2 + $0xe8] sm:$0xff]
        %v373 = vld [vmem:[#allocation2 + $0xf0] sm:$0xff]
        %v374 = vld [vmem:[#allocation2 + $0xf8] sm:$0xff]
        %375 = vmatprep.subr.mxu0 0.0
        %376 = vmatpush1.msra.mxu0 %v359
        %377 = vmatprep.subr.mxu0 0.0
        %378 = vmatpush1.msra.mxu0 %v360
        %379 = vmatprep.subr.mxu0 0.0
        %380 = vmatpush1.msra.mxu0 %v361
        %381 = vmatprep.subr.mxu0 0.0
        %382 = vmatpush1.msra.mxu0 %v362
        %383 = vmatprep.subr.mxu0 0.0
        %384 = vmatpush1.msra.mxu0 %v363
        %385 = vmatprep.subr.mxu0 0.0
        %386 = vmatpush1.msra.mxu0 %v364
        %387 = vmatprep.subr.mxu0 0.0
        %388 = vmatpush1.msra.mxu0 %v365
        %389 = vmatprep.subr.mxu0 0.0
        %390 = vmatpush1.msra.mxu0 %v366
        %391 = vmatprep.subr.mxu0 0.0
        %392 = vmatpush1.msra.mxu0 %v367
        %393 = vmatprep.subr.mxu0 0.0
        %394 = vmatpush1.msra.mxu0 %v368
        %395 = vmatprep.subr.mxu0 0.0
        %396 = vmatpush1.msra.mxu0 %v369
        %397 = vmatprep.subr.mxu0 0.0
        %398 = vmatpush1.msra.mxu0 %v370
        %399 = vmatprep.subr.mxu0 0.0
        %400 = vmatpush1.msra.mxu0 %v371
        %401 = vmatprep.subr.mxu0 0.0
        %402 = vmatpush1.msra.mxu0 %v372
        %403 = vmatprep.subr.mxu0 0.0
        %404 = vmatpush1.msra.mxu0 %v373
        %405 = vmatprep.subr.mxu0 0.0
        %406 = vmatpush1.msra.mxu0 %v374
        %407 = vmatprep.subr.mxu0 0.0
        %408 = vmatpush1.msra.mxu0 0.0
        %409 = vmatprep.subr.mxu0 0.0
        %410 = vmatpush1.msra.mxu0 0.0
        %411 = vmatprep.subr.mxu0 0.0
        %412 = vmatpush1.msra.mxu0 0.0
        %413 = vmatprep.subr.mxu0 0.0
        %414 = vmatpush1.msra.mxu0 0.0
        %415 = vmatprep.subr.mxu0 0.0
        %416 = vmatpush1.msra.mxu0 0.0
        %417 = vmatprep.subr.mxu0 0.0
        %418 = vmatpush1.msra.mxu0 0.0
        %419 = vmatprep.subr.mxu0 0.0
        %420 = vmatpush1.msra.mxu0 0.0
        %421 = vmatprep.subr.mxu0 0.0
        %422 = vmatpush1.msra.mxu0 0.0
        %423 = vmatprep.subr.mxu0 0.0
        %424 = vmatpush1.msra.mxu0 0.0
        %425 = vmatprep.subr.mxu0 0.0
        %426 = vmatpush1.msra.mxu0 0.0
        %427 = vmatprep.subr.mxu0 0.0
        %428 = vmatpush1.msra.mxu0 0.0
        %429 = vmatprep.subr.mxu0 0.0
        %430 = vmatpush1.msra.mxu0 0.0
        %431 = vmatprep.subr.mxu0 0.0
        %432 = vmatpush1.msra.mxu0 0.0
        %433 = vmatprep.subr.mxu0 0.0
        %434 = vmatpush1.msra.mxu0 0.0
        %435 = vmatprep.subr.mxu0 0.0
        %436 = vmatpush1.msra.mxu0 0.0
        %437 = vmatprep.subr.mxu0 0.0
        %438 = vmatpush1.msra.mxu0 0.0
        %439 = vmatprep.mubr.f32.mxu0 0.0
        %440 = vmatmul.mubr.f32.gmra.mrb[0].mxu0 %v283
        %v441 = vpop.f32.mrb[0].mxu0
        %v442 = vadd.f32 0.0, %v441
        %v443 = vpop.f32.mrb[0].mxu0
        %444 = vmatprep.mubr.f32.mxu0 0.0
        %445 = vmatmul.mubr.f32.gmra.mrb[0].mxu0 %v285
        %v446 = vpop.f32.mrb[0].mxu0
        %v447 = vadd.f32 0.0, %v446
        %v448 = vpop.f32.mrb[0].mxu0
        %449 = vdwg.mxu0
        %450 = vmatprep.subr.mxu0 0.0
        %451 = vmatpush1.msra.mxu0 %v343
        %452 = vmatprep.subr.mxu0 0.0
        %453 = vmatpush1.msra.mxu0 %v344
        %454 = vmatprep.subr.mxu0 0.0
        %455 = vmatpush1.msra.mxu0 %v345
        %456 = vmatprep.subr.mxu0 0.0
        %457 = vmatpush1.msra.mxu0 %v346
        %458 = vmatprep.subr.mxu0 0.0
        %459 = vmatpush1.msra.mxu0 %v347
        %460 = vmatprep.subr.mxu0 0.0
        %461 = vmatpush1.msra.mxu0 %v348
        %462 = vmatprep.subr.mxu0 0.0
        %463 = vmatpush1.msra.mxu0 %v349
        %464 = vmatprep.subr.mxu0 0.0
        %465 = vmatpush1.msra.mxu0 %v350
        %466 = vmatprep.subr.mxu0 0.0
        %467 = vmatpush1.msra.mxu0 %v351
        %468 = vmatprep.subr.mxu0 0.0
        %469 = vmatpush1.msra.mxu0 %v352
        %470 = vmatprep.subr.mxu0 0.0
        %471 = vmatpush1.msra.mxu0 %v353
        %472 = vmatprep.subr.mxu0 0.0
        %473 = vmatpush1.msra.mxu0 %v354
        %474 = vmatprep.subr.mxu0 0.0
        %475 = vmatpush1.msra.mxu0 %v355
        %476 = vmatprep.subr.mxu0 0.0
        %477 = vmatpush1.msra.mxu0 %v356
        %478 = vmatprep.subr.mxu0 0.0
        %479 = vmatpush1.msra.mxu0 %v357
        %480 = vmatprep.subr.mxu0 0.0
        %481 = vmatpush1.msra.mxu0 %v358
        %482 = vmatprep.subr.mxu0 0.0
        %483 = vmatpush1.msra.mxu0 0.0
        %484 = vmatprep.subr.mxu0 0.0
        %485 = vmatpush1.msra.mxu0 0.0
        %486 = vmatprep.subr.mxu0 0.0
        %487 = vmatpush1.msra.mxu0 0.0
        %488 = vmatprep.subr.mxu0 0.0
        %489 = vmatpush1.msra.mxu0 0.0
        %490 = vmatprep.subr.mxu0 0.0
        %491 = vmatpush1.msra.mxu0 0.0
        %492 = vmatprep.subr.mxu0 0.0
        %493 = vmatpush1.msra.mxu0 0.0
        %494 = vmatprep.subr.mxu0 0.0
        %495 = vmatpush1.msra.mxu0 0.0
        %496 = vmatprep.subr.mxu0 0.0
        %497 = vmatpush1.msra.mxu0 0.0
        %498 = vmatprep.subr.mxu0 0.0
        %499 = vmatpush1.msra.mxu0 0.0
        %500 = vmatprep.subr.mxu0 0.0
        %501 = vmatpush1.msra.mxu0 0.0
        %502 = vmatprep.subr.mxu0 0.0
        %503 = vmatpush1.msra.mxu0 0.0
        %504 = vmatprep.subr.mxu0 0.0
        %505 = vmatpush1.msra.mxu0 0.0
        %506 = vmatprep.subr.mxu0 0.0
        %507 = vmatpush1.msra.mxu0 0.0
        %508 = vmatprep.subr.mxu0 0.0
        %509 = vmatpush1.msra.mxu0 0.0
        %510 = vmatprep.subr.mxu0 0.0
        %511 = vmatpush1.msra.mxu0 0.0
        %512 = vmatprep.subr.mxu0 0.0
        %513 = vmatpush1.msra.mxu0 0.0
        %514 = vmatprep.mubr.f32.mxu0 0.0
        %515 = vmatmul.mubr.f32.gmra.mrb[0].mxu0 %v328
        %v516 = vpop.f32.mrb[0].mxu0
        %v517 = vadd.f32 %v442, %v516
        %v518 = vpop.f32.mrb[0].mxu0
        %519 = vmatprep.mubr.f32.mxu0 0.0
        %520 = vmatmul.mubr.f32.gmra.mrb[0].mxu0 %v329
        %v521 = vpop.f32.mrb[0].mxu0
        %v522 = vadd.f32 %v447, %v521
        %v523 = vpop.f32.mrb[0].mxu0
        %524 = vdwg.mxu0
        %v525 = vld [vmem:[#allocation2 + $0x100] sm:$0xff]
        %v526 = vld [vmem:[#allocation2 + $0x108] sm:$0xff]
        %v527 = vld [vmem:[#allocation2 + $0x110] sm:$0xff]
        %v528 = vld [vmem:[#allocation2 + $0x118] sm:$0xff]
        %v529 = vld [vmem:[#allocation2 + $0x120] sm:$0xff]
        %v530 = vld [vmem:[#allocation2 + $0x128] sm:$0xff]
        %v531 = vld [vmem:[#allocation2 + $0x130] sm:$0xff]
        %v532 = vld [vmem:[#allocation2 + $0x138] sm:$0xff]
        %v533 = vld [vmem:[#allocation2 + $0x140] sm:$0xff]
        %v534 = vld [vmem:[#allocation2 + $0x148] sm:$0xff]
        %v535 = vld [vmem:[#allocation2 + $0x150] sm:$0xff]
        %v536 = vld [vmem:[#allocation2 + $0x158] sm:$0xff]
        %v537 = vld [vmem:[#allocation2 + $0x160] sm:$0xff]
        %v538 = vld [vmem:[#allocation2 + $0x168] sm:$0xff]
        %v539 = vld [vmem:[#allocation2 + $0x170] sm:$0xff]
        %v540 = vld [vmem:[#allocation2 + $0x178] sm:$0xff]
        %541 = vmatprep.subr.mxu0 0.0
        %542 = vmatpush1.msra.mxu0 %v525
        %543 = vmatprep.subr.mxu0 0.0
        %544 = vmatpush1.msra.mxu0 %v526
        %545 = vmatprep.subr.mxu0 0.0
        %546 = vmatpush1.msra.mxu0 %v527
        %547 = vmatprep.subr.mxu0 0.0
        %548 = vmatpush1.msra.mxu0 %v528
        %549 = vmatprep.subr.mxu0 0.0
        %550 = vmatpush1.msra.mxu0 %v529
        %551 = vmatprep.subr.mxu0 0.0
        %552 = vmatpush1.msra.mxu0 %v530
        %553 = vmatprep.subr.mxu0 0.0
        %554 = vmatpush1.msra.mxu0 %v531
        %555 = vmatprep.subr.mxu0 0.0
        %556 = vmatpush1.msra.mxu0 %v532
        %557 = vmatprep.subr.mxu0 0.0
        %558 = vmatpush1.msra.mxu0 %v533
        %559 = vmatprep.subr.mxu0 0.0
        %560 = vmatpush1.msra.mxu0 %v534
        %561 = vmatprep.subr.mxu0 0.0
        %562 = vmatpush1.msra.mxu0 %v535
        %563 = vmatprep.subr.mxu0 0.0
        %564 = vmatpush1.msra.mxu0 %v536
        %565 = vmatprep.subr.mxu0 0.0
        %566 = vmatpush1.msra.mxu0 %v537
        %567 = vmatprep.subr.mxu0 0.0
        %568 = vmatpush1.msra.mxu0 %v538
        %569 = vmatprep.subr.mxu0 0.0
        %570 = vmatpush1.msra.mxu0 %v539
        %571 = vmatprep.subr.mxu0 0.0
        %572 = vmatpush1.msra.mxu0 %v540
        %573 = vmatprep.subr.mxu0 0.0
        %574 = vmatpush1.msra.mxu0 0.0
        %575 = vmatprep.subr.mxu0 0.0
        %576 = vmatpush1.msra.mxu0 0.0
        %577 = vmatprep.subr.mxu0 0.0
        %578 = vmatpush1.msra.mxu0 0.0
        %579 = vmatprep.subr.mxu0 0.0
        %580 = vmatpush1.msra.mxu0 0.0
        %581 = vmatprep.subr.mxu0 0.0
        %582 = vmatpush1.msra.mxu0 0.0
        %583 = vmatprep.subr.mxu0 0.0
        %584 = vmatpush1.msra.mxu0 0.0
        %585 = vmatprep.subr.mxu0 0.0
        %586 = vmatpush1.msra.mxu0 0.0
        %587 = vmatprep.subr.mxu0 0.0
        %588 = vmatpush1.msra.mxu0 0.0
        %589 = vmatprep.subr.mxu0 0.0
        %590 = vmatpush1.msra.mxu0 0.0
        %591 = vmatprep.subr.mxu0 0.0
        %592 = vmatpush1.msra.mxu0 0.0
        %593 = vmatprep.subr.mxu0 0.0
        %594 = vmatpush1.msra.mxu0 0.0
        %595 = vmatprep.subr.mxu0 0.0
        %596 = vmatpush1.msra.mxu0 0.0
        %597 = vmatprep.subr.mxu0 0.0
        %598 = vmatpush1.msra.mxu0 0.0
        %599 = vmatprep.subr.mxu0 0.0
        %600 = vmatpush1.msra.mxu0 0.0
        %601 = vmatprep.subr.mxu0 0.0
        %602 = vmatpush1.msra.mxu0 0.0
        %603 = vmatprep.subr.mxu0 0.0
        %604 = vmatpush1.msra.mxu0 0.0
        %605 = vmatprep.mubr.f32.mxu0 0.0
        %606 = vmatmul.mubr.f32.gmra.mrb[0].mxu0 %v287
        %v607 = vpop.f32.mrb[0].mxu0
        %v608 = vadd.f32 0.0, %v607
        %v609 = vpop.f32.mrb[0].mxu0
        %610 = vmatprep.mubr.f32.mxu0 0.0
        %611 = vmatmul.mubr.f32.gmra.mrb[0].mxu0 %v289
        %v612 = vpop.f32.mrb[0].mxu0
        %v613 = vadd.f32 0.0, %v612
        %v614 = vpop.f32.mrb[0].mxu0
        %615 = vdwg.mxu0
        %v616 = vadd.f32 %v517, %v608
        %v617 = vadd.f32 %v522, %v613
        %v618 = vld [vmem:[#allocation4] sm:$0x1]
        %v620 = vlaneseq
        %v621 = vshrl.u32 %v620, 7
        %v622 = vsub.s32 0, %v621
        %v623 = vrot.slane %v618, %v622
        %v625 = vadd.f32 %v616, %v623
        %v626 = vadd.f32 %v617, %v623
        %v627 = vmax.f32 %v625, 0.0
        %v628 = vmax.f32 %v626, 0.0
        %629 = vmatprep.subr.mxu0 0.0
        %630 = vmatpush1.msra.mxu0 %v359
        %631 = vmatprep.subr.mxu0 0.0
        %632 = vmatpush1.msra.mxu0 %v360
        %633 = vmatprep.subr.mxu0 0.0
        %634 = vmatpush1.msra.mxu0 %v361
        %635 = vmatprep.subr.mxu0 0.0
        %636 = vmatpush1.msra.mxu0 %v362
        %637 = vmatprep.subr.mxu0 0.0
        %638 = vmatpush1.msra.mxu0 %v363
        %639 = vmatprep.subr.mxu0 0.0
        %640 = vmatpush1.msra.mxu0 %v364
        %641 = vmatprep.subr.mxu0 0.0
        %642 = vmatpush1.msra.mxu0 %v365
        %643 = vmatprep.subr.mxu0 0.0
        %644 = vmatpush1.msra.mxu0 %v366
        %645 = vmatprep.subr.mxu0 0.0
        %646 = vmatpush1.msra.mxu0 %v367
        %647 = vmatprep.subr.mxu0 0.0
        %648 = vmatpush1.msra.mxu0 %v368
        %649 = vmatprep.subr.mxu0 0.0
        %650 = vmatpush1.msra.mxu0 %v369
        %651 = vmatprep.subr.mxu0 0.0
        %652 = vmatpush1.msra.mxu0 %v370
        %653 = vmatprep.subr.mxu0 0.0
        %654 = vmatpush1.msra.mxu0 %v371
        %655 = vmatprep.subr.mxu0 0.0
        %656 = vmatpush1.msra.mxu0 %v372
        %657 = vmatprep.subr.mxu0 0.0
        %658 = vmatpush1.msra.mxu0 %v373
        %659 = vmatprep.subr.mxu0 0.0
        %660 = vmatpush1.msra.mxu0 %v374
        %661 = vmatprep.subr.mxu0 0.0
        %662 = vmatpush1.msra.mxu0 0.0
        %663 = vmatprep.subr.mxu0 0.0
        %664 = vmatpush1.msra.mxu0 0.0
        %665 = vmatprep.subr.mxu0 0.0
        %666 = vmatpush1.msra.mxu0 0.0
        %667 = vmatprep.subr.mxu0 0.0
        %668 = vmatpush1.msra.mxu0 0.0
        %669 = vmatprep.subr.mxu0 0.0
        %670 = vmatpush1.msra.mxu0 0.0
        %671 = vmatprep.subr.mxu0 0.0
        %672 = vmatpush1.msra.mxu0 0.0
        %673 = vmatprep.subr.mxu0 0.0
        %674 = vmatpush1.msra.mxu0 0.0
        %675 = vmatprep.subr.mxu0 0.0
        %676 = vmatpush1.msra.mxu0 0.0
        %677 = vmatprep.subr.mxu0 0.0
        %678 = vmatpush1.msra.mxu0 0.0
        %679 = vmatprep.subr.mxu0 0.0
        %680 = vmatpush1.msra.mxu0 0.0
        %681 = vmatprep.subr.mxu0 0.0
        %682 = vmatpush1.msra.mxu0 0.0
        %683 = vmatprep.subr.mxu0 0.0
        %684 = vmatpush1.msra.mxu0 0.0
        %685 = vmatprep.subr.mxu0 0.0
        %686 = vmatpush1.msra.mxu0 0.0
        %687 = vmatprep.subr.mxu0 0.0
        %688 = vmatpush1.msra.mxu0 0.0
        %689 = vmatprep.subr.mxu0 0.0
        %690 = vmatpush1.msra.mxu0 0.0
        %691 = vmatprep.subr.mxu0 0.0
        %692 = vmatpush1.msra.mxu0 0.0
        %693 = vmatprep.mubr.f32.mxu0 0.0
        %694 = vmatmul.mubr.f32.gmra.mrb[0].mxu0 %v287
        %v695 = vpop.f32.mrb[0].mxu0
        %v696 = vadd.f32 0.0, %v695
        %v697 = vpop.f32.mrb[0].mxu0
        %698 = vmatprep.mubr.f32.mxu0 0.0
        %699 = vmatmul.mubr.f32.gmra.mrb[0].mxu0 %v289
        %v700 = vpop.f32.mrb[0].mxu0
        %v701 = vadd.f32 0.0, %v700
        %v702 = vpop.f32.mrb[0].mxu0
        %703 = vdwg.mxu0
        %704 = vmatprep.subr.mxu0 0.0
        %705 = vmatpush1.msra.mxu0 %v343
        %706 = vmatprep.subr.mxu0 0.0
        %707 = vmatpush1.msra.mxu0 %v344
        %708 = vmatprep.subr.mxu0 0.0
        %709 = vmatpush1.msra.mxu0 %v345
        %710 = vmatprep.subr.mxu0 0.0
        %711 = vmatpush1.msra.mxu0 %v346
        %712 = vmatprep.subr.mxu0 0.0
        %713 = vmatpush1.msra.mxu0 %v347
        %714 = vmatprep.subr.mxu0 0.0
        %715 = vmatpush1.msra.mxu0 %v348
        %716 = vmatprep.subr.mxu0 0.0
        %717 = vmatpush1.msra.mxu0 %v349
        %718 = vmatprep.subr.mxu0 0.0
        %719 = vmatpush1.msra.mxu0 %v350
        %720 = vmatprep.subr.mxu0 0.0
        %721 = vmatpush1.msra.mxu0 %v351
        %722 = vmatprep.subr.mxu0 0.0
        %723 = vmatpush1.msra.mxu0 %v352
        %724 = vmatprep.subr.mxu0 0.0
        %725 = vmatpush1.msra.mxu0 %v353
        %726 = vmatprep.subr.mxu0 0.0
        %727 = vmatpush1.msra.mxu0 %v354
        %728 = vmatprep.subr.mxu0 0.0
        %729 = vmatpush1.msra.mxu0 %v355
        %730 = vmatprep.subr.mxu0 0.0
        %731 = vmatpush1.msra.mxu0 %v356
        %732 = vmatprep.subr.mxu0 0.0
        %733 = vmatpush1.msra.mxu0 %v357
        %734 = vmatprep.subr.mxu0 0.0
        %735 = vmatpush1.msra.mxu0 %v358
        %736 = vmatprep.subr.mxu0 0.0
        %737 = vmatpush1.msra.mxu0 0.0
        %738 = vmatprep.subr.mxu0 0.0
        %739 = vmatpush1.msra.mxu0 0.0
        %740 = vmatprep.subr.mxu0 0.0
        %741 = vmatpush1.msra.mxu0 0.0
        %742 = vmatprep.subr.mxu0 0.0
        %743 = vmatpush1.msra.mxu0 0.0
        %744 = vmatprep.subr.mxu0 0.0
        %745 = vmatpush1.msra.mxu0 0.0
        %746 = vmatprep.subr.mxu0 0.0
        %747 = vmatpush1.msra.mxu0 0.0
        %748 = vmatprep.subr.mxu0 0.0
        %749 = vmatpush1.msra.mxu0 0.0
        %750 = vmatprep.subr.mxu0 0.0
        %751 = vmatpush1.msra.mxu0 0.0
        %752 = vmatprep.subr.mxu0 0.0
        %753 = vmatpush1.msra.mxu0 0.0
        %754 = vmatprep.subr.mxu0 0.0
        %755 = vmatpush1.msra.mxu0 0.0
        %756 = vmatprep.subr.mxu0 0.0
        %757 = vmatpush1.msra.mxu0 0.0
        %758 = vmatprep.subr.mxu0 0.0
        %759 = vmatpush1.msra.mxu0 0.0
        %760 = vmatprep.subr.mxu0 0.0
        %761 = vmatpush1.msra.mxu0 0.0
        %762 = vmatprep.subr.mxu0 0.0
        %763 = vmatpush1.msra.mxu0 0.0
        %764 = vmatprep.subr.mxu0 0.0
        %765 = vmatpush1.msra.mxu0 0.0
        %766 = vmatprep.subr.mxu0 0.0
        %767 = vmatpush1.msra.mxu0 0.0
        %768 = vmatprep.mubr.f32.mxu0 0.0
        %769 = vmatmul.mubr.f32.gmra.mrb[0].mxu0 %v283
        %v770 = vpop.f32.mrb[0].mxu0
        %v771 = vadd.f32 %v696, %v770
        %v772 = vpop.f32.mrb[0].mxu0
        %773 = vmatprep.mubr.f32.mxu0 0.0
        %774 = vmatmul.mubr.f32.gmra.mrb[0].mxu0 %v285
        %v775 = vpop.f32.mrb[0].mxu0
        %v776 = vadd.f32 %v701, %v775
        %v777 = vpop.f32.mrb[0].mxu0
        %778 = vdwg.mxu0
        %779 = vmatprep.subr.mxu0 0.0
        %780 = vmatpush1.msra.mxu0 %v525
        %781 = vmatprep.subr.mxu0 0.0
        %782 = vmatpush1.msra.mxu0 %v526
        %783 = vmatprep.subr.mxu0 0.0
        %784 = vmatpush1.msra.mxu0 %v527
        %785 = vmatprep.subr.mxu0 0.0
        %786 = vmatpush1.msra.mxu0 %v528
        %787 = vmatprep.subr.mxu0 0.0
        %788 = vmatpush1.msra.mxu0 %v529
        %789 = vmatprep.subr.mxu0 0.0
        %790 = vmatpush1.msra.mxu0 %v530
        %791 = vmatprep.subr.mxu0 0.0
        %792 = vmatpush1.msra.mxu0 %v531
        %793 = vmatprep.subr.mxu0 0.0
        %794 = vmatpush1.msra.mxu0 %v532
        %795 = vmatprep.subr.mxu0 0.0
        %796 = vmatpush1.msra.mxu0 %v533
        %797 = vmatprep.subr.mxu0 0.0
        %798 = vmatpush1.msra.mxu0 %v534
        %799 = vmatprep.subr.mxu0 0.0
        %800 = vmatpush1.msra.mxu0 %v535
        %801 = vmatprep.subr.mxu0 0.0
        %802 = vmatpush1.msra.mxu0 %v536
        %803 = vmatprep.subr.mxu0 0.0
        %804 = vmatpush1.msra.mxu0 %v537
        %805 = vmatprep.subr.mxu0 0.0
        %806 = vmatpush1.msra.mxu0 %v538
        %807 = vmatprep.subr.mxu0 0.0
        %808 = vmatpush1.msra.mxu0 %v539
        %809 = vmatprep.subr.mxu0 0.0
        %810 = vmatpush1.msra.mxu0 %v540
        %811 = vmatprep.subr.mxu0 0.0
        %812 = vmatpush1.msra.mxu0 0.0
        %813 = vmatprep.subr.mxu0 0.0
        %814 = vmatpush1.msra.mxu0 0.0
        %815 = vmatprep.subr.mxu0 0.0
        %816 = vmatpush1.msra.mxu0 0.0
        %817 = vmatprep.subr.mxu0 0.0
        %818 = vmatpush1.msra.mxu0 0.0
        %819 = vmatprep.subr.mxu0 0.0
        %820 = vmatpush1.msra.mxu0 0.0
        %821 = vmatprep.subr.mxu0 0.0
        %822 = vmatpush1.msra.mxu0 0.0
        %823 = vmatprep.subr.mxu0 0.0
        %824 = vmatpush1.msra.mxu0 0.0
        %825 = vmatprep.subr.mxu0 0.0
        %826 = vmatpush1.msra.mxu0 0.0
        %827 = vmatprep.subr.mxu0 0.0
        %828 = vmatpush1.msra.mxu0 0.0
        %829 = vmatprep.subr.mxu0 0.0
        %830 = vmatpush1.msra.mxu0 0.0
        %831 = vmatprep.subr.mxu0 0.0
        %832 = vmatpush1.msra.mxu0 0.0
        %833 = vmatprep.subr.mxu0 0.0
        %834 = vmatpush1.msra.mxu0 0.0
        %835 = vmatprep.subr.mxu0 0.0
        %836 = vmatpush1.msra.mxu0 0.0
        %837 = vmatprep.subr.mxu0 0.0
        %838 = vmatpush1.msra.mxu0 0.0
        %839 = vmatprep.subr.mxu0 0.0
        %840 = vmatpush1.msra.mxu0 0.0
        %841 = vmatprep.subr.mxu0 0.0
        %842 = vmatpush1.msra.mxu0 0.0
        %843 = vmatprep.mubr.f32.mxu0 0.0
        %844 = vmatmul.mubr.f32.gmra.mrb[0].mxu0 %v341
        %v845 = vpop.f32.mrb[0].mxu0
        %v846 = vadd.f32 0.0, %v845
        %v847 = vpop.f32.mrb[0].mxu0
        %848 = vmatprep.mubr.f32.mxu0 0.0
        %849 = vmatmul.mubr.f32.gmra.mrb[0].mxu0 %v342
        %v850 = vpop.f32.mrb[0].mxu0
        %v851 = vadd.f32 0.0, %v850
        %v852 = vpop.f32.mrb[0].mxu0
        %853 = vdwg.mxu0
        %v854 = vadd.f32 %v771, %v846
        %v855 = vadd.f32 %v776, %v851
        %v856 = vadd.f32 %v854, %v623
        %v857 = vadd.f32 %v855, %v623
        %v858 = vmax.f32 %v856, 0.0
        %v859 = vmax.f32 %v857, 0.0
        %v860 = vrot.slane %v858, 7
        %v861 = vrot.slane %v859, 7
        %v862 = vsel %vm321, %v860, %v861
        %v863 = vsel %vm321, %v861, %v860
        %v864 = vsel %vm326, 0.0, %v863
        %v865 = vsel %vm327, 0.0, %v862
        %v866 = vld [vmem:[#allocation6] sm:$0xff]
        %v867 = vld [vmem:[#allocation6 + $0x8] sm:$0xff]
        %v868 = vld [vmem:[#allocation6 + $0x10] sm:$0xff]
        %v869 = vld [vmem:[#allocation6 + $0x18] sm:$0xff]
        %v870 = vld [vmem:[#allocation6 + $0x20] sm:$0xff]
        %v871 = vld [vmem:[#allocation6 + $0x28] sm:$0xff]
        %v872 = vld [vmem:[#allocation6 + $0x30] sm:$0xff]
        %v873 = vld [vmem:[#allocation6 + $0x38] sm:$0xff]
        %v874 = vld [vmem:[#allocation6 + $0x40] sm:$0xff]
        %v875 = vld [vmem:[#allocation6 + $0x48] sm:$0xff]
        %v876 = vld [vmem:[#allocation6 + $0x50] sm:$0xff]
        %v877 = vld [vmem:[#allocation6 + $0x58] sm:$0xff]
        %v878 = vld [vmem:[#allocation6 + $0x60] sm:$0xff]
        %v879 = vld [vmem:[#allocation6 + $0x68] sm:$0xff]
        %v880 = vld [vmem:[#allocation6 + $0x70] sm:$0xff]
        %v881 = vld [vmem:[#allocation6 + $0x78] sm:$0xff]
        %v882 = vld [vmem:[#allocation6 + $0x80] sm:$0xff]
        %v883 = vld [vmem:[#allocation6 + $0x88] sm:$0xff]
        %v884 = vld [vmem:[#allocation6 + $0x90] sm:$0xff]
        %v885 = vld [vmem:[#allocation6 + $0x98] sm:$0xff]
        %v886 = vld [vmem:[#allocation6 + $0xa0] sm:$0xff]
        %v887 = vld [vmem:[#allocation6 + $0xa8] sm:$0xff]
        %v888 = vld [vmem:[#allocation6 + $0xb0] sm:$0xff]
        %v889 = vld [vmem:[#allocation6 + $0xb8] sm:$0xff]
        %v890 = vld [vmem:[#allocation6 + $0xc0] sm:$0xff]
        %v891 = vld [vmem:[#allocation6 + $0xc8] sm:$0xff]
        %v892 = vld [vmem:[#allocation6 + $0xd0] sm:$0xff]
        %v893 = vld [vmem:[#allocation6 + $0xd8] sm:$0xff]
        %v894 = vld [vmem:[#allocation6 + $0xe0] sm:$0xff]
        %v895 = vld [vmem:[#allocation6 + $0xe8] sm:$0xff]
        %v896 = vld [vmem:[#allocation6 + $0xf0] sm:$0xff]
        %v897 = vld [vmem:[#allocation6 + $0xf8] sm:$0xff]
        %898 = vmatprep.subr.mxu0 0.0
        %899 = vmatpush1.msra.mxu0 %v882
        %900 = vmatprep.subr.mxu0 0.0
        %901 = vmatpush1.msra.mxu0 %v883
        %902 = vmatprep.subr.mxu0 0.0
        %903 = vmatpush1.msra.mxu0 %v884
        %904 = vmatprep.subr.mxu0 0.0
        %905 = vmatpush1.msra.mxu0 %v885
        %906 = vmatprep.subr.mxu0 0.0
        %907 = vmatpush1.msra.mxu0 %v886
        %908 = vmatprep.subr.mxu0 0.0
        %909 = vmatpush1.msra.mxu0 %v887
        %910 = vmatprep.subr.mxu0 0.0
        %911 = vmatpush1.msra.mxu0 %v888
        %912 = vmatprep.subr.mxu0 0.0
        %913 = vmatpush1.msra.mxu0 %v889
        %914 = vmatprep.subr.mxu0 0.0
        %915 = vmatpush1.msra.mxu0 %v890
        %916 = vmatprep.subr.mxu0 0.0
        %917 = vmatpush1.msra.mxu0 %v891
        %918 = vmatprep.subr.mxu0 0.0
        %919 = vmatpush1.msra.mxu0 %v892
        %920 = vmatprep.subr.mxu0 0.0
        %921 = vmatpush1.msra.mxu0 %v893
        %922 = vmatprep.subr.mxu0 0.0
        %923 = vmatpush1.msra.mxu0 %v894
        %924 = vmatprep.subr.mxu0 0.0
        %925 = vmatpush1.msra.mxu0 %v895
        %926 = vmatprep.subr.mxu0 0.0
        %927 = vmatpush1.msra.mxu0 %v896
        %928 = vmatprep.subr.mxu0 0.0
        %929 = vmatpush1.msra.mxu0 %v897
        %930 = vmatprep.subr.mxu0 0.0
        %931 = vmatpush1.msra.mxu0 0.0
        %932 = vmatprep.subr.mxu0 0.0
        %933 = vmatpush1.msra.mxu0 0.0
        %934 = vmatprep.subr.mxu0 0.0
        %935 = vmatpush1.msra.mxu0 0.0
        %936 = vmatprep.subr.mxu0 0.0
        %937 = vmatpush1.msra.mxu0 0.0
        %938 = vmatprep.subr.mxu0 0.0
        %939 = vmatpush1.msra.mxu0 0.0
        %940 = vmatprep.subr.mxu0 0.0
        %941 = vmatpush1.msra.mxu0 0.0
        %942 = vmatprep.subr.mxu0 0.0
        %943 = vmatpush1.msra.mxu0 0.0
        %944 = vmatprep.subr.mxu0 0.0
        %945 = vmatpush1.msra.mxu0 0.0
        %946 = vmatprep.subr.mxu0 0.0
        %947 = vmatpush1.msra.mxu0 0.0
        %948 = vmatprep.subr.mxu0 0.0
        %949 = vmatpush1.msra.mxu0 0.0
        %950 = vmatprep.subr.mxu0 0.0
        %951 = vmatpush1.msra.mxu0 0.0
        %952 = vmatprep.subr.mxu0 0.0
        %953 = vmatpush1.msra.mxu0 0.0
        %954 = vmatprep.subr.mxu0 0.0
        %955 = vmatpush1.msra.mxu0 0.0
        %956 = vmatprep.subr.mxu0 0.0
        %957 = vmatpush1.msra.mxu0 0.0
        %958 = vmatprep.subr.mxu0 0.0
        %959 = vmatpush1.msra.mxu0 0.0
        %960 = vmatprep.subr.mxu0 0.0
        %961 = vmatpush1.msra.mxu0 0.0
        %962 = vmatprep.mubr.f32.mxu0 0.0
        %963 = vmatmul.mubr.f32.gmra.mrb[0].mxu0 %v627
        %v964 = vpop.f32.mrb[0].mxu0
        %v965 = vadd.f32 0.0, %v964
        %v966 = vpop.f32.mrb[0].mxu0
        %967 = vmatprep.mubr.f32.mxu0 0.0
        %968 = vmatmul.mubr.f32.gmra.mrb[0].mxu0 %v628
        %v969 = vpop.f32.mrb[0].mxu0
        %v970 = vadd.f32 0.0, %v969
        %v971 = vpop.f32.mrb[0].mxu0
        %972 = vdwg.mxu0
        %973 = vmatprep.subr.mxu0 0.0
        %974 = vmatpush1.msra.mxu0 %v866
        %975 = vmatprep.subr.mxu0 0.0
        %976 = vmatpush1.msra.mxu0 %v867
        %977 = vmatprep.subr.mxu0 0.0
        %978 = vmatpush1.msra.mxu0 %v868
        %979 = vmatprep.subr.mxu0 0.0
        %980 = vmatpush1.msra.mxu0 %v869
        %981 = vmatprep.subr.mxu0 0.0
        %982 = vmatpush1.msra.mxu0 %v870
        %983 = vmatprep.subr.mxu0 0.0
        %984 = vmatpush1.msra.mxu0 %v871
        %985 = vmatprep.subr.mxu0 0.0
        %986 = vmatpush1.msra.mxu0 %v872
        %987 = vmatprep.subr.mxu0 0.0
        %988 = vmatpush1.msra.mxu0 %v873
        %989 = vmatprep.subr.mxu0 0.0
        %990 = vmatpush1.msra.mxu0 %v874
        %991 = vmatprep.subr.mxu0 0.0
        %992 = vmatpush1.msra.mxu0 %v875
        %993 = vmatprep.subr.mxu0 0.0
        %994 = vmatpush1.msra.mxu0 %v876
        %995 = vmatprep.subr.mxu0 0.0
        %996 = vmatpush1.msra.mxu0 %v877
        %997 = vmatprep.subr.mxu0 0.0
        %998 = vmatpush1.msra.mxu0 %v878
        %999 = vmatprep.subr.mxu0 0.0
        %1000 = vmatpush1.msra.mxu0 %v879
        %1001 = vmatprep.subr.mxu0 0.0
        %1002 = vmatpush1.msra.mxu0 %v880
        %1003 = vmatprep.subr.mxu0 0.0
        %1004 = vmatpush1.msra.mxu0 %v881
        %1005 = vmatprep.subr.mxu0 0.0
        %1006 = vmatpush1.msra.mxu0 0.0
        %1007 = vmatprep.subr.mxu0 0.0
        %1008 = vmatpush1.msra.mxu0 0.0
        %1009 = vmatprep.subr.mxu0 0.0
        %1010 = vmatpush1.msra.mxu0 0.0
        %1011 = vmatprep.subr.mxu0 0.0
        %1012 = vmatpush1.msra.mxu0 0.0
        %1013 = vmatprep.subr.mxu0 0.0
        %1014 = vmatpush1.msra.mxu0 0.0
        %1015 = vmatprep.subr.mxu0 0.0
        %1016 = vmatpush1.msra.mxu0 0.0
        %1017 = vmatprep.subr.mxu0 0.0
        %1018 = vmatpush1.msra.mxu0 0.0
        %1019 = vmatprep.subr.mxu0 0.0
        %1020 = vmatpush1.msra.mxu0 0.0
        %1021 = vmatprep.subr.mxu0 0.0
        %1022 = vmatpush1.msra.mxu0 0.0
        %1023 = vmatprep.subr.mxu0 0.0
        %1024 = vmatpush1.msra.mxu0 0.0
        %1025 = vmatprep.subr.mxu0 0.0
        %1026 = vmatpush1.msra.mxu0 0.0
        %1027 = vmatprep.subr.mxu0 0.0
        %1028 = vmatpush1.msra.mxu0 0.0
        %1029 = vmatprep.subr.mxu0 0.0
        %1030 = vmatpush1.msra.mxu0 0.0
        %1031 = vmatprep.subr.mxu0 0.0
        %1032 = vmatpush1.msra.mxu0 0.0
        %1033 = vmatprep.subr.mxu0 0.0
        %1034 = vmatpush1.msra.mxu0 0.0
        %1035 = vmatprep.subr.mxu0 0.0
        %1036 = vmatpush1.msra.mxu0 0.0
        %1037 = vmatprep.mubr.f32.mxu0 0.0
        %1038 = vmatmul.mubr.f32.gmra.mrb[0].mxu0 %v864
        %v1039 = vpop.f32.mrb[0].mxu0
        %v1040 = vadd.f32 %v965, %v1039
        %v1041 = vpop.f32.mrb[0].mxu0
        %1042 = vmatprep.mubr.f32.mxu0 0.0
        %1043 = vmatmul.mubr.f32.gmra.mrb[0].mxu0 %v865
        %v1044 = vpop.f32.mrb[0].mxu0
        %v1045 = vadd.f32 %v970, %v1044
        %v1046 = vpop.f32.mrb[0].mxu0
        %1047 = vdwg.mxu0
        %v1048 = vld [vmem:[#allocation6 + $0x100] sm:$0xff]
        %v1049 = vld [vmem:[#allocation6 + $0x108] sm:$0xff]
        %v1050 = vld [vmem:[#allocation6 + $0x110] sm:$0xff]
        %v1051 = vld [vmem:[#allocation6 + $0x118] sm:$0xff]
        %v1052 = vld [vmem:[#allocation6 + $0x120] sm:$0xff]
        %v1053 = vld [vmem:[#allocation6 + $0x128] sm:$0xff]
        %v1054 = vld [vmem:[#allocation6 + $0x130] sm:$0xff]
        %v1055 = vld [vmem:[#allocation6 + $0x138] sm:$0xff]
        %v1056 = vld [vmem:[#allocation6 + $0x140] sm:$0xff]
        %v1057 = vld [vmem:[#allocation6 + $0x148] sm:$0xff]
        %v1058 = vld [vmem:[#allocation6 + $0x150] sm:$0xff]
        %v1059 = vld [vmem:[#allocation6 + $0x158] sm:$0xff]
        %v1060 = vld [vmem:[#allocation6 + $0x160] sm:$0xff]
        %v1061 = vld [vmem:[#allocation6 + $0x168] sm:$0xff]
        %v1062 = vld [vmem:[#allocation6 + $0x170] sm:$0xff]
        %v1063 = vld [vmem:[#allocation6 + $0x178] sm:$0xff]
        %1064 = vmatprep.subr.mxu0 0.0
        %1065 = vmatpush1.msra.mxu0 %v1048
        %1066 = vmatprep.subr.mxu0 0.0
        %1067 = vmatpush1.msra.mxu0 %v1049
        %1068 = vmatprep.subr.mxu0 0.0
        %1069 = vmatpush1.msra.mxu0 %v1050
        %1070 = vmatprep.subr.mxu0 0.0
        %1071 = vmatpush1.msra.mxu0 %v1051
        %1072 = vmatprep.subr.mxu0 0.0
        %1073 = vmatpush1.msra.mxu0 %v1052
        %1074 = vmatprep.subr.mxu0 0.0
        %1075 = vmatpush1.msra.mxu0 %v1053
        %1076 = vmatprep.subr.mxu0 0.0
        %1077 = vmatpush1.msra.mxu0 %v1054
        %1078 = vmatprep.subr.mxu0 0.0
        %1079 = vmatpush1.msra.mxu0 %v1055
        %1080 = vmatprep.subr.mxu0 0.0
        %1081 = vmatpush1.msra.mxu0 %v1056
        %1082 = vmatprep.subr.mxu0 0.0
        %1083 = vmatpush1.msra.mxu0 %v1057
        %1084 = vmatprep.subr.mxu0 0.0
        %1085 = vmatpush1.msra.mxu0 %v1058
        %1086 = vmatprep.subr.mxu0 0.0
        %1087 = vmatpush1.msra.mxu0 %v1059
        %1088 = vmatprep.subr.mxu0 0.0
        %1089 = vmatpush1.msra.mxu0 %v1060
        %1090 = vmatprep.subr.mxu0 0.0
        %1091 = vmatpush1.msra.mxu0 %v1061
        %1092 = vmatprep.subr.mxu0 0.0
        %1093 = vmatpush1.msra.mxu0 %v1062
        %1094 = vmatprep.subr.mxu0 0.0
        %1095 = vmatpush1.msra.mxu0 %v1063
        %1096 = vmatprep.subr.mxu0 0.0
        %1097 = vmatpush1.msra.mxu0 0.0
        %1098 = vmatprep.subr.mxu0 0.0
        %1099 = vmatpush1.msra.mxu0 0.0
        %1100 = vmatprep.subr.mxu0 0.0
        %1101 = vmatpush1.msra.mxu0 0.0
        %1102 = vmatprep.subr.mxu0 0.0
        %1103 = vmatpush1.msra.mxu0 0.0
        %1104 = vmatprep.subr.mxu0 0.0
        %1105 = vmatpush1.msra.mxu0 0.0
        %1106 = vmatprep.subr.mxu0 0.0
        %1107 = vmatpush1.msra.mxu0 0.0
        %1108 = vmatprep.subr.mxu0 0.0
        %1109 = vmatpush1.msra.mxu0 0.0
        %1110 = vmatprep.subr.mxu0 0.0
        %1111 = vmatpush1.msra.mxu0 0.0
        %1112 = vmatprep.subr.mxu0 0.0
        %1113 = vmatpush1.msra.mxu0 0.0
        %1114 = vmatprep.subr.mxu0 0.0
        %1115 = vmatpush1.msra.mxu0 0.0
        %1116 = vmatprep.subr.mxu0 0.0
        %1117 = vmatpush1.msra.mxu0 0.0
        %1118 = vmatprep.subr.mxu0 0.0
        %1119 = vmatpush1.msra.mxu0 0.0
        %1120 = vmatprep.subr.mxu0 0.0
        %1121 = vmatpush1.msra.mxu0 0.0
        %1122 = vmatprep.subr.mxu0 0.0
        %1123 = vmatpush1.msra.mxu0 0.0
        %1124 = vmatprep.subr.mxu0 0.0
        %1125 = vmatpush1.msra.mxu0 0.0
        %1126 = vmatprep.subr.mxu0 0.0
        %1127 = vmatpush1.msra.mxu0 0.0
        %1128 = vmatprep.mubr.f32.mxu0 0.0
        %1129 = vmatmul.mubr.f32.gmra.mrb[0].mxu0 %v858
        %v1130 = vpop.f32.mrb[0].mxu0
        %v1131 = vadd.f32 0.0, %v1130
        %v1132 = vpop.f32.mrb[0].mxu0
        %1133 = vmatprep.mubr.f32.mxu0 0.0
        %1134 = vmatmul.mubr.f32.gmra.mrb[0].mxu0 %v859
        %v1135 = vpop.f32.mrb[0].mxu0
        %v1136 = vadd.f32 0.0, %v1135
        %v1137 = vpop.f32.mrb[0].mxu0
        %1138 = vdwg.mxu0
        %v1139 = vadd.f32 %v1040, %v1131
        %v1140 = vadd.f32 %v1045, %v1136
        %v1141 = vld [vmem:[#allocation6 + $0x180] sm:$0xff]
        %v1142 = vld [vmem:[#allocation6 + $0x188] sm:$0xff]
        %v1143 = vld [vmem:[#allocation6 + $0x190] sm:$0xff]
        %v1144 = vld [vmem:[#allocation6 + $0x198] sm:$0xff]
        %v1145 = vld [vmem:[#allocation6 + $0x1a0] sm:$0xff]
        %v1146 = vld [vmem:[#allocation6 + $0x1a8] sm:$0xff]
        %v1147 = vld [vmem:[#allocation6 + $0x1b0] sm:$0xff]
        %v1148 = vld [vmem:[#allocation6 + $0x1b8] sm:$0xff]
        %v1149 = vld [vmem:[#allocation6 + $0x1c0] sm:$0xff]
        %v1150 = vld [vmem:[#allocation6 + $0x1c8] sm:$0xff]
        %v1151 = vld [vmem:[#allocation6 + $0x1d0] sm:$0xff]
        %v1152 = vld [vmem:[#allocation6 + $0x1d8] sm:$0xff]
        %v1153 = vld [vmem:[#allocation6 + $0x1e0] sm:$0xff]
        %v1154 = vld [vmem:[#allocation6 + $0x1e8] sm:$0xff]
        %v1155 = vld [vmem:[#allocation6 + $0x1f0] sm:$0xff]
        %v1156 = vld [vmem:[#allocation6 + $0x1f8] sm:$0xff]
        %1157 = vmatprep.subr.mxu0 0.0
        %1158 = vmatpush1.msra.mxu0 %v1141
        %1159 = vmatprep.subr.mxu0 0.0
        %1160 = vmatpush1.msra.mxu0 %v1142
        %1161 = vmatprep.subr.mxu0 0.0
        %1162 = vmatpush1.msra.mxu0 %v1143
        %1163 = vmatprep.subr.mxu0 0.0
        %1164 = vmatpush1.msra.mxu0 %v1144
        %1165 = vmatprep.subr.mxu0 0.0
        %1166 = vmatpush1.msra.mxu0 %v1145
        %1167 = vmatprep.subr.mxu0 0.0
        %1168 = vmatpush1.msra.mxu0 %v1146
        %1169 = vmatprep.subr.mxu0 0.0
        %1170 = vmatpush1.msra.mxu0 %v1147
        %1171 = vmatprep.subr.mxu0 0.0
        %1172 = vmatpush1.msra.mxu0 %v1148
        %1173 = vmatprep.subr.mxu0 0.0
        %1174 = vmatpush1.msra.mxu0 %v1149
        %1175 = vmatprep.subr.mxu0 0.0
        %1176 = vmatpush1.msra.mxu0 %v1150
        %1177 = vmatprep.subr.mxu0 0.0
        %1178 = vmatpush1.msra.mxu0 %v1151
        %1179 = vmatprep.subr.mxu0 0.0
        %1180 = vmatpush1.msra.mxu0 %v1152
        %1181 = vmatprep.subr.mxu0 0.0
        %1182 = vmatpush1.msra.mxu0 %v1153
        %1183 = vmatprep.subr.mxu0 0.0
        %1184 = vmatpush1.msra.mxu0 %v1154
        %1185 = vmatprep.subr.mxu0 0.0
        %1186 = vmatpush1.msra.mxu0 %v1155
        %1187 = vmatprep.subr.mxu0 0.0
        %1188 = vmatpush1.msra.mxu0 %v1156
        %1189 = vmatprep.subr.mxu0 0.0
        %1190 = vmatpush1.msra.mxu0 0.0
        %1191 = vmatprep.subr.mxu0 0.0
        %1192 = vmatpush1.msra.mxu0 0.0
        %1193 = vmatprep.subr.mxu0 0.0
        %1194 = vmatpush1.msra.mxu0 0.0
        %1195 = vmatprep.subr.mxu0 0.0
        %1196 = vmatpush1.msra.mxu0 0.0
        %1197 = vmatprep.subr.mxu0 0.0
        %1198 = vmatpush1.msra.mxu0 0.0
        %1199 = vmatprep.subr.mxu0 0.0
        %1200 = vmatpush1.msra.mxu0 0.0
        %1201 = vmatprep.subr.mxu0 0.0
        %1202 = vmatpush1.msra.mxu0 0.0
        %1203 = vmatprep.subr.mxu0 0.0
        %1204 = vmatpush1.msra.mxu0 0.0
        %1205 = vmatprep.subr.mxu0 0.0
        %1206 = vmatpush1.msra.mxu0 0.0
        %1207 = vmatprep.subr.mxu0 0.0
        %1208 = vmatpush1.msra.mxu0 0.0
        %1209 = vmatprep.subr.mxu0 0.0
        %1210 = vmatpush1.msra.mxu0 0.0
        %1211 = vmatprep.subr.mxu0 0.0
        %1212 = vmatpush1.msra.mxu0 0.0
        %1213 = vmatprep.subr.mxu0 0.0
        %1214 = vmatpush1.msra.mxu0 0.0
        %1215 = vmatprep.subr.mxu0 0.0
        %1216 = vmatpush1.msra.mxu0 0.0
        %1217 = vmatprep.subr.mxu0 0.0
        %1218 = vmatpush1.msra.mxu0 0.0
        %1219 = vmatprep.subr.mxu0 0.0
        %1220 = vmatpush1.msra.mxu0 0.0
        %1221 = vmatprep.mubr.f32.mxu0 0.0
        %1222 = vmatmul.mubr.f32.gmra.mrb[0].mxu0 %v328
        %v1223 = vpop.f32.mrb[0].mxu0
        %v1224 = vadd.f32 0.0, %v1223
        %v1225 = vpop.f32.mrb[0].mxu0
        %1226 = vmatprep.mubr.f32.mxu0 0.0
        %1227 = vmatmul.mubr.f32.gmra.mrb[0].mxu0 %v329
        %v1228 = vpop.f32.mrb[0].mxu0
        %v1229 = vadd.f32 0.0, %v1228
        %v1230 = vpop.f32.mrb[0].mxu0
        %1231 = vdwg.mxu0
        %v1232 = vadd.f32 %v1139, %v1224
        %v1233 = vadd.f32 %v1140, %v1229
        %v1234 = vld [vmem:[#allocation6 + $0x200] sm:$0xff]
        %v1235 = vld [vmem:[#allocation6 + $0x208] sm:$0xff]
        %v1236 = vld [vmem:[#allocation6 + $0x210] sm:$0xff]
        %v1237 = vld [vmem:[#allocation6 + $0x218] sm:$0xff]
        %v1238 = vld [vmem:[#allocation6 + $0x220] sm:$0xff]
        %v1239 = vld [vmem:[#allocation6 + $0x228] sm:$0xff]
        %v1240 = vld [vmem:[#allocation6 + $0x230] sm:$0xff]
        %v1241 = vld [vmem:[#allocation6 + $0x238] sm:$0xff]
        %v1242 = vld [vmem:[#allocation6 + $0x240] sm:$0xff]
        %v1243 = vld [vmem:[#allocation6 + $0x248] sm:$0xff]
        %v1244 = vld [vmem:[#allocation6 + $0x250] sm:$0xff]
        %v1245 = vld [vmem:[#allocation6 + $0x258] sm:$0xff]
        %v1246 = vld [vmem:[#allocation6 + $0x260] sm:$0xff]
        %v1247 = vld [vmem:[#allocation6 + $0x268] sm:$0xff]
        %v1248 = vld [vmem:[#allocation6 + $0x270] sm:$0xff]
        %v1249 = vld [vmem:[#allocation6 + $0x278] sm:$0xff]
        %1250 = vmatprep.subr.mxu0 0.0
        %1251 = vmatpush1.msra.mxu0 %v1234
        %1252 = vmatprep.subr.mxu0 0.0
        %1253 = vmatpush1.msra.mxu0 %v1235
        %1254 = vmatprep.subr.mxu0 0.0
        %1255 = vmatpush1.msra.mxu0 %v1236
        %1256 = vmatprep.subr.mxu0 0.0
        %1257 = vmatpush1.msra.mxu0 %v1237
        %1258 = vmatprep.subr.mxu0 0.0
        %1259 = vmatpush1.msra.mxu0 %v1238
        %1260 = vmatprep.subr.mxu0 0.0
        %1261 = vmatpush1.msra.mxu0 %v1239
        %1262 = vmatprep.subr.mxu0 0.0
        %1263 = vmatpush1.msra.mxu0 %v1240
        %1264 = vmatprep.subr.mxu0 0.0
        %1265 = vmatpush1.msra.mxu0 %v1241
        %1266 = vmatprep.subr.mxu0 0.0
        %1267 = vmatpush1.msra.mxu0 %v1242
        %1268 = vmatprep.subr.mxu0 0.0
        %1269 = vmatpush1.msra.mxu0 %v1243
        %1270 = vmatprep.subr.mxu0 0.0
        %1271 = vmatpush1.msra.mxu0 %v1244
        %1272 = vmatprep.subr.mxu0 0.0
        %1273 = vmatpush1.msra.mxu0 %v1245
        %1274 = vmatprep.subr.mxu0 0.0
        %1275 = vmatpush1.msra.mxu0 %v1246
        %1276 = vmatprep.subr.mxu0 0.0
        %1277 = vmatpush1.msra.mxu0 %v1247
        %1278 = vmatprep.subr.mxu0 0.0
        %1279 = vmatpush1.msra.mxu0 %v1248
        %1280 = vmatprep.subr.mxu0 0.0
        %1281 = vmatpush1.msra.mxu0 %v1249
        %1282 = vmatprep.subr.mxu0 0.0
        %1283 = vmatpush1.msra.mxu0 0.0
        %1284 = vmatprep.subr.mxu0 0.0
        %1285 = vmatpush1.msra.mxu0 0.0
        %1286 = vmatprep.subr.mxu0 0.0
        %1287 = vmatpush1.msra.mxu0 0.0
        %1288 = vmatprep.subr.mxu0 0.0
        %1289 = vmatpush1.msra.mxu0 0.0
        %1290 = vmatprep.subr.mxu0 0.0
        %1291 = vmatpush1.msra.mxu0 0.0
        %1292 = vmatprep.subr.mxu0 0.0
        %1293 = vmatpush1.msra.mxu0 0.0
        %1294 = vmatprep.subr.mxu0 0.0
        %1295 = vmatpush1.msra.mxu0 0.0
        %1296 = vmatprep.subr.mxu0 0.0
        %1297 = vmatpush1.msra.mxu0 0.0
        %1298 = vmatprep.subr.mxu0 0.0
        %1299 = vmatpush1.msra.mxu0 0.0
        %1300 = vmatprep.subr.mxu0 0.0
        %1301 = vmatpush1.msra.mxu0 0.0
        %1302 = vmatprep.subr.mxu0 0.0
        %1303 = vmatpush1.msra.mxu0 0.0
        %1304 = vmatprep.subr.mxu0 0.0
        %1305 = vmatpush1.msra.mxu0 0.0
        %1306 = vmatprep.subr.mxu0 0.0
        %1307 = vmatpush1.msra.mxu0 0.0
        %1308 = vmatprep.subr.mxu0 0.0
        %1309 = vmatpush1.msra.mxu0 0.0
        %1310 = vmatprep.subr.mxu0 0.0
        %1311 = vmatpush1.msra.mxu0 0.0
        %1312 = vmatprep.subr.mxu0 0.0
        %1313 = vmatpush1.msra.mxu0 0.0
        %1314 = vmatprep.mubr.f32.mxu0 0.0
        %1315 = vmatmul.mubr.f32.gmra.mrb[0].mxu0 %v283
        %v1316 = vpop.f32.mrb[0].mxu0
        %v1317 = vadd.f32 0.0, %v1316
        %v1318 = vpop.f32.mrb[0].mxu0
        %1319 = vmatprep.mubr.f32.mxu0 0.0
        %1320 = vmatmul.mubr.f32.gmra.mrb[0].mxu0 %v285
        %v1321 = vpop.f32.mrb[0].mxu0
        %v1322 = vadd.f32 0.0, %v1321
        %v1323 = vpop.f32.mrb[0].mxu0
        %1324 = vdwg.mxu0
        %v1325 = vadd.f32 %v1232, %v1317
        %v1326 = vadd.f32 %v1233, %v1322
        %v1327 = vld [vmem:[#allocation6 + $0x280] sm:$0xff]
        %v1328 = vld [vmem:[#allocation6 + $0x288] sm:$0xff]
        %v1329 = vld [vmem:[#allocation6 + $0x290] sm:$0xff]
        %v1330 = vld [vmem:[#allocation6 + $0x298] sm:$0xff]
        %v1331 = vld [vmem:[#allocation6 + $0x2a0] sm:$0xff]
        %v1332 = vld [vmem:[#allocation6 + $0x2a8] sm:$0xff]
        %v1333 = vld [vmem:[#allocation6 + $0x2b0] sm:$0xff]
        %v1334 = vld [vmem:[#allocation6 + $0x2b8] sm:$0xff]
        %v1335 = vld [vmem:[#allocation6 + $0x2c0] sm:$0xff]
        %v1336 = vld [vmem:[#allocation6 + $0x2c8] sm:$0xff]
        %v1337 = vld [vmem:[#allocation6 + $0x2d0] sm:$0xff]
        %v1338 = vld [vmem:[#allocation6 + $0x2d8] sm:$0xff]
        %v1339 = vld [vmem:[#allocation6 + $0x2e0] sm:$0xff]
        %v1340 = vld [vmem:[#allocation6 + $0x2e8] sm:$0xff]
        %v1341 = vld [vmem:[#allocation6 + $0x2f0] sm:$0xff]
        %v1342 = vld [vmem:[#allocation6 + $0x2f8] sm:$0xff]
        %1343 = vmatprep.subr.mxu0 0.0
        %1344 = vmatpush1.msra.mxu0 %v1327
        %1345 = vmatprep.subr.mxu0 0.0
        %1346 = vmatpush1.msra.mxu0 %v1328
        %1347 = vmatprep.subr.mxu0 0.0
        %1348 = vmatpush1.msra.mxu0 %v1329
        %1349 = vmatprep.subr.mxu0 0.0
        %1350 = vmatpush1.msra.mxu0 %v1330
        %1351 = vmatprep.subr.mxu0 0.0
        %1352 = vmatpush1.msra.mxu0 %v1331
        %1353 = vmatprep.subr.mxu0 0.0
        %1354 = vmatpush1.msra.mxu0 %v1332
        %1355 = vmatprep.subr.mxu0 0.0
        %1356 = vmatpush1.msra.mxu0 %v1333
        %1357 = vmatprep.subr.mxu0 0.0
        %1358 = vmatpush1.msra.mxu0 %v1334
        %1359 = vmatprep.subr.mxu0 0.0
        %1360 = vmatpush1.msra.mxu0 %v1335
        %1361 = vmatprep.subr.mxu0 0.0
        %1362 = vmatpush1.msra.mxu0 %v1336
        %1363 = vmatprep.subr.mxu0 0.0
        %1364 = vmatpush1.msra.mxu0 %v1337
        %1365 = vmatprep.subr.mxu0 0.0
        %1366 = vmatpush1.msra.mxu0 %v1338
        %1367 = vmatprep.subr.mxu0 0.0
        %1368 = vmatpush1.msra.mxu0 %v1339
        %1369 = vmatprep.subr.mxu0 0.0
        %1370 = vmatpush1.msra.mxu0 %v1340
        %1371 = vmatprep.subr.mxu0 0.0
        %1372 = vmatpush1.msra.mxu0 %v1341
        %1373 = vmatprep.subr.mxu0 0.0
        %1374 = vmatpush1.msra.mxu0 %v1342
        %1375 = vmatprep.subr.mxu0 0.0
        %1376 = vmatpush1.msra.mxu0 0.0
        %1377 = vmatprep.subr.mxu0 0.0
        %1378 = vmatpush1.msra.mxu0 0.0
        %1379 = vmatprep.subr.mxu0 0.0
        %1380 = vmatpush1.msra.mxu0 0.0
        %1381 = vmatprep.subr.mxu0 0.0
        %1382 = vmatpush1.msra.mxu0 0.0
        %1383 = vmatprep.subr.mxu0 0.0
        %1384 = vmatpush1.msra.mxu0 0.0
        %1385 = vmatprep.subr.mxu0 0.0
        %1386 = vmatpush1.msra.mxu0 0.0
        %1387 = vmatprep.subr.mxu0 0.0
        %1388 = vmatpush1.msra.mxu0 0.0
        %1389 = vmatprep.subr.mxu0 0.0
        %1390 = vmatpush1.msra.mxu0 0.0
        %1391 = vmatprep.subr.mxu0 0.0
        %1392 = vmatpush1.msra.mxu0 0.0
        %1393 = vmatprep.subr.mxu0 0.0
        %1394 = vmatpush1.msra.mxu0 0.0
        %1395 = vmatprep.subr.mxu0 0.0
        %1396 = vmatpush1.msra.mxu0 0.0
        %1397 = vmatprep.subr.mxu0 0.0
        %1398 = vmatpush1.msra.mxu0 0.0
        %1399 = vmatprep.subr.mxu0 0.0
        %1400 = vmatpush1.msra.mxu0 0.0
        %1401 = vmatprep.subr.mxu0 0.0
        %1402 = vmatpush1.msra.mxu0 0.0
        %1403 = vmatprep.subr.mxu0 0.0
        %1404 = vmatpush1.msra.mxu0 0.0
        %1405 = vmatprep.subr.mxu0 0.0
        %1406 = vmatpush1.msra.mxu0 0.0
        %1407 = vmatprep.mubr.f32.mxu0 0.0
        %1408 = vmatmul.mubr.f32.gmra.mrb[0].mxu0 %v287
        %v1409 = vpop.f32.mrb[0].mxu0
        %v1410 = vadd.f32 0.0, %v1409
        %v1411 = vpop.f32.mrb[0].mxu0
        %1412 = vmatprep.mubr.f32.mxu0 0.0
        %1413 = vmatmul.mubr.f32.gmra.mrb[0].mxu0 %v289
        %v1414 = vpop.f32.mrb[0].mxu0
        %v1415 = vadd.f32 0.0, %v1414
        %v1416 = vpop.f32.mrb[0].mxu0
        %1417 = vdwg.mxu0
        %v1418 = vadd.f32 %v1325, %v1410
        %v1419 = vadd.f32 %v1326, %v1415
        %v1420 = vld [vmem:[#allocation7] sm:$0x1]
        %v1422 = vlaneseq
        %v1423 = vshrl.u32 %v1422, 7
        %v1424 = vsub.s32 0, %v1423
        %v1425 = vrot.slane %v1420, %v1424
        %v1427 = vadd.f32 %v1418, %v1425
        %v1428 = vadd.f32 %v1419, %v1425
        %v1429 = vmax.f32 %v1427, 0.0
        %v1430 = vmax.f32 %v1428, 0.0
        %1431 = vst [vmem:[%s281] sm:$0xff] %v1429
        %1432 = vst [vmem:[%s281 + $0x8] sm:$0xff] %v1430
        %s1433 = smul.u32 2, %s19
        %p1434 = scmp.lt.s32.totalorder %s1433, 3
        %s1435 = scalar_select %p1434, %s1433, 3
        %s1436 = smul.addr %s1435, 8
        %s1437 = scalar_lea.vmem %s5, %s1436
        // Predicated region
        $region57: #{residual_cnn_pallas.2} parent=39 // pred_check
          %p1438 = pneg %p147
        $region58: #{residual_cnn_pallas.2} parent=39 // pred_check_branch
          %1440 = sbr.rel (%p1438) target = $region60
        $region59: #{residual_cnn_pallas.2} parent=39 // pred_region
          %s1441 = smul.u32 2, %s19
        $region60: #{residual_cnn_pallas.2} parent=39 // pred_fallthru
          _
      $region40: #{residual_cnn_pallas.2} parent=5 // pred_fallthru
        _
      %p1442 = scmp.le.s32.totalorder 2, %s14
      // Predicated region
      $region61: #{residual_cnn_pallas.2} parent=5 // pred_check
        %p1443 = pneg %p1442
      $region62: #{residual_cnn_pallas.2} parent=5 // pred_check_branch
        %1445 = sbr.rel (%p1443) target = $region64
      $region63: #{residual_cnn_pallas.2} parent=5 // pred_region
        %s1446 = ssub.s32 %s14, 2
        // Predicated region
        $region65: #{residual_cnn_pallas.2} parent=63 // pred_check
          %p1447 = pneg %p153
        $region66: #{residual_cnn_pallas.2} parent=63 // pred_check_branch
          %1449 = sbr.rel (%p1447) target = $region68
        $region67: #{residual_cnn_pallas.2} parent=63 // pred_region
          %s1450 = smul.u32 2, %s20
          %p1451 = scmp.lt.s32.totalorder %s1450, 3
          %s1452 = scalar_select %p1451, %s1450, 3
          %s1453 = smul.addr %s1452, 8
          %s1454 = scalar_lea.vmem %s5, %s1453
        $region68: #{residual_cnn_pallas.2} parent=63 // pred_fallthru
          _
      $region64: #{residual_cnn_pallas.2} parent=5 // pred_fallthru
        _
    $region6: #{residual_cnn_pallas.2} parent=1 // loop_footer
      %s18 = sadd.s32 1, %s14
    $region7: #{residual_cnn_pallas.2} parent=1 // loop_footer_branch
      %13 = sbr.rel target = $region3
    $region8: #{residual_cnn_pallas.2} parent=1 // loop_exit
      _
    %1455 = vsyncpa [#allocation3], 1
    %s1456 = scalar_lea.sflag [#allocation3], 1
    %1457 = vsyncpa %s1456, 1
    %1458 = vsyncpa [#allocation5], 1
    %1459 = vsyncpa [#allocation8], 1

// kernel: residual_cnn_pallas.3
$region0: #{residual_cnn_pallas.3}
  #allocation0 [shape = 'u32[]', space=smem, size = 0x4, offset = 0x4, fixed_abs, tag = 'smem constant byte address 0x4 - core index']
  #allocation1 [shape = 'u32[144,128]{1,0:T(1,128)}', space=vmem, size = 0x12000, scoped, tag = 'internal scratch']
  %s0 = inlined_call_operand.vmem [shape: f32[32,128], index: 0, kind: input, shape index: {}]
  %s1 = inlined_call_operand.vmem [shape: f32[384,128], index: 1, kind: input, shape index: {}]
  %s2 = inlined_call_operand.vmem [shape: f32[1,128], index: 2, kind: input, shape index: {}]
  %s3 = inlined_call_operand.vmem [shape: f32[768,128], index: 3, kind: input, shape index: {}]
  %s4 = inlined_call_operand.vmem [shape: f32[1,128], index: 4, kind: input, shape index: {}]
  %s5 = inlined_call_operand.vmem [shape: f32[16,128], index: 5, kind: output, shape index: {}]
  %s6 = sld [smem:[#allocation0]]
  $region53: #{residual_cnn_pallas.3} parent=0
    _
  %s8 = ssub.s32 1, %s6
  %s9 = scalar_select 0, %s8, %s6
  loop: start=0, step=1, limit=4
  $region2: #{residual_cnn_pallas.3} parent=0 // loop_pre_header
    _
  $region3: #{residual_cnn_pallas.3} parent=0 // loop_header
    %s11 = sphi 0, %s15
    %p12 = scmp.ge.s32.totalorder %s11, 4
    %s21 = sphi 0, %s23
    %s24 = sphi 0, %s21
    %s25 = sphi 0, %s24
    %s41 = sphi 0, %s25
    %s45 = sphi 0, %s45
    %s47 = sphi 0, %s45
    %s48 = sphi 0, %s47
    %s62 = sphi 0, %s48
    %s66 = sphi 0, %s66
    %s68 = sphi 0, %s66
    %s69 = sphi 0, %s68
    %s83 = sphi 0, %s69
    %s87 = sphi 0, %s87
    %s89 = sphi 0, %s87
    %s90 = sphi 0, %s89
    %s104 = sphi 0, %s90
    %s108 = sphi 0, %s108
    %s110 = sphi 0, %s108
    %s111 = sphi 0, %s110
    %s125 = sphi 0, %s111
    %s131 = sphi 0, %s133
    %s134 = sphi 0, %s131
    %s135 = sphi 0, %s134
    %s151 = sphi 0, %s135
  $region4: #{residual_cnn_pallas.3} parent=0 // loop_header_branch
    %14 = sbr.rel (%p12) target = $region8
  $region5: #{residual_cnn_pallas.3} parent=0 // loop_body
    %s16 = ssub.s32 %s11, 1
    %s17 = ssub.s32 %s11, 2
    %s18 = sadd.s32 %s11, 1
    %s19 = ssub.s32 %s11, %s18
    %p20 = scmp.eq.s32.totalorder %s19, 0
    %s22 = sadd.s32 %s21, 1
    %s23 = scalar_select %p20, %s21, %s22
    %p26 = pneg %p20
    %p27 = scmp.eq.s32.totalorder %s11, 1
    %p28 = por %p26, %p27
    %p29 = scmp.ne.s32.totalorder %s21, %s24
    %p30 = scmp.eq.s32.totalorder %s11, 0
    %p31 = por %p29, %p30
    %p32 = scmp.ne.s32.totalorder %s21, %s24
    %p33 = scmp.eq.s32.totalorder %s16, 1
    %p34 = por %p32, %p33
    %p35 = scmp.ne.s32.totalorder %s24, %s25
    %p36 = scmp.eq.s32.totalorder %s16, 0
    %p37 = por %p35, %p36
    %p38 = scmp.ne.s32.totalorder %s24, %s25
    %p39 = scmp.eq.s32.totalorder %s17, 1
    %p40 = por %p38, %p39
    %p42 = scmp.ne.s32.totalorder %s25, %s41
    %p43 = scmp.eq.s32.totalorder %s17, 0
    %p44 = por %p42, %p43
    %s46 = sadd.s32 %s45, 1
    %p49 = scmp.eq.s32.totalorder %s11, 1
    %p50 = scmp.ne.s32.totalorder %s45, %s47
    %p51 = scmp.eq.s32.totalorder %s11, 0
    %p52 = por %p50, %p51
    %p53 = scmp.ne.s32.totalorder %s45, %s47
    %p54 = scmp.eq.s32.totalorder %s16, 1
    %p55 = por %p53, %p54
    %p56 = scmp.ne.s32.totalorder %s47, %s48
    %p57 = scmp.eq.s32.totalorder %s16, 0
    %p58 = por %p56, %p57
    %p59 = scmp.ne.s32.totalorder %s47, %s48
    %p60 = scmp.eq.s32.totalorder %s17, 1
    %p61 = por %p59, %p60
    %p63 = scmp.ne.s32.totalorder %s48, %s62
    %p64 = scmp.eq.s32.totalorder %s17, 0
    %p65 = por %p63, %p64
    %s67 = sadd.s32 %s66, 1
    %p70 = scmp.eq.s32.totalorder %s11, 1
    %p71 = scmp.ne.s32.totalorder %s66, %s68
    %p72 = scmp.eq.s32.totalorder %s11, 0
    %p73 = por %p71, %p72
    %p74 = scmp.ne.s32.totalorder %s66, %s68
    %p75 = scmp.eq.s32.totalorder %s16, 1
    %p76 = por %p74, %p75
    %p77 = scmp.ne.s32.totalorder %s68, %s69
    %p78 = scmp.eq.s32.totalorder %s16, 0
    %p79 = por %p77, %p78
    %p80 = scmp.ne.s32.totalorder %s68, %s69
    %p81 = scmp.eq.s32.totalorder %s17, 1
    %p82 = por %p80, %p81
    %p84 = scmp.ne.s32.totalorder %s69, %s83
    %p85 = scmp.eq.s32.totalorder %s17, 0
    %p86 = por %p84, %p85
    %s88 = sadd.s32 %s87, 1
    %p91 = scmp.eq.s32.totalorder %s11, 1
    %p92 = scmp.ne.s32.totalorder %s87, %s89
    %p93 = scmp.eq.s32.totalorder %s11, 0
    %p94 = por %p92, %p93
    %p95 = scmp.ne.s32.totalorder %s87, %s89
    %p96 = scmp.eq.s32.totalorder %s16, 1
    %p97 = por %p95, %p96
    %p98 = scmp.ne.s32.totalorder %s89, %s90
    %p99 = scmp.eq.s32.totalorder %s16, 0
    %p100 = por %p98, %p99
    %p101 = scmp.ne.s32.totalorder %s89, %s90
    %p102 = scmp.eq.s32.totalorder %s17, 1
    %p103 = por %p101, %p102
    %p105 = scmp.ne.s32.totalorder %s90, %s104
    %p106 = scmp.eq.s32.totalorder %s17, 0
    %p107 = por %p105, %p106
    %s109 = sadd.s32 %s108, 1
    %p112 = scmp.eq.s32.totalorder %s11, 1
    %p113 = scmp.ne.s32.totalorder %s108, %s110
    %p114 = scmp.eq.s32.totalorder %s11, 0
    %p115 = por %p113, %p114
    %p116 = scmp.ne.s32.totalorder %s108, %s110
    %p117 = scmp.eq.s32.totalorder %s16, 1
    %p118 = por %p116, %p117
    %p119 = scmp.ne.s32.totalorder %s110, %s111
    %p120 = scmp.eq.s32.totalorder %s16, 0
    %p121 = por %p119, %p120
    %p122 = scmp.ne.s32.totalorder %s110, %s111
    %p123 = scmp.eq.s32.totalorder %s17, 1
    %p124 = por %p122, %p123
    %p126 = scmp.ne.s32.totalorder %s111, %s125
    %p127 = scmp.eq.s32.totalorder %s17, 0
    %p128 = por %p126, %p127
    %s129 = ssub.s32 %s11, %s18
    %p130 = scmp.eq.s32.totalorder %s129, 0
    %s132 = sadd.s32 %s131, 1
    %s133 = scalar_select %p130, %s131, %s132
    %p136 = pneg %p130
    %p137 = scmp.eq.s32.totalorder %s11, 1
    %p138 = por %p136, %p137
    %p139 = scmp.ne.s32.totalorder %s131, %s134
    %p140 = scmp.eq.s32.totalorder %s11, 0
    %p141 = por %p139, %p140
    %p142 = scmp.ne.s32.totalorder %s131, %s134
    %p143 = scmp.eq.s32.totalorder %s16, 1
    %p144 = por %p142, %p143
    %p145 = scmp.ne.s32.totalorder %s134, %s135
    %p146 = scmp.eq.s32.totalorder %s16, 0
    %p147 = por %p145, %p146
    %p148 = scmp.ne.s32.totalorder %s134, %s135
    %p149 = scmp.eq.s32.totalorder %s17, 1
    %p150 = por %p148, %p149
    %p152 = scmp.ne.s32.totalorder %s135, %s151
    %p153 = scmp.eq.s32.totalorder %s17, 0
    %p154 = por %p152, %p153
    %p155 = scmp.le.s32.totalorder 1, %s11
    %p156 = scmp.lt.s32.totalorder %s11, 3
    %p157 = pnand %p155, %p156
    %p158 = pneg %p157
    // Predicated region
    $region9: #{residual_cnn_pallas.3} parent=5 // pred_check
      _
    $region10: #{residual_cnn_pallas.3} parent=5 // pred_check_branch
      %160 = sbr.rel (%p157) target = $region12
    $region11: #{residual_cnn_pallas.3} parent=5 // pred_region
      %s161 = ssub.s32 %s11, 1
      // Predicated region
      $region13: #{residual_cnn_pallas.3} parent=11 // pred_check
        %p162 = pneg %p58
      $region14: #{residual_cnn_pallas.3} parent=11 // pred_check_branch
        %164 = sbr.rel (%p162) target = $region16
      $region15: #{residual_cnn_pallas.3} parent=11 // pred_region
        _
      $region16: #{residual_cnn_pallas.3} parent=11 // pred_fallthru
        _
      // Predicated region
      $region17: #{residual_cnn_pallas.3} parent=11 // pred_check
        %p165 = pneg %p79
      $region18: #{residual_cnn_pallas.3} parent=11 // pred_check_branch
        %167 = sbr.rel (%p165) target = $region20
      $region19: #{residual_cnn_pallas.3} parent=11 // pred_region
        _
      $region20: #{residual_cnn_pallas.3} parent=11 // pred_fallthru
        _
      // Predicated region
      $region21: #{residual_cnn_pallas.3} parent=11 // pred_check
        %p168 = pneg %p100
      $region22: #{residual_cnn_pallas.3} parent=11 // pred_check_branch
        %170 = sbr.rel (%p168) target = $region24
      $region23: #{residual_cnn_pallas.3} parent=11 // pred_region
        _
      $region24: #{residual_cnn_pallas.3} parent=11 // pred_fallthru
        _
      // Predicated region
      $region25: #{residual_cnn_pallas.3} parent=11 // pred_check
        %p171 = pneg %p121
      $region26: #{residual_cnn_pallas.3} parent=11 // pred_check_branch
        %173 = sbr.rel (%p171) target = $region28
      $region27: #{residual_cnn_pallas.3} parent=11 // pred_region
        _
      $region28: #{residual_cnn_pallas.3} parent=11 // pred_fallthru
        _
    $region12: #{residual_cnn_pallas.3} parent=5 // pred_fallthru
      _
    %p174 = scmp.lt.s32.totalorder %s11, 2
    // Predicated region
    $region29: #{residual_cnn_pallas.3} parent=5 // pred_check
      %p175 = pneg %p174
    $region30: #{residual_cnn_pallas.3} parent=5 // pred_check_branch
      %177 = sbr.rel (%p175) target = $region32
    $region31: #{residual_cnn_pallas.3} parent=5 // pred_region
      // Predicated region
      $region33: #{residual_cnn_pallas.3} parent=31 // pred_check
        %p178 = pneg %p31
      $region34: #{residual_cnn_pallas.3} parent=31 // pred_check_branch
        %180 = sbr.rel (%p178) target = $region36
      $region35: #{residual_cnn_pallas.3} parent=31 // pred_region
        %s181 = smul.u32 2, %s11
        %p182 = scmp.lt.s32.totalorder %s181, 3
        %s183 = scalar_select %p182, %s181, 3
        %s184 = smul.addr %s183, 8
        %s185 = scalar_lea.vmem %s0, %s184
        %s186 = smul.u32 2, %s11
      $region36: #{residual_cnn_pallas.3} parent=31 // pred_fallthru
        _
    $region32: #{residual_cnn_pallas.3} parent=5 // pred_fallthru
      _
    %p187 = scmp.le.s32.totalorder 1, %s11
    %p188 = scmp.lt.s32.totalorder %s11, 3
    %p189 = pnand %p187, %p188
    %p190 = pneg %p189
    // Predicated region
    $region37: #{residual_cnn_pallas.3} parent=5 // pred_check
      _
    $region38: #{residual_cnn_pallas.3} parent=5 // pred_check_branch
      %192 = sbr.rel (%p189) target = $region40
    $region39: #{residual_cnn_pallas.3} parent=5 // pred_region
      %s193 = ssub.s32 %s11, 1
      %s194 = smul.u32 2, %s16
      %p195 = scmp.lt.s32.totalorder %s194, 3
      %s196 = scalar_select %p195, %s194, 3
      %s197 = smul.addr %s196, 8
      %s198 = scalar_lea.vmem %s0, %s197
      %p199 = pneg %p37
      %p200 = pneg %p34
      %p201 = pneg %p58
      %p202 = pneg %p55
      %p203 = pneg %p79
      %p204 = pneg %p76
      %p205 = pneg %p100
      %p206 = pneg %p97
      %p207 = pneg %p121
      %p208 = pneg %p118
      %p209 = pneg %p147
      %p210 = pneg %p144
      %p211 = scmp.lt.s32.totalorder %s16, 1
      %s212 = scalar_select %p211, %s16, 1
      %s213 = smul.addr %s212, 8
      %s214 = scalar_lea.vmem %s5, %s213
      %s215 = smul.u32 2, %s16
      %p216 = scmp.lt.s32.totalorder %s215, 3
      %s217 = scalar_select %p216, %s215, 3
      %s218 = smul.addr %s217, 8
      %s219 = scalar_lea.vmem %s0, %s218
      %s220 = smul.u32 2, %s16
      %p221 = scmp.lt.s32.totalorder %s16, 1
      %s222 = scalar_select %p221, %s16, 1
      %s223 = smul.addr %s222, 8
      %s224 = scalar_lea.vmem %s5, %s223
      %v225 = vld [vmem:[%s219] ss:$2 sm:$0xff]
      %s226 = scalar_lea.vmem %s219, 1
      %v227 = vld [vmem:[%s226] ss:$2 sm:$0xff]
      %v228 = vlaneseq
      %v229 = vshrl.u32 %v228, 7
      %vm230 = vcmp.lt.s32.totalorder %v229, 0
      %v231 = vsub.s32 0, %v229
      %v232 = vsel %vm230, %v231, %v229
      %v233 = vshrl.u32 %v232, 2
      %v234 = vand.u32 %v232, 3
      %v235 = vsub.s32 0, %v234
      %v236 = vsel %vm230, %v235, %v234
      %vm237 = vcmp.ne.s32.totalorder %v236, 0
      %vm238 = vcmp.lt.s32.totalorder %v236, 0
      %vm239 = vmand %vm238, %vm237
      %v240 = vadd.s32 %v236, 4
      %v241 = vsel %vm239, %v240, %v236
      %vm242 = vcmp.eq.s32.totalorder %v241, 0
      %v243 = vrot.slane %v227, 7
      %v244 = vsel %vm242, 1, 0
      %vm245 = vcmp.eq.s32.totalorder %v244, 1
      %v246 = vsel %vm245, 0.0, %v243
      %vm247 = vcmp.eq.s32.totalorder %v241, 3
      %v248 = vrot.slane %v225, 1
      %v249 = vsel %vm247, 1, 0
      %vm250 = vcmp.eq.s32.totalorder %v249, 1
      %v251 = vsel %vm250, 0.0, %v248
      %v252 = vld [vmem:[%s1] sm:$0xff]
      %v253 = vld [vmem:[%s1 + $0x8] sm:$0xff]
      %v254 = vld [vmem:[%s1 + $0x10] sm:$0xff]
      %v255 = vld [vmem:[%s1 + $0x18] sm:$0xff]
      %v256 = vld [vmem:[%s1 + $0x20] sm:$0xff]
      %v257 = vld [vmem:[%s1 + $0x28] sm:$0xff]
      %v258 = vld [vmem:[%s1 + $0x30] sm:$0xff]
      %v259 = vld [vmem:[%s1 + $0x38] sm:$0xff]
      %v260 = vld [vmem:[%s1 + $0x40] sm:$0xff]
      %v261 = vld [vmem:[%s1 + $0x48] sm:$0xff]
      %v262 = vld [vmem:[%s1 + $0x50] sm:$0xff]
      %v263 = vld [vmem:[%s1 + $0x58] sm:$0xff]
      %v264 = vld [vmem:[%s1 + $0x60] sm:$0xff]
      %v265 = vld [vmem:[%s1 + $0x68] sm:$0xff]
      %v266 = vld [vmem:[%s1 + $0x70] sm:$0xff]
      %v267 = vld [vmem:[%s1 + $0x78] sm:$0xff]
      %v268 = vld [vmem:[%s1 + $0x80] sm:$0xff]
      %v269 = vld [vmem:[%s1 + $0x88] sm:$0xff]
      %v270 = vld [vmem:[%s1 + $0x90] sm:$0xff]
      %v271 = vld [vmem:[%s1 + $0x98] sm:$0xff]
      %v272 = vld [vmem:[%s1 + $0xa0] sm:$0xff]
      %v273 = vld [vmem:[%s1 + $0xa8] sm:$0xff]
      %v274 = vld [vmem:[%s1 + $0xb0] sm:$0xff]
      %v275 = vld [vmem:[%s1 + $0xb8] sm:$0xff]
      %v276 = vld [vmem:[%s1 + $0xc0] sm:$0xff]
      %v277 = vld [vmem:[%s1 + $0xc8] sm:$0xff]
      %v278 = vld [vmem:[%s1 + $0xd0] sm:$0xff]
      %v279 = vld [vmem:[%s1 + $0xd8] sm:$0xff]
      %v280 = vld [vmem:[%s1 + $0xe0] sm:$0xff]
      %v281 = vld [vmem:[%s1 + $0xe8] sm:$0xff]
      %v282 = vld [vmem:[%s1 + $0xf0] sm:$0xff]
      %v283 = vld [vmem:[%s1 + $0xf8] sm:$0xff]
      %284 = vmatprep.subr.mxu0 0.0
      %285 = vmatpush1.msra.mxu0 %v268
      %286 = vmatprep.subr.mxu0 0.0
      %287 = vmatpush1.msra.mxu0 %v269
      %288 = vmatprep.subr.mxu0 0.0
      %289 = vmatpush1.msra.mxu0 %v270
      %290 = vmatprep.subr.mxu0 0.0
      %291 = vmatpush1.msra.mxu0 %v271
      %292 = vmatprep.subr.mxu0 0.0
      %293 = vmatpush1.msra.mxu0 %v272
      %294 = vmatprep.subr.mxu0 0.0
      %295 = vmatpush1.msra.mxu0 %v273
      %296 = vmatprep.subr.mxu0 0.0
      %297 = vmatpush1.msra.mxu0 %v274
      %298 = vmatprep.subr.mxu0 0.0
      %299 = vmatpush1.msra.mxu0 %v275
      %300 = vmatprep.subr.mxu0 0.0
      %301 = vmatpush1.msra.mxu0 %v276
      %302 = vmatprep.subr.mxu0 0.0
      %303 = vmatpush1.msra.mxu0 %v277
      %304 = vmatprep.subr.mxu0 0.0
      %305 = vmatpush1.msra.mxu0 %v278
      %306 = vmatprep.subr.mxu0 0.0
      %307 = vmatpush1.msra.mxu0 %v279
      %308 = vmatprep.subr.mxu0 0.0
      %309 = vmatpush1.msra.mxu0 %v280
      %310 = vmatprep.subr.mxu0 0.0
      %311 = vmatpush1.msra.mxu0 %v281
      %312 = vmatprep.subr.mxu0 0.0
      %313 = vmatpush1.msra.mxu0 %v282
      %314 = vmatprep.subr.mxu0 0.0
      %315 = vmatpush1.msra.mxu0 %v283
      %316 = vmatprep.subr.mxu0 0.0
      %317 = vmatpush1.msra.mxu0 0.0
      %318 = vmatprep.subr.mxu0 0.0
      %319 = vmatpush1.msra.mxu0 0.0
      %320 = vmatprep.subr.mxu0 0.0
      %321 = vmatpush1.msra.mxu0 0.0
      %322 = vmatprep.subr.mxu0 0.0
      %323 = vmatpush1.msra.mxu0 0.0
      %324 = vmatprep.subr.mxu0 0.0
      %325 = vmatpush1.msra.mxu0 0.0
      %326 = vmatprep.subr.mxu0 0.0
      %327 = vmatpush1.msra.mxu0 0.0
      %328 = vmatprep.subr.mxu0 0.0
      %329 = vmatpush1.msra.mxu0 0.0
      %330 = vmatprep.subr.mxu0 0.0
      %331 = vmatpush1.msra.mxu0 0.0
      %332 = vmatprep.subr.mxu0 0.0
      %333 = vmatpush1.msra.mxu0 0.0
      %334 = vmatprep.subr.mxu0 0.0
      %335 = vmatpush1.msra.mxu0 0.0
      %336 = vmatprep.subr.mxu0 0.0
      %337 = vmatpush1.msra.mxu0 0.0
      %338 = vmatprep.subr.mxu0 0.0
      %339 = vmatpush1.msra.mxu0 0.0
      %340 = vmatprep.subr.mxu0 0.0
      %341 = vmatpush1.msra.mxu0 0.0
      %342 = vmatprep.subr.mxu0 0.0
      %343 = vmatpush1.msra.mxu0 0.0
      %344 = vmatprep.subr.mxu0 0.0
      %345 = vmatpush1.msra.mxu0 0.0
      %346 = vmatprep.subr.mxu0 0.0
      %347 = vmatpush1.msra.mxu0 0.0
      %348 = vmatprep.mubr.f32.mxu0 0.0
      %349 = vmatmul.mubr.f32.gmra.mrb[0].mxu0 %v225
      %v350 = vpop.f32.mrb[0].mxu0
      %v351 = vadd.f32 0.0, %v350
      %v352 = vpop.f32.mrb[0].mxu0
      %353 = vdwg.mxu0
      %354 = vmatprep.subr.mxu0 0.0
      %355 = vmatpush1.msra.mxu0 %v252
      %356 = vmatprep.subr.mxu0 0.0
      %357 = vmatpush1.msra.mxu0 %v253
      %358 = vmatprep.subr.mxu0 0.0
      %359 = vmatpush1.msra.mxu0 %v254
      %360 = vmatprep.subr.mxu0 0.0
      %361 = vmatpush1.msra.mxu0 %v255
      %362 = vmatprep.subr.mxu0 0.0
      %363 = vmatpush1.msra.mxu0 %v256
      %364 = vmatprep.subr.mxu0 0.0
      %365 = vmatpush1.msra.mxu0 %v257
      %366 = vmatprep.subr.mxu0 0.0
      %367 = vmatpush1.msra.mxu0 %v258
      %368 = vmatprep.subr.mxu0 0.0
      %369 = vmatpush1.msra.mxu0 %v259
      %370 = vmatprep.subr.mxu0 0.0
      %371 = vmatpush1.msra.mxu0 %v260
      %372 = vmatprep.subr.mxu0 0.0
      %373 = vmatpush1.msra.mxu0 %v261
      %374 = vmatprep.subr.mxu0 0.0
      %375 = vmatpush1.msra.mxu0 %v262
      %376 = vmatprep.subr.mxu0 0.0
      %377 = vmatpush1.msra.mxu0 %v263
      %378 = vmatprep.subr.mxu0 0.0
      %379 = vmatpush1.msra.mxu0 %v264
      %380 = vmatprep.subr.mxu0 0.0
      %381 = vmatpush1.msra.mxu0 %v265
      %382 = vmatprep.subr.mxu0 0.0
      %383 = vmatpush1.msra.mxu0 %v266
      %384 = vmatprep.subr.mxu0 0.0
      %385 = vmatpush1.msra.mxu0 %v267
      %386 = vmatprep.subr.mxu0 0.0
      %387 = vmatpush1.msra.mxu0 0.0
      %388 = vmatprep.subr.mxu0 0.0
      %389 = vmatpush1.msra.mxu0 0.0
      %390 = vmatprep.subr.mxu0 0.0
      %391 = vmatpush1.msra.mxu0 0.0
      %392 = vmatprep.subr.mxu0 0.0
      %393 = vmatpush1.msra.mxu0 0.0
      %394 = vmatprep.subr.mxu0 0.0
      %395 = vmatpush1.msra.mxu0 0.0
      %396 = vmatprep.subr.mxu0 0.0
      %397 = vmatpush1.msra.mxu0 0.0
      %398 = vmatprep.subr.mxu0 0.0
      %399 = vmatpush1.msra.mxu0 0.0
      %400 = vmatprep.subr.mxu0 0.0
      %401 = vmatpush1.msra.mxu0 0.0
      %402 = vmatprep.subr.mxu0 0.0
      %403 = vmatpush1.msra.mxu0 0.0
      %404 = vmatprep.subr.mxu0 0.0
      %405 = vmatpush1.msra.mxu0 0.0
      %406 = vmatprep.subr.mxu0 0.0
      %407 = vmatpush1.msra.mxu0 0.0
      %408 = vmatprep.subr.mxu0 0.0
      %409 = vmatpush1.msra.mxu0 0.0
      %410 = vmatprep.subr.mxu0 0.0
      %411 = vmatpush1.msra.mxu0 0.0
      %412 = vmatprep.subr.mxu0 0.0
      %413 = vmatpush1.msra.mxu0 0.0
      %414 = vmatprep.subr.mxu0 0.0
      %415 = vmatpush1.msra.mxu0 0.0
      %416 = vmatprep.subr.mxu0 0.0
      %417 = vmatpush1.msra.mxu0 0.0
      %418 = vmatprep.mubr.f32.mxu0 0.0
      %419 = vmatmul.mubr.f32.gmra.mrb[0].mxu0 %v246
      %v420 = vpop.f32.mrb[0].mxu0
      %v421 = vadd.f32 %v351, %v420
      %v422 = vpop.f32.mrb[0].mxu0
      %423 = vdwg.mxu0
      %v424 = vld [vmem:[%s1 + $0x100] sm:$0xff]
      %v425 = vld [vmem:[%s1 + $0x108] sm:$0xff]
      %v426 = vld [vmem:[%s1 + $0x110] sm:$0xff]
      %v427 = vld [vmem:[%s1 + $0x118] sm:$0xff]
      %v428 = vld [vmem:[%s1 + $0x120] sm:$0xff]
      %v429 = vld [vmem:[%s1 + $0x128] sm:$0xff]
      %v430 = vld [vmem:[%s1 + $0x130] sm:$0xff]
      %v431 = vld [vmem:[%s1 + $0x138] sm:$0xff]
      %v432 = vld [vmem:[%s1 + $0x140] sm:$0xff]
      %v433 = vld [vmem:[%s1 + $0x148] sm:$0xff]
      %v434 = vld [vmem:[%s1 + $0x150] sm:$0xff]
      %v435 = vld [vmem:[%s1 + $0x158] sm:$0xff]
      %v436 = vld [vmem:[%s1 + $0x160] sm:$0xff]
      %v437 = vld [vmem:[%s1 + $0x168] sm:$0xff]
      %v438 = vld [vmem:[%s1 + $0x170] sm:$0xff]
      %v439 = vld [vmem:[%s1 + $0x178] sm:$0xff]
      %440 = vmatprep.subr.mxu0 0.0
      %441 = vmatpush1.msra.mxu0 %v424
      %442 = vmatprep.subr.mxu0 0.0
      %443 = vmatpush1.msra.mxu0 %v425
      %444 = vmatprep.subr.mxu0 0.0
      %445 = vmatpush1.msra.mxu0 %v426
      %446 = vmatprep.subr.mxu0 0.0
      %447 = vmatpush1.msra.mxu0 %v427
      %448 = vmatprep.subr.mxu0 0.0
      %449 = vmatpush1.msra.mxu0 %v428
      %450 = vmatprep.subr.mxu0 0.0
      %451 = vmatpush1.msra.mxu0 %v429
      %452 = vmatprep.subr.mxu0 0.0
      %453 = vmatpush1.msra.mxu0 %v430
      %454 = vmatprep.subr.mxu0 0.0
      %455 = vmatpush1.msra.mxu0 %v431
      %456 = vmatprep.subr.mxu0 0.0
      %457 = vmatpush1.msra.mxu0 %v432
      %458 = vmatprep.subr.mxu0 0.0
      %459 = vmatpush1.msra.mxu0 %v433
      %460 = vmatprep.subr.mxu0 0.0
      %461 = vmatpush1.msra.mxu0 %v434
      %462 = vmatprep.subr.mxu0 0.0
      %463 = vmatpush1.msra.mxu0 %v435
      %464 = vmatprep.subr.mxu0 0.0
      %465 = vmatpush1.msra.mxu0 %v436
      %466 = vmatprep.subr.mxu0 0.0
      %467 = vmatpush1.msra.mxu0 %v437
      %468 = vmatprep.subr.mxu0 0.0
      %469 = vmatpush1.msra.mxu0 %v438
      %470 = vmatprep.subr.mxu0 0.0
      %471 = vmatpush1.msra.mxu0 %v439
      %472 = vmatprep.subr.mxu0 0.0
      %473 = vmatpush1.msra.mxu0 0.0
      %474 = vmatprep.subr.mxu0 0.0
      %475 = vmatpush1.msra.mxu0 0.0
      %476 = vmatprep.subr.mxu0 0.0
      %477 = vmatpush1.msra.mxu0 0.0
      %478 = vmatprep.subr.mxu0 0.0
      %479 = vmatpush1.msra.mxu0 0.0
      %480 = vmatprep.subr.mxu0 0.0
      %481 = vmatpush1.msra.mxu0 0.0
      %482 = vmatprep.subr.mxu0 0.0
      %483 = vmatpush1.msra.mxu0 0.0
      %484 = vmatprep.subr.mxu0 0.0
      %485 = vmatpush1.msra.mxu0 0.0
      %486 = vmatprep.subr.mxu0 0.0
      %487 = vmatpush1.msra.mxu0 0.0
      %488 = vmatprep.subr.mxu0 0.0
      %489 = vmatpush1.msra.mxu0 0.0
      %490 = vmatprep.subr.mxu0 0.0
      %491 = vmatpush1.msra.mxu0 0.0
      %492 = vmatprep.subr.mxu0 0.0
      %493 = vmatpush1.msra.mxu0 0.0
      %494 = vmatprep.subr.mxu0 0.0
      %495 = vmatpush1.msra.mxu0 0.0
      %496 = vmatprep.subr.mxu0 0.0
      %497 = vmatpush1.msra.mxu0 0.0
      %498 = vmatprep.subr.mxu0 0.0
      %499 = vmatpush1.msra.mxu0 0.0
      %500 = vmatprep.subr.mxu0 0.0
      %501 = vmatpush1.msra.mxu0 0.0
      %502 = vmatprep.subr.mxu0 0.0
      %503 = vmatpush1.msra.mxu0 0.0
      %504 = vmatprep.mubr.f32.mxu0 0.0
      %505 = vmatmul.mubr.f32.gmra.mrb[0].mxu0 %v227
      %v506 = vpop.f32.mrb[0].mxu0
      %v507 = vadd.f32 0.0, %v506
      %v508 = vpop.f32.mrb[0].mxu0
      %509 = vdwg.mxu0
      %v510 = vadd.f32 %v421, %v507
      %v511 = vld [vmem:[%s2] sm:$0x1]
      %v513 = vlaneseq
      %v514 = vshrl.u32 %v513, 7
      %v515 = vsub.s32 0, %v514
      %v516 = vrot.slane %v511, %v515
      %v518 = vadd.f32 %v510, %v516
      %v519 = vmax.f32 %v518, 0.0
      %520 = vmatprep.subr.mxu0 0.0
      %521 = vmatpush1.msra.mxu0 %v268
      %522 = vmatprep.subr.mxu0 0.0
      %523 = vmatpush1.msra.mxu0 %v269
      %524 = vmatprep.subr.mxu0 0.0
      %525 = vmatpush1.msra.mxu0 %v270
      %526 = vmatprep.subr.mxu0 0.0
      %527 = vmatpush1.msra.mxu0 %v271
      %528 = vmatprep.subr.mxu0 0.0
      %529 = vmatpush1.msra.mxu0 %v272
      %530 = vmatprep.subr.mxu0 0.0
      %531 = vmatpush1.msra.mxu0 %v273
      %532 = vmatprep.subr.mxu0 0.0
      %533 = vmatpush1.msra.mxu0 %v274
      %534 = vmatprep.subr.mxu0 0.0
      %535 = vmatpush1.msra.mxu0 %v275
      %536 = vmatprep.subr.mxu0 0.0
      %537 = vmatpush1.msra.mxu0 %v276
      %538 = vmatprep.subr.mxu0 0.0
      %539 = vmatpush1.msra.mxu0 %v277
      %540 = vmatprep.subr.mxu0 0.0
      %541 = vmatpush1.msra.mxu0 %v278
      %542 = vmatprep.subr.mxu0 0.0
      %543 = vmatpush1.msra.mxu0 %v279
      %544 = vmatprep.subr.mxu0 0.0
      %545 = vmatpush1.msra.mxu0 %v280
      %546 = vmatprep.subr.mxu0 0.0
      %547 = vmatpush1.msra.mxu0 %v281
      %548 = vmatprep.subr.mxu0 0.0
      %549 = vmatpush1.msra.mxu0 %v282
      %550 = vmatprep.subr.mxu0 0.0
      %551 = vmatpush1.msra.mxu0 %v283
      %552 = vmatprep.subr.mxu0 0.0
      %553 = vmatpush1.msra.mxu0 0.0
      %554 = vmatprep.subr.mxu0 0.0
      %555 = vmatpush1.msra.mxu0 0.0
      %556 = vmatprep.subr.mxu0 0.0
      %557 = vmatpush1.msra.mxu0 0.0
      %558 = vmatprep.subr.mxu0 0.0
      %559 = vmatpush1.msra.mxu0 0.0
      %560 = vmatprep.subr.mxu0 0.0
      %561 = vmatpush1.msra.mxu0 0.0
      %562 = vmatprep.subr.mxu0 0.0
      %563 = vmatpush1.msra.mxu0 0.0
      %564 = vmatprep.subr.mxu0 0.0
      %565 = vmatpush1.msra.mxu0 0.0
      %566 = vmatprep.subr.mxu0 0.0
      %567 = vmatpush1.msra.mxu0 0.0
      %568 = vmatprep.subr.mxu0 0.0
      %569 = vmatpush1.msra.mxu0 0.0
      %570 = vmatprep.subr.mxu0 0.0
      %571 = vmatpush1.msra.mxu0 0.0
      %572 = vmatprep.subr.mxu0 0.0
      %573 = vmatpush1.msra.mxu0 0.0
      %574 = vmatprep.subr.mxu0 0.0
      %575 = vmatpush1.msra.mxu0 0.0
      %576 = vmatprep.subr.mxu0 0.0
      %577 = vmatpush1.msra.mxu0 0.0
      %578 = vmatprep.subr.mxu0 0.0
      %579 = vmatpush1.msra.mxu0 0.0
      %580 = vmatprep.subr.mxu0 0.0
      %581 = vmatpush1.msra.mxu0 0.0
      %582 = vmatprep.subr.mxu0 0.0
      %583 = vmatpush1.msra.mxu0 0.0
      %584 = vmatprep.mubr.f32.mxu0 0.0
      %585 = vmatmul.mubr.f32.gmra.mrb[0].mxu0 %v227
      %v586 = vpop.f32.mrb[0].mxu0
      %v587 = vadd.f32 0.0, %v586
      %v588 = vpop.f32.mrb[0].mxu0
      %589 = vdwg.mxu0
      %590 = vmatprep.subr.mxu0 0.0
      %591 = vmatpush1.msra.mxu0 %v252
      %592 = vmatprep.subr.mxu0 0.0
      %593 = vmatpush1.msra.mxu0 %v253
      %594 = vmatprep.subr.mxu0 0.0
      %595 = vmatpush1.msra.mxu0 %v254
      %596 = vmatprep.subr.mxu0 0.0
      %597 = vmatpush1.msra.mxu0 %v255
      %598 = vmatprep.subr.mxu0 0.0
      %599 = vmatpush1.msra.mxu0 %v256
      %600 = vmatprep.subr.mxu0 0.0
      %601 = vmatpush1.msra.mxu0 %v257
      %602 = vmatprep.subr.mxu0 0.0
      %603 = vmatpush1.msra.mxu0 %v258
      %604 = vmatprep.subr.mxu0 0.0
      %605 = vmatpush1.msra.mxu0 %v259
      %606 = vmatprep.subr.mxu0 0.0
      %607 = vmatpush1.msra.mxu0 %v260
      %608 = vmatprep.subr.mxu0 0.0
      %609 = vmatpush1.msra.mxu0 %v261
      %610 = vmatprep.subr.mxu0 0.0
      %611 = vmatpush1.msra.mxu0 %v262
      %612 = vmatprep.subr.mxu0 0.0
      %613 = vmatpush1.msra.mxu0 %v263
      %614 = vmatprep.subr.mxu0 0.0
      %615 = vmatpush1.msra.mxu0 %v264
      %616 = vmatprep.subr.mxu0 0.0
      %617 = vmatpush1.msra.mxu0 %v265
      %618 = vmatprep.subr.mxu0 0.0
      %619 = vmatpush1.msra.mxu0 %v266
      %620 = vmatprep.subr.mxu0 0.0
      %621 = vmatpush1.msra.mxu0 %v267
      %622 = vmatprep.subr.mxu0 0.0
      %623 = vmatpush1.msra.mxu0 0.0
      %624 = vmatprep.subr.mxu0 0.0
      %625 = vmatpush1.msra.mxu0 0.0
      %626 = vmatprep.subr.mxu0 0.0
      %627 = vmatpush1.msra.mxu0 0.0
      %628 = vmatprep.subr.mxu0 0.0
      %629 = vmatpush1.msra.mxu0 0.0
      %630 = vmatprep.subr.mxu0 0.0
      %631 = vmatpush1.msra.mxu0 0.0
      %632 = vmatprep.subr.mxu0 0.0
      %633 = vmatpush1.msra.mxu0 0.0
      %634 = vmatprep.subr.mxu0 0.0
      %635 = vmatpush1.msra.mxu0 0.0
      %636 = vmatprep.subr.mxu0 0.0
      %637 = vmatpush1.msra.mxu0 0.0
      %638 = vmatprep.subr.mxu0 0.0
      %639 = vmatpush1.msra.mxu0 0.0
      %640 = vmatprep.subr.mxu0 0.0
      %641 = vmatpush1.msra.mxu0 0.0
      %642 = vmatprep.subr.mxu0 0.0
      %643 = vmatpush1.msra.mxu0 0.0
      %644 = vmatprep.subr.mxu0 0.0
      %645 = vmatpush1.msra.mxu0 0.0
      %646 = vmatprep.subr.mxu0 0.0
      %647 = vmatpush1.msra.mxu0 0.0
      %648 = vmatprep.subr.mxu0 0.0
      %649 = vmatpush1.msra.mxu0 0.0
      %650 = vmatprep.subr.mxu0 0.0
      %651 = vmatpush1.msra.mxu0 0.0
      %652 = vmatprep.subr.mxu0 0.0
      %653 = vmatpush1.msra.mxu0 0.0
      %654 = vmatprep.mubr.f32.mxu0 0.0
      %655 = vmatmul.mubr.f32.gmra.mrb[0].mxu0 %v225
      %v656 = vpop.f32.mrb[0].mxu0
      %v657 = vadd.f32 %v587, %v656
      %v658 = vpop.f32.mrb[0].mxu0
      %659 = vdwg.mxu0
      %660 = vmatprep.subr.mxu0 0.0
      %661 = vmatpush1.msra.mxu0 %v424
      %662 = vmatprep.subr.mxu0 0.0
      %663 = vmatpush1.msra.mxu0 %v425
      %664 = vmatprep.subr.mxu0 0.0
      %665 = vmatpush1.msra.mxu0 %v426
      %666 = vmatprep.subr.mxu0 0.0
      %667 = vmatpush1.msra.mxu0 %v427
      %668 = vmatprep.subr.mxu0 0.0
      %669 = vmatpush1.msra.mxu0 %v428
      %670 = vmatprep.subr.mxu0 0.0
      %671 = vmatpush1.msra.mxu0 %v429
      %672 = vmatprep.subr.mxu0 0.0
      %673 = vmatpush1.msra.mxu0 %v430
      %674 = vmatprep.subr.mxu0 0.0
      %675 = vmatpush1.msra.mxu0 %v431
      %676 = vmatprep.subr.mxu0 0.0
      %677 = vmatpush1.msra.mxu0 %v432
      %678 = vmatprep.subr.mxu0 0.0
      %679 = vmatpush1.msra.mxu0 %v433
      %680 = vmatprep.subr.mxu0 0.0
      %681 = vmatpush1.msra.mxu0 %v434
      %682 = vmatprep.subr.mxu0 0.0
      %683 = vmatpush1.msra.mxu0 %v435
      %684 = vmatprep.subr.mxu0 0.0
      %685 = vmatpush1.msra.mxu0 %v436
      %686 = vmatprep.subr.mxu0 0.0
      %687 = vmatpush1.msra.mxu0 %v437
      %688 = vmatprep.subr.mxu0 0.0
      %689 = vmatpush1.msra.mxu0 %v438
      %690 = vmatprep.subr.mxu0 0.0
      %691 = vmatpush1.msra.mxu0 %v439
      %692 = vmatprep.subr.mxu0 0.0
      %693 = vmatpush1.msra.mxu0 0.0
      %694 = vmatprep.subr.mxu0 0.0
      %695 = vmatpush1.msra.mxu0 0.0
      %696 = vmatprep.subr.mxu0 0.0
      %697 = vmatpush1.msra.mxu0 0.0
      %698 = vmatprep.subr.mxu0 0.0
      %699 = vmatpush1.msra.mxu0 0.0
      %700 = vmatprep.subr.mxu0 0.0
      %701 = vmatpush1.msra.mxu0 0.0
      %702 = vmatprep.subr.mxu0 0.0
      %703 = vmatpush1.msra.mxu0 0.0
      %704 = vmatprep.subr.mxu0 0.0
      %705 = vmatpush1.msra.mxu0 0.0
      %706 = vmatprep.subr.mxu0 0.0
      %707 = vmatpush1.msra.mxu0 0.0
      %708 = vmatprep.subr.mxu0 0.0
      %709 = vmatpush1.msra.mxu0 0.0
      %710 = vmatprep.subr.mxu0 0.0
      %711 = vmatpush1.msra.mxu0 0.0
      %712 = vmatprep.subr.mxu0 0.0
      %713 = vmatpush1.msra.mxu0 0.0
      %714 = vmatprep.subr.mxu0 0.0
      %715 = vmatpush1.msra.mxu0 0.0
      %716 = vmatprep.subr.mxu0 0.0
      %717 = vmatpush1.msra.mxu0 0.0
      %718 = vmatprep.subr.mxu0 0.0
      %719 = vmatpush1.msra.mxu0 0.0
      %720 = vmatprep.subr.mxu0 0.0
      %721 = vmatpush1.msra.mxu0 0.0
      %722 = vmatprep.subr.mxu0 0.0
      %723 = vmatpush1.msra.mxu0 0.0
      %724 = vmatprep.mubr.f32.mxu0 0.0
      %725 = vmatmul.mubr.f32.gmra.mrb[0].mxu0 %v251
      %v726 = vpop.f32.mrb[0].mxu0
      %v727 = vadd.f32 0.0, %v726
      %v728 = vpop.f32.mrb[0].mxu0
      %729 = vdwg.mxu0
      %v730 = vadd.f32 %v657, %v727
      %v731 = vadd.f32 %v730, %v516
      %v732 = vmax.f32 %v731, 0.0
      %v733 = vrot.slane %v732, 7
      %v734 = vsel %vm245, 0.0, %v733
      %v735 = vld [vmem:[%s3] sm:$0xff]
      %v736 = vld [vmem:[%s3 + $0x8] sm:$0xff]
      %v737 = vld [vmem:[%s3 + $0x10] sm:$0xff]
      %v738 = vld [vmem:[%s3 + $0x18] sm:$0xff]
      %v739 = vld [vmem:[%s3 + $0x20] sm:$0xff]
      %v740 = vld [vmem:[%s3 + $0x28] sm:$0xff]
      %v741 = vld [vmem:[%s3 + $0x30] sm:$0xff]
      %v742 = vld [vmem:[%s3 + $0x38] sm:$0xff]
      %v743 = vld [vmem:[%s3 + $0x40] sm:$0xff]
      %v744 = vld [vmem:[%s3 + $0x48] sm:$0xff]
      %v745 = vld [vmem:[%s3 + $0x50] sm:$0xff]
      %v746 = vld [vmem:[%s3 + $0x58] sm:$0xff]
      %v747 = vld [vmem:[%s3 + $0x60] sm:$0xff]
      %v748 = vld [vmem:[%s3 + $0x68] sm:$0xff]
      %v749 = vld [vmem:[%s3 + $0x70] sm:$0xff]
      %v750 = vld [vmem:[%s3 + $0x78] sm:$0xff]
      %v751 = vld [vmem:[%s3 + $0x80] sm:$0xff]
      %v752 = vld [vmem:[%s3 + $0x88] sm:$0xff]
      %v753 = vld [vmem:[%s3 + $0x90] sm:$0xff]
      %v754 = vld [vmem:[%s3 + $0x98] sm:$0xff]
      %v755 = vld [vmem:[%s3 + $0xa0] sm:$0xff]
      %v756 = vld [vmem:[%s3 + $0xa8] sm:$0xff]
      %v757 = vld [vmem:[%s3 + $0xb0] sm:$0xff]
      %v758 = vld [vmem:[%s3 + $0xb8] sm:$0xff]
      %v759 = vld [vmem:[%s3 + $0xc0] sm:$0xff]
      %v760 = vld [vmem:[%s3 + $0xc8] sm:$0xff]
      %v761 = vld [vmem:[%s3 + $0xd0] sm:$0xff]
      %v762 = vld [vmem:[%s3 + $0xd8] sm:$0xff]
      %v763 = vld [vmem:[%s3 + $0xe0] sm:$0xff]
      %v764 = vld [vmem:[%s3 + $0xe8] sm:$0xff]
      %v765 = vld [vmem:[%s3 + $0xf0] sm:$0xff]
      %v766 = vld [vmem:[%s3 + $0xf8] sm:$0xff]
      %767 = vmatprep.subr.mxu0 0.0
      %768 = vmatpush1.msra.mxu0 %v751
      %769 = vmatprep.subr.mxu0 0.0
      %770 = vmatpush1.msra.mxu0 %v752
      %771 = vmatprep.subr.mxu0 0.0
      %772 = vmatpush1.msra.mxu0 %v753
      %773 = vmatprep.subr.mxu0 0.0
      %774 = vmatpush1.msra.mxu0 %v754
      %775 = vmatprep.subr.mxu0 0.0
      %776 = vmatpush1.msra.mxu0 %v755
      %777 = vmatprep.subr.mxu0 0.0
      %778 = vmatpush1.msra.mxu0 %v756
      %779 = vmatprep.subr.mxu0 0.0
      %780 = vmatpush1.msra.mxu0 %v757
      %781 = vmatprep.subr.mxu0 0.0
      %782 = vmatpush1.msra.mxu0 %v758
      %783 = vmatprep.subr.mxu0 0.0
      %784 = vmatpush1.msra.mxu0 %v759
      %785 = vmatprep.subr.mxu0 0.0
      %786 = vmatpush1.msra.mxu0 %v760
      %787 = vmatprep.subr.mxu0 0.0
      %788 = vmatpush1.msra.mxu0 %v761
      %789 = vmatprep.subr.mxu0 0.0
      %790 = vmatpush1.msra.mxu0 %v762
      %791 = vmatprep.subr.mxu0 0.0
      %792 = vmatpush1.msra.mxu0 %v763
      %793 = vmatprep.subr.mxu0 0.0
      %794 = vmatpush1.msra.mxu0 %v764
      %795 = vmatprep.subr.mxu0 0.0
      %796 = vmatpush1.msra.mxu0 %v765
      %797 = vmatprep.subr.mxu0 0.0
      %798 = vmatpush1.msra.mxu0 %v766
      %799 = vmatprep.subr.mxu0 0.0
      %800 = vmatpush1.msra.mxu0 0.0
      %801 = vmatprep.subr.mxu0 0.0
      %802 = vmatpush1.msra.mxu0 0.0
      %803 = vmatprep.subr.mxu0 0.0
      %804 = vmatpush1.msra.mxu0 0.0
      %805 = vmatprep.subr.mxu0 0.0
      %806 = vmatpush1.msra.mxu0 0.0
      %807 = vmatprep.subr.mxu0 0.0
      %808 = vmatpush1.msra.mxu0 0.0
      %809 = vmatprep.subr.mxu0 0.0
      %810 = vmatpush1.msra.mxu0 0.0
      %811 = vmatprep.subr.mxu0 0.0
      %812 = vmatpush1.msra.mxu0 0.0
      %813 = vmatprep.subr.mxu0 0.0
      %814 = vmatpush1.msra.mxu0 0.0
      %815 = vmatprep.subr.mxu0 0.0
      %816 = vmatpush1.msra.mxu0 0.0
      %817 = vmatprep.subr.mxu0 0.0
      %818 = vmatpush1.msra.mxu0 0.0
      %819 = vmatprep.subr.mxu0 0.0
      %820 = vmatpush1.msra.mxu0 0.0
      %821 = vmatprep.subr.mxu0 0.0
      %822 = vmatpush1.msra.mxu0 0.0
      %823 = vmatprep.subr.mxu0 0.0
      %824 = vmatpush1.msra.mxu0 0.0
      %825 = vmatprep.subr.mxu0 0.0
      %826 = vmatpush1.msra.mxu0 0.0
      %827 = vmatprep.subr.mxu0 0.0
      %828 = vmatpush1.msra.mxu0 0.0
      %829 = vmatprep.subr.mxu0 0.0
      %830 = vmatpush1.msra.mxu0 0.0
      %831 = vmatprep.mubr.f32.mxu0 0.0
      %832 = vmatmul.mubr.f32.gmra.mrb[0].mxu0 %v519
      %v833 = vpop.f32.mrb[0].mxu0
      %v834 = vadd.f32 0.0, %v833
      %v835 = vpop.f32.mrb[0].mxu0
      %836 = vdwg.mxu0
      %837 = vmatprep.subr.mxu0 0.0
      %838 = vmatpush1.msra.mxu0 %v735
      %839 = vmatprep.subr.mxu0 0.0
      %840 = vmatpush1.msra.mxu0 %v736
      %841 = vmatprep.subr.mxu0 0.0
      %842 = vmatpush1.msra.mxu0 %v737
      %843 = vmatprep.subr.mxu0 0.0
      %844 = vmatpush1.msra.mxu0 %v738
      %845 = vmatprep.subr.mxu0 0.0
      %846 = vmatpush1.msra.mxu0 %v739
      %847 = vmatprep.subr.mxu0 0.0
      %848 = vmatpush1.msra.mxu0 %v740
      %849 = vmatprep.subr.mxu0 0.0
      %850 = vmatpush1.msra.mxu0 %v741
      %851 = vmatprep.subr.mxu0 0.0
      %852 = vmatpush1.msra.mxu0 %v742
      %853 = vmatprep.subr.mxu0 0.0
      %854 = vmatpush1.msra.mxu0 %v743
      %855 = vmatprep.subr.mxu0 0.0
      %856 = vmatpush1.msra.mxu0 %v744
      %857 = vmatprep.subr.mxu0 0.0
      %858 = vmatpush1.msra.mxu0 %v745
      %859 = vmatprep.subr.mxu0 0.0
      %860 = vmatpush1.msra.mxu0 %v746
      %861 = vmatprep.subr.mxu0 0.0
      %862 = vmatpush1.msra.mxu0 %v747
      %863 = vmatprep.subr.mxu0 0.0
      %864 = vmatpush1.msra.mxu0 %v748
      %865 = vmatprep.subr.mxu0 0.0
      %866 = vmatpush1.msra.mxu0 %v749
      %867 = vmatprep.subr.mxu0 0.0
      %868 = vmatpush1.msra.mxu0 %v750
      %869 = vmatprep.subr.mxu0 0.0
      %870 = vmatpush1.msra.mxu0 0.0
      %871 = vmatprep.subr.mxu0 0.0
      %872 = vmatpush1.msra.mxu0 0.0
      %873 = vmatprep.subr.mxu0 0.0
      %874 = vmatpush1.msra.mxu0 0.0
      %875 = vmatprep.subr.mxu0 0.0
      %876 = vmatpush1.msra.mxu0 0.0
      %877 = vmatprep.subr.mxu0 0.0
      %878 = vmatpush1.msra.mxu0 0.0
      %879 = vmatprep.subr.mxu0 0.0
      %880 = vmatpush1.msra.mxu0 0.0
      %881 = vmatprep.subr.mxu0 0.0
      %882 = vmatpush1.msra.mxu0 0.0
      %883 = vmatprep.subr.mxu0 0.0
      %884 = vmatpush1.msra.mxu0 0.0
      %885 = vmatprep.subr.mxu0 0.0
      %886 = vmatpush1.msra.mxu0 0.0
      %887 = vmatprep.subr.mxu0 0.0
      %888 = vmatpush1.msra.mxu0 0.0
      %889 = vmatprep.subr.mxu0 0.0
      %890 = vmatpush1.msra.mxu0 0.0
      %891 = vmatprep.subr.mxu0 0.0
      %892 = vmatpush1.msra.mxu0 0.0
      %893 = vmatprep.subr.mxu0 0.0
      %894 = vmatpush1.msra.mxu0 0.0
      %895 = vmatprep.subr.mxu0 0.0
      %896 = vmatpush1.msra.mxu0 0.0
      %897 = vmatprep.subr.mxu0 0.0
      %898 = vmatpush1.msra.mxu0 0.0
      %899 = vmatprep.subr.mxu0 0.0
      %900 = vmatpush1.msra.mxu0 0.0
      %901 = vmatprep.mubr.f32.mxu0 0.0
      %902 = vmatmul.mubr.f32.gmra.mrb[0].mxu0 %v734
      %v903 = vpop.f32.mrb[0].mxu0
      %v904 = vadd.f32 %v834, %v903
      %v905 = vpop.f32.mrb[0].mxu0
      %906 = vdwg.mxu0
      %v907 = vld [vmem:[%s3 + $0x100] sm:$0xff]
      %v908 = vld [vmem:[%s3 + $0x108] sm:$0xff]
      %v909 = vld [vmem:[%s3 + $0x110] sm:$0xff]
      %v910 = vld [vmem:[%s3 + $0x118] sm:$0xff]
      %v911 = vld [vmem:[%s3 + $0x120] sm:$0xff]
      %v912 = vld [vmem:[%s3 + $0x128] sm:$0xff]
      %v913 = vld [vmem:[%s3 + $0x130] sm:$0xff]
      %v914 = vld [vmem:[%s3 + $0x138] sm:$0xff]
      %v915 = vld [vmem:[%s3 + $0x140] sm:$0xff]
      %v916 = vld [vmem:[%s3 + $0x148] sm:$0xff]
      %v917 = vld [vmem:[%s3 + $0x150] sm:$0xff]
      %v918 = vld [vmem:[%s3 + $0x158] sm:$0xff]
      %v919 = vld [vmem:[%s3 + $0x160] sm:$0xff]
      %v920 = vld [vmem:[%s3 + $0x168] sm:$0xff]
      %v921 = vld [vmem:[%s3 + $0x170] sm:$0xff]
      %v922 = vld [vmem:[%s3 + $0x178] sm:$0xff]
      %923 = vmatprep.subr.mxu0 0.0
      %924 = vmatpush1.msra.mxu0 %v907
      %925 = vmatprep.subr.mxu0 0.0
      %926 = vmatpush1.msra.mxu0 %v908
      %927 = vmatprep.subr.mxu0 0.0
      %928 = vmatpush1.msra.mxu0 %v909
      %929 = vmatprep.subr.mxu0 0.0
      %930 = vmatpush1.msra.mxu0 %v910
      %931 = vmatprep.subr.mxu0 0.0
      %932 = vmatpush1.msra.mxu0 %v911
      %933 = vmatprep.subr.mxu0 0.0
      %934 = vmatpush1.msra.mxu0 %v912
      %935 = vmatprep.subr.mxu0 0.0
      %936 = vmatpush1.msra.mxu0 %v913
      %937 = vmatprep.subr.mxu0 0.0
      %938 = vmatpush1.msra.mxu0 %v914
      %939 = vmatprep.subr.mxu0 0.0
      %940 = vmatpush1.msra.mxu0 %v915
      %941 = vmatprep.subr.mxu0 0.0
      %942 = vmatpush1.msra.mxu0 %v916
      %943 = vmatprep.subr.mxu0 0.0
      %944 = vmatpush1.msra.mxu0 %v917
      %945 = vmatprep.subr.mxu0 0.0
      %946 = vmatpush1.msra.mxu0 %v918
      %947 = vmatprep.subr.mxu0 0.0
      %948 = vmatpush1.msra.mxu0 %v919
      %949 = vmatprep.subr.mxu0 0.0
      %950 = vmatpush1.msra.mxu0 %v920
      %951 = vmatprep.subr.mxu0 0.0
      %952 = vmatpush1.msra.mxu0 %v921
      %953 = vmatprep.subr.mxu0 0.0
      %954 = vmatpush1.msra.mxu0 %v922
      %955 = vmatprep.subr.mxu0 0.0
      %956 = vmatpush1.msra.mxu0 0.0
      %957 = vmatprep.subr.mxu0 0.0
      %958 = vmatpush1.msra.mxu0 0.0
      %959 = vmatprep.subr.mxu0 0.0
      %960 = vmatpush1.msra.mxu0 0.0
      %961 = vmatprep.subr.mxu0 0.0
      %962 = vmatpush1.msra.mxu0 0.0
      %963 = vmatprep.subr.mxu0 0.0
      %964 = vmatpush1.msra.mxu0 0.0
      %965 = vmatprep.subr.mxu0 0.0
      %966 = vmatpush1.msra.mxu0 0.0
      %967 = vmatprep.subr.mxu0 0.0
      %968 = vmatpush1.msra.mxu0 0.0
      %969 = vmatprep.subr.mxu0 0.0
      %970 = vmatpush1.msra.mxu0 0.0
      %971 = vmatprep.subr.mxu0 0.0
      %972 = vmatpush1.msra.mxu0 0.0
      %973 = vmatprep.subr.mxu0 0.0
      %974 = vmatpush1.msra.mxu0 0.0
      %975 = vmatprep.subr.mxu0 0.0
      %976 = vmatpush1.msra.mxu0 0.0
      %977 = vmatprep.subr.mxu0 0.0
      %978 = vmatpush1.msra.mxu0 0.0
      %979 = vmatprep.subr.mxu0 0.0
      %980 = vmatpush1.msra.mxu0 0.0
      %981 = vmatprep.subr.mxu0 0.0
      %982 = vmatpush1.msra.mxu0 0.0
      %983 = vmatprep.subr.mxu0 0.0
      %984 = vmatpush1.msra.mxu0 0.0
      %985 = vmatprep.subr.mxu0 0.0
      %986 = vmatpush1.msra.mxu0 0.0
      %987 = vmatprep.mubr.f32.mxu0 0.0
      %988 = vmatmul.mubr.f32.gmra.mrb[0].mxu0 %v732
      %v989 = vpop.f32.mrb[0].mxu0
      %v990 = vadd.f32 0.0, %v989
      %v991 = vpop.f32.mrb[0].mxu0
      %992 = vdwg.mxu0
      %v993 = vadd.f32 %v904, %v990
      %v994 = vld [vmem:[%s3 + $0x180] sm:$0xff]
      %v995 = vld [vmem:[%s3 + $0x188] sm:$0xff]
      %v996 = vld [vmem:[%s3 + $0x190] sm:$0xff]
      %v997 = vld [vmem:[%s3 + $0x198] sm:$0xff]
      %v998 = vld [vmem:[%s3 + $0x1a0] sm:$0xff]
      %v999 = vld [vmem:[%s3 + $0x1a8] sm:$0xff]
      %v1000 = vld [vmem:[%s3 + $0x1b0] sm:$0xff]
      %v1001 = vld [vmem:[%s3 + $0x1b8] sm:$0xff]
      %v1002 = vld [vmem:[%s3 + $0x1c0] sm:$0xff]
      %v1003 = vld [vmem:[%s3 + $0x1c8] sm:$0xff]
      %v1004 = vld [vmem:[%s3 + $0x1d0] sm:$0xff]
      %v1005 = vld [vmem:[%s3 + $0x1d8] sm:$0xff]
      %v1006 = vld [vmem:[%s3 + $0x1e0] sm:$0xff]
      %v1007 = vld [vmem:[%s3 + $0x1e8] sm:$0xff]
      %v1008 = vld [vmem:[%s3 + $0x1f0] sm:$0xff]
      %v1009 = vld [vmem:[%s3 + $0x1f8] sm:$0xff]
      %1010 = vmatprep.subr.mxu0 0.0
      %1011 = vmatpush1.msra.mxu0 %v994
      %1012 = vmatprep.subr.mxu0 0.0
      %1013 = vmatpush1.msra.mxu0 %v995
      %1014 = vmatprep.subr.mxu0 0.0
      %1015 = vmatpush1.msra.mxu0 %v996
      %1016 = vmatprep.subr.mxu0 0.0
      %1017 = vmatpush1.msra.mxu0 %v997
      %1018 = vmatprep.subr.mxu0 0.0
      %1019 = vmatpush1.msra.mxu0 %v998
      %1020 = vmatprep.subr.mxu0 0.0
      %1021 = vmatpush1.msra.mxu0 %v999
      %1022 = vmatprep.subr.mxu0 0.0
      %1023 = vmatpush1.msra.mxu0 %v1000
      %1024 = vmatprep.subr.mxu0 0.0
      %1025 = vmatpush1.msra.mxu0 %v1001
      %1026 = vmatprep.subr.mxu0 0.0
      %1027 = vmatpush1.msra.mxu0 %v1002
      %1028 = vmatprep.subr.mxu0 0.0
      %1029 = vmatpush1.msra.mxu0 %v1003
      %1030 = vmatprep.subr.mxu0 0.0
      %1031 = vmatpush1.msra.mxu0 %v1004
      %1032 = vmatprep.subr.mxu0 0.0
      %1033 = vmatpush1.msra.mxu0 %v1005
      %1034 = vmatprep.subr.mxu0 0.0
      %1035 = vmatpush1.msra.mxu0 %v1006
      %1036 = vmatprep.subr.mxu0 0.0
      %1037 = vmatpush1.msra.mxu0 %v1007
      %1038 = vmatprep.subr.mxu0 0.0
      %1039 = vmatpush1.msra.mxu0 %v1008
      %1040 = vmatprep.subr.mxu0 0.0
      %1041 = vmatpush1.msra.mxu0 %v1009
      %1042 = vmatprep.subr.mxu0 0.0
      %1043 = vmatpush1.msra.mxu0 0.0
      %1044 = vmatprep.subr.mxu0 0.0
      %1045 = vmatpush1.msra.mxu0 0.0
      %1046 = vmatprep.subr.mxu0 0.0
      %1047 = vmatpush1.msra.mxu0 0.0
      %1048 = vmatprep.subr.mxu0 0.0
      %1049 = vmatpush1.msra.mxu0 0.0
      %1050 = vmatprep.subr.mxu0 0.0
      %1051 = vmatpush1.msra.mxu0 0.0
      %1052 = vmatprep.subr.mxu0 0.0
      %1053 = vmatpush1.msra.mxu0 0.0
      %1054 = vmatprep.subr.mxu0 0.0
      %1055 = vmatpush1.msra.mxu0 0.0
      %1056 = vmatprep.subr.mxu0 0.0
      %1057 = vmatpush1.msra.mxu0 0.0
      %1058 = vmatprep.subr.mxu0 0.0
      %1059 = vmatpush1.msra.mxu0 0.0
      %1060 = vmatprep.subr.mxu0 0.0
      %1061 = vmatpush1.msra.mxu0 0.0
      %1062 = vmatprep.subr.mxu0 0.0
      %1063 = vmatpush1.msra.mxu0 0.0
      %1064 = vmatprep.subr.mxu0 0.0
      %1065 = vmatpush1.msra.mxu0 0.0
      %1066 = vmatprep.subr.mxu0 0.0
      %1067 = vmatpush1.msra.mxu0 0.0
      %1068 = vmatprep.subr.mxu0 0.0
      %1069 = vmatpush1.msra.mxu0 0.0
      %1070 = vmatprep.subr.mxu0 0.0
      %1071 = vmatpush1.msra.mxu0 0.0
      %1072 = vmatprep.subr.mxu0 0.0
      %1073 = vmatpush1.msra.mxu0 0.0
      %1074 = vmatprep.mubr.f32.mxu0 0.0
      %1075 = vmatmul.mubr.f32.gmra.mrb[0].mxu0 %v246
      %v1076 = vpop.f32.mrb[0].mxu0
      %v1077 = vadd.f32 0.0, %v1076
      %v1078 = vpop.f32.mrb[0].mxu0
      %1079 = vdwg.mxu0
      %v1080 = vadd.f32 %v993, %v1077
      %v1081 = vld [vmem:[%s3 + $0x200] sm:$0xff]
      %v1082 = vld [vmem:[%s3 + $0x208] sm:$0xff]
      %v1083 = vld [vmem:[%s3 + $0x210] sm:$0xff]
      %v1084 = vld [vmem:[%s3 + $0x218] sm:$0xff]
      %v1085 = vld [vmem:[%s3 + $0x220] sm:$0xff]
      %v1086 = vld [vmem:[%s3 + $0x228] sm:$0xff]
      %v1087 = vld [vmem:[%s3 + $0x230] sm:$0xff]
      %v1088 = vld [vmem:[%s3 + $0x238] sm:$0xff]
      %v1089 = vld [vmem:[%s3 + $0x240] sm:$0xff]
      %v1090 = vld [vmem:[%s3 + $0x248] sm:$0xff]
      %v1091 = vld [vmem:[%s3 + $0x250] sm:$0xff]
      %v1092 = vld [vmem:[%s3 + $0x258] sm:$0xff]
      %v1093 = vld [vmem:[%s3 + $0x260] sm:$0xff]
      %v1094 = vld [vmem:[%s3 + $0x268] sm:$0xff]
      %v1095 = vld [vmem:[%s3 + $0x270] sm:$0xff]
      %v1096 = vld [vmem:[%s3 + $0x278] sm:$0xff]
      %1097 = vmatprep.subr.mxu0 0.0
      %1098 = vmatpush1.msra.mxu0 %v1081
      %1099 = vmatprep.subr.mxu0 0.0
      %1100 = vmatpush1.msra.mxu0 %v1082
      %1101 = vmatprep.subr.mxu0 0.0
      %1102 = vmatpush1.msra.mxu0 %v1083
      %1103 = vmatprep.subr.mxu0 0.0
      %1104 = vmatpush1.msra.mxu0 %v1084
      %1105 = vmatprep.subr.mxu0 0.0
      %1106 = vmatpush1.msra.mxu0 %v1085
      %1107 = vmatprep.subr.mxu0 0.0
      %1108 = vmatpush1.msra.mxu0 %v1086
      %1109 = vmatprep.subr.mxu0 0.0
      %1110 = vmatpush1.msra.mxu0 %v1087
      %1111 = vmatprep.subr.mxu0 0.0
      %1112 = vmatpush1.msra.mxu0 %v1088
      %1113 = vmatprep.subr.mxu0 0.0
      %1114 = vmatpush1.msra.mxu0 %v1089
      %1115 = vmatprep.subr.mxu0 0.0
      %1116 = vmatpush1.msra.mxu0 %v1090
      %1117 = vmatprep.subr.mxu0 0.0
      %1118 = vmatpush1.msra.mxu0 %v1091
      %1119 = vmatprep.subr.mxu0 0.0
      %1120 = vmatpush1.msra.mxu0 %v1092
      %1121 = vmatprep.subr.mxu0 0.0
      %1122 = vmatpush1.msra.mxu0 %v1093
      %1123 = vmatprep.subr.mxu0 0.0
      %1124 = vmatpush1.msra.mxu0 %v1094
      %1125 = vmatprep.subr.mxu0 0.0
      %1126 = vmatpush1.msra.mxu0 %v1095
      %1127 = vmatprep.subr.mxu0 0.0
      %1128 = vmatpush1.msra.mxu0 %v1096
      %1129 = vmatprep.subr.mxu0 0.0
      %1130 = vmatpush1.msra.mxu0 0.0
      %1131 = vmatprep.subr.mxu0 0.0
      %1132 = vmatpush1.msra.mxu0 0.0
      %1133 = vmatprep.subr.mxu0 0.0
      %1134 = vmatpush1.msra.mxu0 0.0
      %1135 = vmatprep.subr.mxu0 0.0
      %1136 = vmatpush1.msra.mxu0 0.0
      %1137 = vmatprep.subr.mxu0 0.0
      %1138 = vmatpush1.msra.mxu0 0.0
      %1139 = vmatprep.subr.mxu0 0.0
      %1140 = vmatpush1.msra.mxu0 0.0
      %1141 = vmatprep.subr.mxu0 0.0
      %1142 = vmatpush1.msra.mxu0 0.0
      %1143 = vmatprep.subr.mxu0 0.0
      %1144 = vmatpush1.msra.mxu0 0.0
      %1145 = vmatprep.subr.mxu0 0.0
      %1146 = vmatpush1.msra.mxu0 0.0
      %1147 = vmatprep.subr.mxu0 0.0
      %1148 = vmatpush1.msra.mxu0 0.0
      %1149 = vmatprep.subr.mxu0 0.0
      %1150 = vmatpush1.msra.mxu0 0.0
      %1151 = vmatprep.subr.mxu0 0.0
      %1152 = vmatpush1.msra.mxu0 0.0
      %1153 = vmatprep.subr.mxu0 0.0
      %1154 = vmatpush1.msra.mxu0 0.0
      %1155 = vmatprep.subr.mxu0 0.0
      %1156 = vmatpush1.msra.mxu0 0.0
      %1157 = vmatprep.subr.mxu0 0.0
      %1158 = vmatpush1.msra.mxu0 0.0
      %1159 = vmatprep.subr.mxu0 0.0
      %1160 = vmatpush1.msra.mxu0 0.0
      %1161 = vmatprep.mubr.f32.mxu0 0.0
      %1162 = vmatmul.mubr.f32.gmra.mrb[0].mxu0 %v225
      %v1163 = vpop.f32.mrb[0].mxu0
      %v1164 = vadd.f32 0.0, %v1163
      %v1165 = vpop.f32.mrb[0].mxu0
      %1166 = vdwg.mxu0
      %v1167 = vadd.f32 %v1080, %v1164
      %v1168 = vld [vmem:[%s3 + $0x280] sm:$0xff]
      %v1169 = vld [vmem:[%s3 + $0x288] sm:$0xff]
      %v1170 = vld [vmem:[%s3 + $0x290] sm:$0xff]
      %v1171 = vld [vmem:[%s3 + $0x298] sm:$0xff]
      %v1172 = vld [vmem:[%s3 + $0x2a0] sm:$0xff]
      %v1173 = vld [vmem:[%s3 + $0x2a8] sm:$0xff]
      %v1174 = vld [vmem:[%s3 + $0x2b0] sm:$0xff]
      %v1175 = vld [vmem:[%s3 + $0x2b8] sm:$0xff]
      %v1176 = vld [vmem:[%s3 + $0x2c0] sm:$0xff]
      %v1177 = vld [vmem:[%s3 + $0x2c8] sm:$0xff]
      %v1178 = vld [vmem:[%s3 + $0x2d0] sm:$0xff]
      %v1179 = vld [vmem:[%s3 + $0x2d8] sm:$0xff]
      %v1180 = vld [vmem:[%s3 + $0x2e0] sm:$0xff]
      %v1181 = vld [vmem:[%s3 + $0x2e8] sm:$0xff]
      %v1182 = vld [vmem:[%s3 + $0x2f0] sm:$0xff]
      %v1183 = vld [vmem:[%s3 + $0x2f8] sm:$0xff]
      %1184 = vmatprep.subr.mxu0 0.0
      %1185 = vmatpush1.msra.mxu0 %v1168
      %1186 = vmatprep.subr.mxu0 0.0
      %1187 = vmatpush1.msra.mxu0 %v1169
      %1188 = vmatprep.subr.mxu0 0.0
      %1189 = vmatpush1.msra.mxu0 %v1170
      %1190 = vmatprep.subr.mxu0 0.0
      %1191 = vmatpush1.msra.mxu0 %v1171
      %1192 = vmatprep.subr.mxu0 0.0
      %1193 = vmatpush1.msra.mxu0 %v1172
      %1194 = vmatprep.subr.mxu0 0.0
      %1195 = vmatpush1.msra.mxu0 %v1173
      %1196 = vmatprep.subr.mxu0 0.0
      %1197 = vmatpush1.msra.mxu0 %v1174
      %1198 = vmatprep.subr.mxu0 0.0
      %1199 = vmatpush1.msra.mxu0 %v1175
      %1200 = vmatprep.subr.mxu0 0.0
      %1201 = vmatpush1.msra.mxu0 %v1176
      %1202 = vmatprep.subr.mxu0 0.0
      %1203 = vmatpush1.msra.mxu0 %v1177
      %1204 = vmatprep.subr.mxu0 0.0
      %1205 = vmatpush1.msra.mxu0 %v1178
      %1206 = vmatprep.subr.mxu0 0.0
      %1207 = vmatpush1.msra.mxu0 %v1179
      %1208 = vmatprep.subr.mxu0 0.0
      %1209 = vmatpush1.msra.mxu0 %v1180
      %1210 = vmatprep.subr.mxu0 0.0
      %1211 = vmatpush1.msra.mxu0 %v1181
      %1212 = vmatprep.subr.mxu0 0.0
      %1213 = vmatpush1.msra.mxu0 %v1182
      %1214 = vmatprep.subr.mxu0 0.0
      %1215 = vmatpush1.msra.mxu0 %v1183
      %1216 = vmatprep.subr.mxu0 0.0
      %1217 = vmatpush1.msra.mxu0 0.0
      %1218 = vmatprep.subr.mxu0 0.0
      %1219 = vmatpush1.msra.mxu0 0.0
      %1220 = vmatprep.subr.mxu0 0.0
      %1221 = vmatpush1.msra.mxu0 0.0
      %1222 = vmatprep.subr.mxu0 0.0
      %1223 = vmatpush1.msra.mxu0 0.0
      %1224 = vmatprep.subr.mxu0 0.0
      %1225 = vmatpush1.msra.mxu0 0.0
      %1226 = vmatprep.subr.mxu0 0.0
      %1227 = vmatpush1.msra.mxu0 0.0
      %1228 = vmatprep.subr.mxu0 0.0
      %1229 = vmatpush1.msra.mxu0 0.0
      %1230 = vmatprep.subr.mxu0 0.0
      %1231 = vmatpush1.msra.mxu0 0.0
      %1232 = vmatprep.subr.mxu0 0.0
      %1233 = vmatpush1.msra.mxu0 0.0
      %1234 = vmatprep.subr.mxu0 0.0
      %1235 = vmatpush1.msra.mxu0 0.0
      %1236 = vmatprep.subr.mxu0 0.0
      %1237 = vmatpush1.msra.mxu0 0.0
      %1238 = vmatprep.subr.mxu0 0.0
      %1239 = vmatpush1.msra.mxu0 0.0
      %1240 = vmatprep.subr.mxu0 0.0
      %1241 = vmatpush1.msra.mxu0 0.0
      %1242 = vmatprep.subr.mxu0 0.0
      %1243 = vmatpush1.msra.mxu0 0.0
      %1244 = vmatprep.subr.mxu0 0.0
      %1245 = vmatpush1.msra.mxu0 0.0
      %1246 = vmatprep.subr.mxu0 0.0
      %1247 = vmatpush1.msra.mxu0 0.0
      %1248 = vmatprep.mubr.f32.mxu0 0.0
      %1249 = vmatmul.mubr.f32.gmra.mrb[0].mxu0 %v227
      %v1250 = vpop.f32.mrb[0].mxu0
      %v1251 = vadd.f32 0.0, %v1250
      %v1252 = vpop.f32.mrb[0].mxu0
      %1253 = vdwg.mxu0
      %v1254 = vadd.f32 %v1167, %v1251
      %v1255 = vld [vmem:[%s4] sm:$0x1]
      %v1257 = vlaneseq
      %v1258 = vshrl.u32 %v1257, 7
      %v1259 = vsub.s32 0, %v1258
      %v1260 = vrot.slane %v1255, %v1259
      %v1262 = vadd.f32 %v1254, %v1260
      %v1263 = vmax.f32 %v1262, 0.0
      %1264 = vst [vmem:[%s224] sm:$0xff] %v1263
      %p1265 = scmp.lt.s32.totalorder %s16, 1
      %s1266 = scalar_select %p1265, %s16, 1
      %s1267 = smul.addr %s1266, 8
      %s1268 = scalar_lea.vmem %s5, %s1267
      // Predicated region
      $region41: #{residual_cnn_pallas.3} parent=39 // pred_check
        %p1269 = pneg %p144
      $region42: #{residual_cnn_pallas.3} parent=39 // pred_check_branch
        %1271 = sbr.rel (%p1269) target = $region44
      $region43: #{residual_cnn_pallas.3} parent=39 // pred_region
        _
      $region44: #{residual_cnn_pallas.3} parent=39 // pred_fallthru
        _
    $region40: #{residual_cnn_pallas.3} parent=5 // pred_fallthru
      _
    %p1272 = scmp.le.s32.totalorder 2, %s11
    // Predicated region
    $region45: #{residual_cnn_pallas.3} parent=5 // pred_check
      %p1273 = pneg %p1272
    $region46: #{residual_cnn_pallas.3} parent=5 // pred_check_branch
      %1275 = sbr.rel (%p1273) target = $region48
    $region47: #{residual_cnn_pallas.3} parent=5 // pred_region
      %s1276 = ssub.s32 %s11, 2
      // Predicated region
      $region49: #{residual_cnn_pallas.3} parent=47 // pred_check
        %p1277 = pneg %p150
      $region50: #{residual_cnn_pallas.3} parent=47 // pred_check_branch
        %1279 = sbr.rel (%p1277) target = $region52
      $region51: #{residual_cnn_pallas.3} parent=47 // pred_region
        %p1280 = scmp.lt.s32.totalorder %s17, 1
        %s1281 = scalar_select %p1280, %s17, 1
        %s1282 = smul.addr %s1281, 8
        %s1283 = scalar_lea.vmem %s5, %s1282
      $region52: #{residual_cnn_pallas.3} parent=47 // pred_fallthru
        _
    $region48: #{residual_cnn_pallas.3} parent=5 // pred_fallthru
      _
  $region6: #{residual_cnn_pallas.3} parent=0 // loop_footer
    %s15 = sadd.s32 1, %s11
  $region7: #{residual_cnn_pallas.3} parent=0 // loop_footer_branch
    %10 = sbr.rel target = $region3
  $region8: #{residual_cnn_pallas.3} parent=0 // loop_exit
    _

</llo_original>
